<compile_context>
chip_gen: v5e
topology: v5e:2x2
jax: 0.10.0
libtpu: 0.0.40
codegen_flags: <defaults>
</compile_context>

<pallas_src>
import jax
import jax.numpy as jnp
from jax.experimental import pallas as pl
from jax.experimental.pallas import tpu as pltpu


def _layer_norm(x, gamma, beta, eps=1e-6):
    # x: (rows, D) f32, gamma/beta: (1, D) f32
    mean = jnp.mean(x, axis=-1, keepdims=True)
    var = jnp.mean((x - mean) ** 2, axis=-1, keepdims=True)
    return (x - mean) * jax.lax.rsqrt(var + eps) * gamma + beta


def _make_kernel(n_head, d_k, d_v, return_attn):
    def kernel(*refs):
        if return_attn:
            (xq_ref, xf_ref,
             wq_ref, wk_ref, wv_ref, wfc_ref,
             ln1g_ref, ln1b_ref,
             w1_ref, b1_ref, w2_ref, b2_ref,
             ln2g_ref, ln2b_ref,
             out_ref, attn_ref,
             k_scr, v_scr) = refs
        else:
            (xq_ref, xf_ref,
             wq_ref, wk_ref, wv_ref, wfc_ref,
             ln1g_ref, ln1b_ref,
             w1_ref, b1_ref, w2_ref, b2_ref,
             ln2g_ref, ln2b_ref,
             out_ref,
             k_scr, v_scr) = refs
            attn_ref = None

        bf16 = jnp.bfloat16
        qi = pl.program_id(1)
        L = xf_ref.shape[1]

        # ---- K/V projection: once per batch row (qi == 0), full-width matmuls.
        #      Results stay resident in VMEM scratch across all query tiles. ----
        @pl.when(qi == 0)
        def _():
            xf = xf_ref[0].astype(bf16)                                  # (L, D)
            k = jnp.dot(xf, wk_ref[...],
                        preferred_element_type=jnp.float32)              # (L, H*d_k)
            v = jnp.dot(xf, wv_ref[...],
                        preferred_element_type=jnp.float32)              # (L, H*d_v)
            k = k.astype(bf16).reshape(L, n_head, d_k)
            v = v.astype(bf16).reshape(L, n_head, d_v)
            k_scr[...] = jnp.transpose(k, (1, 0, 2))                     # (H, L, d_k)
            v_scr[...] = jnp.transpose(v, (1, 0, 2))                     # (H, L, d_v)

        # ---- Q projection for this query tile (1/sqrt(d_k) folded into wq). ----
        xq = xq_ref[0]                                                   # (tq, D) f32
        tq = xq.shape[0]
        q = jnp.dot(xq.astype(bf16), wq_ref[...],
                    preferred_element_type=jnp.float32)                  # (tq, H*d_k)
        q3 = jnp.transpose(q.reshape(tq, n_head, d_k), (1, 0, 2)).astype(bf16)

        # ---- Attention: exact per-row softmax over the full (resident) K. ----
        # TODO(synk): optional slf_attn_mask would be applied to `scores` here.
        scores = jnp.einsum('hqe,hke->hqk', q3, k_scr[...],
                            preferred_element_type=jnp.float32)          # (H, tq, L)
        m = jnp.max(scores, axis=-1, keepdims=True)
        e = jnp.exp(scores - m)
        s = jnp.sum(e, axis=-1, keepdims=True)
        attn = e * pl.reciprocal(s, approx=True)                         # EUP divide
        if return_attn:
            attn_ref[0] = attn

        o3 = jnp.einsum('hqk,hkd->hqd', attn.astype(bf16), v_scr[...],
                        preferred_element_type=jnp.float32)              # (H, tq, d_v)
        o = jnp.transpose(o3, (1, 0, 2)).reshape(tq, n_head * d_v)       # concat heads

        attn_out = jnp.dot(o.astype(bf16), wfc_ref[...],
                           preferred_element_type=jnp.float32)           # (tq, D)

        y = _layer_norm(attn_out + xq, ln1g_ref[...], ln1b_ref[...])

        # ---- Position-wise feed-forward. ----
        # TODO(synk): tile over d_inner for realistic d_inner.
        h = jnp.dot(y.astype(bf16), w1_ref[...],
                    preferred_element_type=jnp.float32) + b1_ref[...]
        h = jnp.maximum(h, 0.0)                                          # relu
        z = jnp.dot(h.astype(bf16), w2_ref[...],
                    preferred_element_type=jnp.float32) + b2_ref[...]
        z = _layer_norm(z + y, ln2g_ref[...], ln2b_ref[...])

        out_ref[0] = z

    return kernel


def _pick_tq(L):
    if L <= 256:
        return L
    for t in (256, 128, 64, 32, 16, 8):
        if L % t == 0:
            return t
    return L


def _vmem_limit_bytes():
    try:
        kind = jax.devices()[0].device_kind.lower()
    except Exception:
        return None
    if "v7" in kind or "7x" in kind:
        return 56 * 1024 * 1024      # leave headroom under v7x's 64 MiB / TC
    if "v5" in kind or "v6" in kind:
        return 100 * 1024 * 1024     # 128 MiB physical; room for >=512-wide tiles
    return None                      # unknown generation: keep compiler default


def encoder_layer(x, params, *, n_head, d_k, d_v, return_attn=True):
    B, L, D = x.shape
    bf16 = jnp.bfloat16
    f32 = jnp.float32

    tq = _pick_tq(L)
    assert L % tq == 0
    n_q = L // tq

    # Host-side (one-time) weight prep: full-width bf16 matrices for the MXU,
    # 1/sqrt(d_k) folded into wq.
    weights = [
        (params["wq"] * (d_k ** -0.5)).astype(bf16),   # (D, H*d_k)
        params["wk"].astype(bf16),                     # (D, H*d_k)
        params["wv"].astype(bf16),                     # (D, H*d_v)
        params["wfc"].astype(bf16),                    # (H*d_v, D)
        params["ln1_g"].astype(f32), params["ln1_b"].astype(f32),
        params["w1"].astype(bf16), params["b1"].astype(f32),
        params["w2"].astype(bf16), params["b2"].astype(f32),
        params["ln2_g"].astype(f32), params["ln2_b"].astype(f32),
    ]

    kernel = _make_kernel(n_head, d_k, d_v, return_attn)
    vmem_limit = _vmem_limit_bytes()

    def weight_spec(arr, buffered):
        nd = arr.ndim
        idx = lambda b, q, _nd=nd: (0,) * _nd   # constant block -> no re-DMA
        if buffered:
            # Single-buffer resident weights: avoids allocating a 2nd VMEM copy.
            return pl.BlockSpec(arr.shape, idx, pipeline_mode=pl.Buffered(1))
        return pl.BlockSpec(arr.shape, idx)

    def build(buffered):
        in_specs = (
            [pl.BlockSpec((1, tq, D), lambda b, q: (b, q, 0)),   # query-row tile
             pl.BlockSpec((1, L, D), lambda b, q: (b, 0, 0))]    # full seq (for K/V)
            + [weight_spec(w, buffered) for w in weights]
        )
        out_specs = [pl.BlockSpec((1, tq, D), lambda b, q: (b, q, 0))]
        out_shapes = [jax.ShapeDtypeStruct((B, L, D), f32)]
        if return_attn:
            out_specs.append(
                pl.BlockSpec((1, n_head, tq, L), lambda b, q: (b, 0, q, 0)))
            out_shapes.append(jax.ShapeDtypeStruct((B, n_head, L, L), f32))
        return pl.pallas_call(
            kernel,
            grid=(B, n_q),
            in_specs=in_specs,
            out_specs=tuple(out_specs),
            out_shape=tuple(out_shapes),
            scratch_shapes=[pltpu.VMEM((n_head, L, d_k), bf16),   # resident K
                            pltpu.VMEM((n_head, L, d_v), bf16)],  # resident V
            compiler_params=pltpu.CompilerParams(
                # query-tile axis carries K/V scratch -> must be "arbitrary"
                dimension_semantics=("parallel", "arbitrary"),
                vmem_limit_bytes=vmem_limit),
        )

    args = (x, x, *weights)
    try:
        outs = build(True)(*args)
    except Exception:
        # TODO(synk): this JAX build rejected single-buffered weight specs;
        # fall back to default double-buffering.
        outs = build(False)(*args)

    if return_attn:
        out, attn = outs
        return out, attn
    return outs[0], None


def reference_encoder_layer(x, params, *, n_head, d_k, d_v):
    """Pure-JAX f32 reference mirroring the PyTorch forward (eval mode)."""
    B, L, D = x.shape
    residual = x
    q = (x @ params["wq"]).reshape(B, L, n_head, d_k).transpose(0, 2, 1, 3)
    k = (x @ params["wk"]).reshape(B, L, n_head, d_k).transpose(0, 2, 1, 3)
    v = (x @ params["wv"]).reshape(B, L, n_head, d_v).transpose(0, 2, 1, 3)
    scores = jnp.einsum("bhqd,bhkd->bhqk", q / (d_k ** 0.5), k)
    attn = jax.nn.softmax(scores, axis=-1)
    o = jnp.einsum("bhqk,bhkd->bhqd", attn, v)
    o = o.transpose(0, 2, 1, 3).reshape(B, L, n_head * d_v)
    y = o @ params["wfc"] + residual

    def ln(a, g, b, eps=1e-6):
        mu = a.mean(-1, keepdims=True)
        var = ((a - mu) ** 2).mean(-1, keepdims=True)
        return (a - mu) / jnp.sqrt(var + eps) * g + b

    y = ln(y, params["ln1_g"], params["ln1_b"])
    h = jax.nn.relu(y @ params["w1"] + params["b1"])
    z = h @ params["w2"] + params["b2"] + y
    z = ln(z, params["ln2_g"], params["ln2_b"])
    return z, attn


if __name__ == "__main__":
    # Small, module-consistent shapes.
    B, L = 2, 8
    d_model, d_inner = 32, 64
    n_head, d_k, d_v = 4, 8, 8

    key = jax.random.PRNGKey(0)
    ks = jax.random.split(key, 9)
    scale = 0.1
    params = {
        "wq": scale * jax.random.normal(ks[0], (d_model, n_head * d_k), jnp.float32),
        "wk": scale * jax.random.normal(ks[1], (d_model, n_head * d_k), jnp.float32),
        "wv": scale * jax.random.normal(ks[2], (d_model, n_head * d_v), jnp.float32),
        "wfc": scale * jax.random.normal(ks[3], (n_head * d_v, d_model), jnp.float32),
        "ln1_g": jnp.ones((1, d_model), jnp.float32),
        "ln1_b": jnp.zeros((1, d_model), jnp.float32),
        "w1": scale * jax.random.normal(ks[4], (d_model, d_inner), jnp.float32),
        "b1": scale * jax.random.normal(ks[5], (1, d_inner), jnp.float32),
        "w2": scale * jax.random.normal(ks[6], (d_inner, d_model), jnp.float32),
        "b2": scale * jax.random.normal(ks[7], (1, d_model), jnp.float32),
        "ln2_g": jnp.ones((1, d_model), jnp.float32),
        "ln2_b": jnp.zeros((1, d_model), jnp.float32),
    }
    x = jax.random.normal(ks[8], (B, L, d_model), jnp.float32)

    out, attn = encoder_layer(x, params, n_head=n_head, d_k=d_k, d_v=d_v,
                              return_attn=True)
    out = jax.block_until_ready(out)
    attn = jax.block_until_ready(attn)

    ref_out, ref_attn = reference_encoder_layer(x, params,
                                                n_head=n_head, d_k=d_k, d_v=d_v)
    assert out.shape == (B, L, d_model)
    assert attn.shape == (B, n_head, L, L)
    # bf16 MXU inputs (f32 accumulation) + approx softmax reciprocal
    # -> loosened tolerances vs. the f32 reference.
    assert jnp.allclose(out, ref_out, atol=3e-2, rtol=3e-2)
    assert jnp.allclose(attn, ref_attn, atol=2e-2, rtol=2e-2)

    print("KERNEL_OK")
</pallas_src>

<mosaic_0001>
module attributes {stable_mosaic.version = 11 : i64} {
  func.func @kernel(%arg0: i32, %arg1: i32, %arg2: memref<1x8x32xf32, #tpu.memory_space<vmem>>, %arg3: memref<1x8x32xf32, #tpu.memory_space<vmem>>, %arg4: memref<32x32xbf16, #tpu.memory_space<vmem>>, %arg5: memref<32x32xbf16, #tpu.memory_space<vmem>>, %arg6: memref<32x32xbf16, #tpu.memory_space<vmem>>, %arg7: memref<32x32xbf16, #tpu.memory_space<vmem>>, %arg8: memref<1x32xf32, #tpu.memory_space<vmem>>, %arg9: memref<1x32xf32, #tpu.memory_space<vmem>>, %arg10: memref<32x64xbf16, #tpu.memory_space<vmem>>, %arg11: memref<1x64xf32, #tpu.memory_space<vmem>>, %arg12: memref<64x32xbf16, #tpu.memory_space<vmem>>, %arg13: memref<1x32xf32, #tpu.memory_space<vmem>>, %arg14: memref<1x32xf32, #tpu.memory_space<vmem>>, %arg15: memref<1x32xf32, #tpu.memory_space<vmem>>, %arg16: memref<1x8x32xf32, #tpu.memory_space<vmem>>, %arg17: memref<1x4x8x8xf32, #tpu.memory_space<vmem>>, %arg18: memref<4x8x8xbf16, #tpu.memory_space<vmem>>, %arg19: memref<4x8x8xbf16, #tpu.memory_space<vmem>>) attributes {dimension_semantics = [#tpu.dimension_semantics<parallel>, #tpu.dimension_semantics<arbitrary>], iteration_bounds = array<i64: 2, 1>, scalar_prefetch = 0 : i64, scratch_operands = 2 : i64, tpu.core_type = #tpu.core_type<tc>, window_params = [{transform_indices = @transform_0, window_bounds = array<i64: 1, 8, 32>}, {transform_indices = @transform_1, window_bounds = array<i64: 1, 8, 32>}, {pipeline_mode = #tpu.pipeline_mode<synchronous>, transform_indices = @transform_2, window_bounds = array<i64: 32, 32>}, {pipeline_mode = #tpu.pipeline_mode<synchronous>, transform_indices = @transform_3, window_bounds = array<i64: 32, 32>}, {pipeline_mode = #tpu.pipeline_mode<synchronous>, transform_indices = @transform_4, window_bounds = array<i64: 32, 32>}, {pipeline_mode = #tpu.pipeline_mode<synchronous>, transform_indices = @transform_5, window_bounds = array<i64: 32, 32>}, {pipeline_mode = #tpu.pipeline_mode<synchronous>, transform_indices = @transform_6, window_bounds = array<i64: 1, 32>}, {pipeline_mode = #tpu.pipeline_mode<synchronous>, transform_indices = @transform_7, window_bounds = array<i64: 1, 32>}, {pipeline_mode = #tpu.pipeline_mode<synchronous>, transform_indices = @transform_8, window_bounds = array<i64: 32, 64>}, {pipeline_mode = #tpu.pipeline_mode<synchronous>, transform_indices = @transform_9, window_bounds = array<i64: 1, 64>}, {pipeline_mode = #tpu.pipeline_mode<synchronous>, transform_indices = @transform_10, window_bounds = array<i64: 64, 32>}, {pipeline_mode = #tpu.pipeline_mode<synchronous>, transform_indices = @transform_11, window_bounds = array<i64: 1, 32>}, {pipeline_mode = #tpu.pipeline_mode<synchronous>, transform_indices = @transform_12, window_bounds = array<i64: 1, 32>}, {pipeline_mode = #tpu.pipeline_mode<synchronous>, transform_indices = @transform_13, window_bounds = array<i64: 1, 32>}, {transform_indices = @transform_14, window_bounds = array<i64: 1, 8, 32>}, {transform_indices = @transform_15, window_bounds = array<i64: 1, 4, 8, 8>}]} {
    %c0_i32 = arith.constant 0 : i32
    %0 = arith.cmpi eq, %arg1, %c0_i32 : i32
    %1 = arith.extui %0 : i1 to i32
    %c0_i32_0 = arith.constant 0 : i32
    %2 = arith.cmpi ne, %1, %c0_i32_0 : i32
    scf.if %2 {
      %c0_54 = arith.constant 0 : index
      %c0_55 = arith.constant 0 : index
      %c0_56 = arith.constant 0 : index
      %101 = vector.load %arg3[%c0_54, %c0_55, %c0_56] : memref<1x8x32xf32, #tpu.memory_space<vmem>>, vector<1x8x32xf32>
      %102 = vector.shape_cast %101 : vector<1x8x32xf32> to vector<8x32xf32>
      %103 = arith.truncf %102 : vector<8x32xf32> to vector<8x32xbf16>
      %c0_57 = arith.constant 0 : index
      %c0_58 = arith.constant 0 : index
      %104 = vector.load %arg5[%c0_57, %c0_58] : memref<32x32xbf16, #tpu.memory_space<vmem>>, vector<32x32xbf16>
      %cst_59 = arith.constant dense<0.000000e+00> : vector<8x32xf32>
      %105 = tpu.matmul %103, %104, %cst_59 {dimension_numbers = #tpu.dot_dimension_numbers<[1], [0], [0], [1], [0, 0, 1, 1], [], []>} : vector<8x32xbf16>, vector<32x32xbf16>, vector<8x32xf32> -> vector<8x32xf32>
      %c0_60 = arith.constant 0 : index
      %c0_61 = arith.constant 0 : index
      %106 = vector.load %arg6[%c0_60, %c0_61] : memref<32x32xbf16, #tpu.memory_space<vmem>>, vector<32x32xbf16>
      %cst_62 = arith.constant dense<0.000000e+00> : vector<8x32xf32>
      %107 = tpu.matmul %103, %106, %cst_62 {dimension_numbers = #tpu.dot_dimension_numbers<[1], [0], [0], [1], [0, 0, 1, 1], [], []>} : vector<8x32xbf16>, vector<32x32xbf16>, vector<8x32xf32> -> vector<8x32xf32>
      %108 = arith.truncf %105 : vector<8x32xf32> to vector<8x32xbf16>
      %109 = vector.shape_cast %108 : vector<8x32xbf16> to vector<8x4x8xbf16>
      %110 = arith.truncf %107 : vector<8x32xf32> to vector<8x32xbf16>
      %111 = vector.shape_cast %110 : vector<8x32xbf16> to vector<8x4x8xbf16>
      %112 = tpu.transpose %109, [1, 0, 2] : vector<8x4x8xbf16> -> vector<4x8x8xbf16>
      %c0_63 = arith.constant 0 : index
      %c0_64 = arith.constant 0 : index
      %c0_65 = arith.constant 0 : index
      %113 = vector.load %arg18[%c0_63, %c0_64, %c0_65] : memref<4x8x8xbf16, #tpu.memory_space<vmem>>, vector<4x8x8xbf16>
      tpu.vector_store %arg18[%c0_63, %c0_64, %c0_65], %112 {strides = array<i32>} : memref<4x8x8xbf16, #tpu.memory_space<vmem>>, vector<4x8x8xbf16>,
      %114 = tpu.transpose %111, [1, 0, 2] : vector<8x4x8xbf16> -> vector<4x8x8xbf16>
      %c0_66 = arith.constant 0 : index
      %c0_67 = arith.constant 0 : index
      %c0_68 = arith.constant 0 : index
      %115 = vector.load %arg19[%c0_66, %c0_67, %c0_68] : memref<4x8x8xbf16, #tpu.memory_space<vmem>>, vector<4x8x8xbf16>
      tpu.vector_store %arg19[%c0_66, %c0_67, %c0_68], %114 {strides = array<i32>} : memref<4x8x8xbf16, #tpu.memory_space<vmem>>, vector<4x8x8xbf16>,
    } else {
    }
    %c0 = arith.constant 0 : index
    %c0_1 = arith.constant 0 : index
    %c0_2 = arith.constant 0 : index
    %3 = vector.load %arg2[%c0, %c0_1, %c0_2] : memref<1x8x32xf32, #tpu.memory_space<vmem>>, vector<1x8x32xf32>
    %4 = vector.shape_cast %3 : vector<1x8x32xf32> to vector<8x32xf32>
    %5 = arith.truncf %4 : vector<8x32xf32> to vector<8x32xbf16>
    %c0_3 = arith.constant 0 : index
    %c0_4 = arith.constant 0 : index
    %6 = vector.load %arg4[%c0_3, %c0_4] : memref<32x32xbf16, #tpu.memory_space<vmem>>, vector<32x32xbf16>
    %cst = arith.constant dense<0.000000e+00> : vector<8x32xf32>
    %7 = tpu.matmul %5, %6, %cst {dimension_numbers = #tpu.dot_dimension_numbers<[1], [0], [0], [1], [0, 0, 1, 1], [], []>} : vector<8x32xbf16>, vector<32x32xbf16>, vector<8x32xf32> -> vector<8x32xf32>
    %8 = vector.shape_cast %7 : vector<8x32xf32> to vector<8x4x8xf32>
    %9 = tpu.transpose %8, [1, 0, 2] : vector<8x4x8xf32> -> vector<4x8x8xf32>
    %10 = arith.truncf %9 : vector<4x8x8xf32> to vector<4x8x8xbf16>
    %c0_5 = arith.constant 0 : index
    %c0_6 = arith.constant 0 : index
    %c0_7 = arith.constant 0 : index
    %11 = vector.load %arg18[%c0_5, %c0_6, %c0_7] : memref<4x8x8xbf16, #tpu.memory_space<vmem>>, vector<4x8x8xbf16>
    "tpu.trace_start"() <{level = 10 : i32, message = "hqe,hke->hqk"}> : () -> ()
    %cst_8 = arith.constant dense<0.000000e+00> : vector<4x8x8xf32>
    %12 = tpu.matmul %10, %11, %cst_8 {dimension_numbers = #tpu.dot_dimension_numbers<[2], [2], [1], [1], [0, 0, 0, 1, 1, 1], [0], [0]>} : vector<4x8x8xbf16>, vector<4x8x8xbf16>, vector<4x8x8xf32> -> vector<4x8x8xf32>
    "tpu.trace_stop"() : () -> ()
    %cst_9 = arith.constant dense<0xFF800000> : vector<4x8xf32>
    %13 = vector.multi_reduction <maximumf>, %12, %cst_9 [2] : vector<4x8x8xf32> to vector<4x8xf32>
    %14 = vector.shape_cast %13 : vector<4x8xf32> to vector<4x8x1xf32>
    %15 = vector.broadcast %14 : vector<4x8x1xf32> to vector<4x8x8xf32>
    %16 = arith.subf %12, %15 : vector<4x8x8xf32>
    %17 = math.exp %16 : vector<4x8x8xf32>
    %cst_10 = arith.constant dense<0.000000e+00> : vector<4x8xf32>
    %18 = vector.multi_reduction <add>, %17, %cst_10 [2] : vector<4x8x8xf32> to vector<4x8xf32>
    %19 = vector.shape_cast %18 : vector<4x8xf32> to vector<4x8x1xf32>
    %20 = tpu.reciprocal %19 {approx = true} : vector<4x8x1xf32> -> vector<4x8x1xf32>
    %21 = vector.broadcast %20 : vector<4x8x1xf32> to vector<4x8x8xf32>
    %22 = arith.mulf %17, %21 : vector<4x8x8xf32>
    %c0_11 = arith.constant 0 : index
    %c0_12 = arith.constant 0 : index
    %c0_13 = arith.constant 0 : index
    %c0_14 = arith.constant 0 : index
    %23 = vector.load %arg17[%c0_11, %c0_12, %c0_13, %c0_14] : memref<1x4x8x8xf32, #tpu.memory_space<vmem>>, vector<1x4x8x8xf32>
    %24 = vector.shape_cast %23 : vector<1x4x8x8xf32> to vector<4x8x8xf32>
    %25 = vector.shape_cast %22 : vector<4x8x8xf32> to vector<1x4x8x8xf32>
    tpu.vector_store %arg17[%c0_11, %c0_12, %c0_13, %c0_14], %25 {strides = array<i32>} : memref<1x4x8x8xf32, #tpu.memory_space<vmem>>, vector<1x4x8x8xf32>,
    %26 = arith.truncf %22 : vector<4x8x8xf32> to vector<4x8x8xbf16>
    %c0_15 = arith.constant 0 : index
    %c0_16 = arith.constant 0 : index
    %c0_17 = arith.constant 0 : index
    %27 = vector.load %arg19[%c0_15, %c0_16, %c0_17] : memref<4x8x8xbf16, #tpu.memory_space<vmem>>, vector<4x8x8xbf16>
    "tpu.trace_start"() <{level = 10 : i32, message = "hqk,hkd->hqd"}> : () -> ()
    %cst_18 = arith.constant dense<0.000000e+00> : vector<4x8x8xf32>
    %28 = tpu.matmul %26, %27, %cst_18 {dimension_numbers = #tpu.dot_dimension_numbers<[2], [1], [1], [2], [0, 0, 0, 1, 1, 2], [0], [0]>} : vector<4x8x8xbf16>, vector<4x8x8xbf16>, vector<4x8x8xf32> -> vector<4x8x8xf32>
    "tpu.trace_stop"() : () -> ()
    %29 = tpu.transpose %28, [1, 0, 2] : vector<4x8x8xf32> -> vector<8x4x8xf32>
    %30 = vector.shape_cast %29 : vector<8x4x8xf32> to vector<8x32xf32>
    %31 = arith.truncf %30 : vector<8x32xf32> to vector<8x32xbf16>
    %c0_19 = arith.constant 0 : index
    %c0_20 = arith.constant 0 : index
    %32 = vector.load %arg7[%c0_19, %c0_20] : memref<32x32xbf16, #tpu.memory_space<vmem>>, vector<32x32xbf16>
    %cst_21 = arith.constant dense<0.000000e+00> : vector<8x32xf32>
    %33 = tpu.matmul %31, %32, %cst_21 {dimension_numbers = #tpu.dot_dimension_numbers<[1], [0], [0], [1], [0, 0, 1, 1], [], []>} : vector<8x32xbf16>, vector<32x32xbf16>, vector<8x32xf32> -> vector<8x32xf32>
    %34 = arith.addf %33, %4 : vector<8x32xf32>
    %c0_22 = arith.constant 0 : index
    %c0_23 = arith.constant 0 : index
    %35 = vector.load %arg8[%c0_22, %c0_23] : memref<1x32xf32, #tpu.memory_space<vmem>>, vector<1x32xf32>
    %c0_24 = arith.constant 0 : index
    %c0_25 = arith.constant 0 : index
    %36 = vector.load %arg9[%c0_24, %c0_25] : memref<1x32xf32, #tpu.memory_space<vmem>>, vector<1x32xf32>
    %cst_26 = arith.constant dense<0.000000e+00> : vector<8xf32>
    %37 = vector.multi_reduction <add>, %34, %cst_26 [1] : vector<8x32xf32> to vector<8xf32>
    %38 = vector.shape_cast %37 : vector<8xf32> to vector<8x1xf32>
    %cst_27 = arith.constant 3.200000e+01 : f32
    %39 = vector.broadcast %cst_27 : f32 to vector<8x1xf32>
    %40 = arith.divf %38, %39 : vector<8x1xf32>
    %41 = vector.broadcast %40 : vector<8x1xf32> to vector<8x32xf32>
    %42 = arith.subf %34, %41 : vector<8x32xf32>
    %43 = arith.mulf %42, %42 : vector<8x32xf32>
    %cst_28 = arith.constant dense<0.000000e+00> : vector<8xf32>
    %44 = vector.multi_reduction <add>, %43, %cst_28 [1] : vector<8x32xf32> to vector<8xf32>
    %45 = vector.shape_cast %44 : vector<8xf32> to vector<8x1xf32>
    %cst_29 = arith.constant 3.200000e+01 : f32
    %46 = vector.broadcast %cst_29 : f32 to vector<8x1xf32>
    %47 = arith.divf %45, %46 : vector<8x1xf32>
    %48 = vector.broadcast %40 : vector<8x1xf32> to vector<8x32xf32>
    %49 = arith.subf %34, %48 : vector<8x32xf32>
    %cst_30 = arith.constant 9.99999997E-7 : f32
    %50 = vector.broadcast %cst_30 : f32 to vector<8x1xf32>
    %51 = arith.addf %47, %50 : vector<8x1xf32>
    %52 = math.rsqrt %51 : vector<8x1xf32>
    %53 = vector.broadcast %52 : vector<8x1xf32> to vector<8x32xf32>
    %54 = arith.mulf %49, %53 : vector<8x32xf32>
    %55 = vector.broadcast %35 : vector<1x32xf32> to vector<8x32xf32>
    %56 = arith.mulf %54, %55 : vector<8x32xf32>
    %57 = vector.broadcast %36 : vector<1x32xf32> to vector<8x32xf32>
    %58 = arith.addf %56, %57 : vector<8x32xf32>
    %59 = arith.truncf %58 : vector<8x32xf32> to vector<8x32xbf16>
    %c0_31 = arith.constant 0 : index
    %c0_32 = arith.constant 0 : index
    %60 = vector.load %arg10[%c0_31, %c0_32] : memref<32x64xbf16, #tpu.memory_space<vmem>>, vector<32x64xbf16>
    %cst_33 = arith.constant dense<0.000000e+00> : vector<8x64xf32>
    %61 = tpu.matmul %59, %60, %cst_33 {dimension_numbers = #tpu.dot_dimension_numbers<[1], [0], [0], [1], [0, 0, 1, 1], [], []>} : vector<8x32xbf16>, vector<32x64xbf16>, vector<8x64xf32> -> vector<8x64xf32>
    %c0_34 = arith.constant 0 : index
    %c0_35 = arith.constant 0 : index
    %62 = vector.load %arg11[%c0_34, %c0_35] : memref<1x64xf32, #tpu.memory_space<vmem>>, vector<1x64xf32>
    %63 = vector.broadcast %62 : vector<1x64xf32> to vector<8x64xf32>
    %64 = arith.addf %61, %63 : vector<8x64xf32>
    %cst_36 = arith.constant 0.000000e+00 : f32
    %65 = vector.broadcast %cst_36 : f32 to vector<8x64xf32>
    %66 = arith.maximumf %64, %65 : vector<8x64xf32>
    %67 = arith.truncf %66 : vector<8x64xf32> to vector<8x64xbf16>
    %c0_37 = arith.constant 0 : index
    %c0_38 = arith.constant 0 : index
    %68 = vector.load %arg12[%c0_37, %c0_38] : memref<64x32xbf16, #tpu.memory_space<vmem>>, vector<64x32xbf16>
    %cst_39 = arith.constant dense<0.000000e+00> : vector<8x32xf32>
    %69 = tpu.matmul %67, %68, %cst_39 {dimension_numbers = #tpu.dot_dimension_numbers<[1], [0], [0], [1], [0, 0, 1, 1], [], []>} : vector<8x64xbf16>, vector<64x32xbf16>, vector<8x32xf32> -> vector<8x32xf32>
    %c0_40 = arith.constant 0 : index
    %c0_41 = arith.constant 0 : index
    %70 = vector.load %arg13[%c0_40, %c0_41] : memref<1x32xf32, #tpu.memory_space<vmem>>, vector<1x32xf32>
    %71 = vector.broadcast %70 : vector<1x32xf32> to vector<8x32xf32>
    %72 = arith.addf %69, %71 : vector<8x32xf32>
    %73 = arith.addf %72, %58 : vector<8x32xf32>
    %c0_42 = arith.constant 0 : index
    %c0_43 = arith.constant 0 : index
    %74 = vector.load %arg14[%c0_42, %c0_43] : memref<1x32xf32, #tpu.memory_space<vmem>>, vector<1x32xf32>
    %c0_44 = arith.constant 0 : index
    %c0_45 = arith.constant 0 : index
    %75 = vector.load %arg15[%c0_44, %c0_45] : memref<1x32xf32, #tpu.memory_space<vmem>>, vector<1x32xf32>
    %cst_46 = arith.constant dense<0.000000e+00> : vector<8xf32>
    %76 = vector.multi_reduction <add>, %73, %cst_46 [1] : vector<8x32xf32> to vector<8xf32>
    %77 = vector.shape_cast %76 : vector<8xf32> to vector<8x1xf32>
    %cst_47 = arith.constant 3.200000e+01 : f32
    %78 = vector.broadcast %cst_47 : f32 to vector<8x1xf32>
    %79 = arith.divf %77, %78 : vector<8x1xf32>
    %80 = vector.broadcast %79 : vector<8x1xf32> to vector<8x32xf32>
    %81 = arith.subf %73, %80 : vector<8x32xf32>
    %82 = arith.mulf %81, %81 : vector<8x32xf32>
    %cst_48 = arith.constant dense<0.000000e+00> : vector<8xf32>
    %83 = vector.multi_reduction <add>, %82, %cst_48 [1] : vector<8x32xf32> to vector<8xf32>
    %84 = vector.shape_cast %83 : vector<8xf32> to vector<8x1xf32>
    %cst_49 = arith.constant 3.200000e+01 : f32
    %85 = vector.broadcast %cst_49 : f32 to vector<8x1xf32>
    %86 = arith.divf %84, %85 : vector<8x1xf32>
    %87 = vector.broadcast %79 : vector<8x1xf32> to vector<8x32xf32>
    %88 = arith.subf %73, %87 : vector<8x32xf32>
    %cst_50 = arith.constant 9.99999997E-7 : f32
    %89 = vector.broadcast %cst_50 : f32 to vector<8x1xf32>
    %90 = arith.addf %86, %89 : vector<8x1xf32>
    %91 = math.rsqrt %90 : vector<8x1xf32>
    %92 = vector.broadcast %91 : vector<8x1xf32> to vector<8x32xf32>
    %93 = arith.mulf %88, %92 : vector<8x32xf32>
    %94 = vector.broadcast %74 : vector<1x32xf32> to vector<8x32xf32>
    %95 = arith.mulf %93, %94 : vector<8x32xf32>
    %96 = vector.broadcast %75 : vector<1x32xf32> to vector<8x32xf32>
    %97 = arith.addf %95, %96 : vector<8x32xf32>
    %c0_51 = arith.constant 0 : index
    %c0_52 = arith.constant 0 : index
    %c0_53 = arith.constant 0 : index
    %98 = vector.load %arg16[%c0_51, %c0_52, %c0_53] : memref<1x8x32xf32, #tpu.memory_space<vmem>>, vector<1x8x32xf32>
    %99 = vector.shape_cast %98 : vector<1x8x32xf32> to vector<8x32xf32>
    %100 = vector.shape_cast %97 : vector<8x32xf32> to vector<1x8x32xf32>
    tpu.vector_store %arg16[%c0_51, %c0_52, %c0_53], %100 {strides = array<i32>} : memref<1x8x32xf32, #tpu.memory_space<vmem>>, vector<1x8x32xf32>,
    return
  }
  func.func @transform_0(%arg0: i32, %arg1: i32) -> (i32, i32, i32) {
    %c0_i32 = arith.constant 0 : i32
    %c0_i32_0 = arith.constant 0 : i32
    return %arg0, %arg1, %c0_i32 : i32, i32, i32
  }
  func.func @transform_1(%arg0: i32, %arg1: i32) -> (i32, i32, i32) {
    %c0_i32 = arith.constant 0 : i32
    %c0_i32_0 = arith.constant 0 : i32
    %c0_i32_1 = arith.constant 0 : i32
    return %arg0, %c0_i32, %c0_i32_0 : i32, i32, i32
  }
  func.func @transform_2(%arg0: i32, %arg1: i32) -> (i32, i32) {
    %c0_i32 = arith.constant 0 : i32
    %c0_i32_0 = arith.constant 0 : i32
    %c0_i32_1 = arith.constant 0 : i32
    return %c0_i32, %c0_i32_0 : i32, i32
  }
  func.func @transform_3(%arg0: i32, %arg1: i32) -> (i32, i32) {
    %c0_i32 = arith.constant 0 : i32
    %c0_i32_0 = arith.constant 0 : i32
    %c0_i32_1 = arith.constant 0 : i32
    return %c0_i32, %c0_i32_0 : i32, i32
  }
  func.func @transform_4(%arg0: i32, %arg1: i32) -> (i32, i32) {
    %c0_i32 = arith.constant 0 : i32
    %c0_i32_0 = arith.constant 0 : i32
    %c0_i32_1 = arith.constant 0 : i32
    return %c0_i32, %c0_i32_0 : i32, i32
  }
  func.func @transform_5(%arg0: i32, %arg1: i32) -> (i32, i32) {
    %c0_i32 = arith.constant 0 : i32
    %c0_i32_0 = arith.constant 0 : i32
    %c0_i32_1 = arith.constant 0 : i32
    return %c0_i32, %c0_i32_0 : i32, i32
  }
  func.func @transform_6(%arg0: i32, %arg1: i32) -> (i32, i32) {
    %c0_i32 = arith.constant 0 : i32
    %c0_i32_0 = arith.constant 0 : i32
    %c0_i32_1 = arith.constant 0 : i32
    return %c0_i32, %c0_i32_0 : i32, i32
  }
  func.func @transform_7(%arg0: i32, %arg1: i32) -> (i32, i32) {
    %c0_i32 = arith.constant 0 : i32
    %c0_i32_0 = arith.constant 0 : i32
    %c0_i32_1 = arith.constant 0 : i32
    return %c0_i32, %c0_i32_0 : i32, i32
  }
  func.func @transform_8(%arg0: i32, %arg1: i32) -> (i32, i32) {
    %c0_i32 = arith.constant 0 : i32
    %c0_i32_0 = arith.constant 0 : i32
    %c0_i32_1 = arith.constant 0 : i32
    return %c0_i32, %c0_i32_0 : i32, i32
  }
  func.func @transform_9(%arg0: i32, %arg1: i32) -> (i32, i32) {
    %c0_i32 = arith.constant 0 : i32
    %c0_i32_0 = arith.constant 0 : i32
    %c0_i32_1 = arith.constant 0 : i32
    return %c0_i32, %c0_i32_0 : i32, i32
  }
  func.func @transform_10(%arg0: i32, %arg1: i32) -> (i32, i32) {
    %c0_i32 = arith.constant 0 : i32
    %c0_i32_0 = arith.constant 0 : i32
    %c0_i32_1 = arith.constant 0 : i32
    return %c0_i32, %c0_i32_0 : i32, i32
  }
  func.func @transform_11(%arg0: i32, %arg1: i32) -> (i32, i32) {
    %c0_i32 = arith.constant 0 : i32
    %c0_i32_0 = arith.constant 0 : i32
    %c0_i32_1 = arith.constant 0 : i32
    return %c0_i32, %c0_i32_0 : i32, i32
  }
  func.func @transform_12(%arg0: i32, %arg1: i32) -> (i32, i32) {
    %c0_i32 = arith.constant 0 : i32
    %c0_i32_0 = arith.constant 0 : i32
    %c0_i32_1 = arith.constant 0 : i32
    return %c0_i32, %c0_i32_0 : i32, i32
  }
  func.func @transform_13(%arg0: i32, %arg1: i32) -> (i32, i32) {
    %c0_i32 = arith.constant 0 : i32
    %c0_i32_0 = arith.constant 0 : i32
    %c0_i32_1 = arith.constant 0 : i32
    return %c0_i32, %c0_i32_0 : i32, i32
  }
  func.func @transform_14(%arg0: i32, %arg1: i32) -> (i32, i32, i32) {
    %c0_i32 = arith.constant 0 : i32
    %c0_i32_0 = arith.constant 0 : i32
    return %arg0, %arg1, %c0_i32 : i32, i32, i32
  }
  func.func @transform_15(%arg0: i32, %arg1: i32) -> (i32, i32, i32, i32) {
    %c0_i32 = arith.constant 0 : i32
    %c0_i32_0 = arith.constant 0 : i32
    %c0_i32_1 = arith.constant 0 : i32
    return %arg0, %c0_i32, %arg1, %c0_i32_0 : i32, i32, i32, i32
  }
}

module attributes {stable_mosaic.version = 11 : i64} {
  func.func @kernel(%arg0: i32, %arg1: i32, %arg2: memref<1x8x32xf32, #tpu.memory_space<vmem>>, %arg3: memref<1x8x32xf32, #tpu.memory_space<vmem>>, %arg4: memref<32x32xbf16, #tpu.memory_space<vmem>>, %arg5: memref<32x32xbf16, #tpu.memory_space<vmem>>, %arg6: memref<32x32xbf16, #tpu.memory_space<vmem>>, %arg7: memref<32x32xbf16, #tpu.memory_space<vmem>>, %arg8: memref<1x32xf32, #tpu.memory_space<vmem>>, %arg9: memref<1x32xf32, #tpu.memory_space<vmem>>, %arg10: memref<32x64xbf16, #tpu.memory_space<vmem>>, %arg11: memref<1x64xf32, #tpu.memory_space<vmem>>, %arg12: memref<64x32xbf16, #tpu.memory_space<vmem>>, %arg13: memref<1x32xf32, #tpu.memory_space<vmem>>, %arg14: memref<1x32xf32, #tpu.memory_space<vmem>>, %arg15: memref<1x32xf32, #tpu.memory_space<vmem>>, %arg16: memref<1x8x32xf32, #tpu.memory_space<vmem>>, %arg17: memref<1x4x8x8xf32, #tpu.memory_space<vmem>>, %arg18: memref<4x8x8xbf16, #tpu.memory_space<vmem>>, %arg19: memref<4x8x8xbf16, #tpu.memory_space<vmem>>) attributes {dimension_semantics = [#tpu.dimension_semantics<parallel>, #tpu.dimension_semantics<arbitrary>], iteration_bounds = array<i64: 2, 1>, scalar_prefetch = 0 : i64, scratch_operands = 2 : i64, tpu.core_type = #tpu.core_type<tc>, window_params = [{transform_indices = @transform_0, window_bounds = array<i64: 1, 8, 32>}, {transform_indices = @transform_1, window_bounds = array<i64: 1, 8, 32>}, {pipeline_mode = #tpu.pipeline_mode<synchronous>, transform_indices = @transform_2, window_bounds = array<i64: 32, 32>}, {pipeline_mode = #tpu.pipeline_mode<synchronous>, transform_indices = @transform_3, window_bounds = array<i64: 32, 32>}, {pipeline_mode = #tpu.pipeline_mode<synchronous>, transform_indices = @transform_4, window_bounds = array<i64: 32, 32>}, {pipeline_mode = #tpu.pipeline_mode<synchronous>, transform_indices = @transform_5, window_bounds = array<i64: 32, 32>}, {pipeline_mode = #tpu.pipeline_mode<synchronous>, transform_indices = @transform_6, window_bounds = array<i64: 1, 32>}, {pipeline_mode = #tpu.pipeline_mode<synchronous>, transform_indices = @transform_7, window_bounds = array<i64: 1, 32>}, {pipeline_mode = #tpu.pipeline_mode<synchronous>, transform_indices = @transform_8, window_bounds = array<i64: 32, 64>}, {pipeline_mode = #tpu.pipeline_mode<synchronous>, transform_indices = @transform_9, window_bounds = array<i64: 1, 64>}, {pipeline_mode = #tpu.pipeline_mode<synchronous>, transform_indices = @transform_10, window_bounds = array<i64: 64, 32>}, {pipeline_mode = #tpu.pipeline_mode<synchronous>, transform_indices = @transform_11, window_bounds = array<i64: 1, 32>}, {pipeline_mode = #tpu.pipeline_mode<synchronous>, transform_indices = @transform_12, window_bounds = array<i64: 1, 32>}, {pipeline_mode = #tpu.pipeline_mode<synchronous>, transform_indices = @transform_13, window_bounds = array<i64: 1, 32>}, {transform_indices = @transform_14, window_bounds = array<i64: 1, 8, 32>}, {transform_indices = @transform_15, window_bounds = array<i64: 1, 4, 8, 8>}]} {
    %c0_i32 = arith.constant 0 : i32
    %0 = arith.cmpi eq, %arg1, %c0_i32 : i32
    %1 = arith.extui %0 : i1 to i32
    %c0_i32_0 = arith.constant 0 : i32
    %2 = arith.cmpi ne, %1, %c0_i32_0 : i32
    scf.if %2 {
      %c0_54 = arith.constant 0 : index
      %c0_55 = arith.constant 0 : index
      %c0_56 = arith.constant 0 : index
      %101 = vector.load %arg3[%c0_54, %c0_55, %c0_56] : memref<1x8x32xf32, #tpu.memory_space<vmem>>, vector<1x8x32xf32>
      %102 = vector.shape_cast %101 : vector<1x8x32xf32> to vector<8x32xf32>
      %103 = arith.truncf %102 : vector<8x32xf32> to vector<8x32xbf16>
      %c0_57 = arith.constant 0 : index
      %c0_58 = arith.constant 0 : index
      %104 = vector.load %arg5[%c0_57, %c0_58] : memref<32x32xbf16, #tpu.memory_space<vmem>>, vector<32x32xbf16>
      %cst_59 = arith.constant dense<0.000000e+00> : vector<8x32xf32>
      %105 = tpu.matmul %103, %104, %cst_59 {dimension_numbers = #tpu.dot_dimension_numbers<[1], [0], [0], [1], [0, 0, 1, 1], [], []>} : vector<8x32xbf16>, vector<32x32xbf16>, vector<8x32xf32> -> vector<8x32xf32>
      %c0_60 = arith.constant 0 : index
      %c0_61 = arith.constant 0 : index
      %106 = vector.load %arg6[%c0_60, %c0_61] : memref<32x32xbf16, #tpu.memory_space<vmem>>, vector<32x32xbf16>
      %cst_62 = arith.constant dense<0.000000e+00> : vector<8x32xf32>
      %107 = tpu.matmul %103, %106, %cst_62 {dimension_numbers = #tpu.dot_dimension_numbers<[1], [0], [0], [1], [0, 0, 1, 1], [], []>} : vector<8x32xbf16>, vector<32x32xbf16>, vector<8x32xf32> -> vector<8x32xf32>
      %108 = arith.truncf %105 : vector<8x32xf32> to vector<8x32xbf16>
      %109 = vector.shape_cast %108 : vector<8x32xbf16> to vector<8x4x8xbf16>
      %110 = arith.truncf %107 : vector<8x32xf32> to vector<8x32xbf16>
      %111 = vector.shape_cast %110 : vector<8x32xbf16> to vector<8x4x8xbf16>
      %112 = tpu.transpose %109, [1, 0, 2] : vector<8x4x8xbf16> -> vector<4x8x8xbf16>
      %c0_63 = arith.constant 0 : index
      %c0_64 = arith.constant 0 : index
      %c0_65 = arith.constant 0 : index
      %113 = vector.load %arg18[%c0_63, %c0_64, %c0_65] : memref<4x8x8xbf16, #tpu.memory_space<vmem>>, vector<4x8x8xbf16>
      tpu.vector_store %arg18[%c0_63, %c0_64, %c0_65], %112 {strides = array<i32>} : memref<4x8x8xbf16, #tpu.memory_space<vmem>>, vector<4x8x8xbf16>,
      %114 = tpu.transpose %111, [1, 0, 2] : vector<8x4x8xbf16> -> vector<4x8x8xbf16>
      %c0_66 = arith.constant 0 : index
      %c0_67 = arith.constant 0 : index
      %c0_68 = arith.constant 0 : index
      %115 = vector.load %arg19[%c0_66, %c0_67, %c0_68] : memref<4x8x8xbf16, #tpu.memory_space<vmem>>, vector<4x8x8xbf16>
      tpu.vector_store %arg19[%c0_66, %c0_67, %c0_68], %114 {strides = array<i32>} : memref<4x8x8xbf16, #tpu.memory_space<vmem>>, vector<4x8x8xbf16>,
    } else {
    }
    %c0 = arith.constant 0 : index
    %c0_1 = arith.constant 0 : index
    %c0_2 = arith.constant 0 : index
    %3 = vector.load %arg2[%c0, %c0_1, %c0_2] : memref<1x8x32xf32, #tpu.memory_space<vmem>>, vector<1x8x32xf32>
    %4 = vector.shape_cast %3 : vector<1x8x32xf32> to vector<8x32xf32>
    %5 = arith.truncf %4 : vector<8x32xf32> to vector<8x32xbf16>
    %c0_3 = arith.constant 0 : index
    %c0_4 = arith.constant 0 : index
    %6 = vector.load %arg4[%c0_3, %c0_4] : memref<32x32xbf16, #tpu.memory_space<vmem>>, vector<32x32xbf16>
    %cst = arith.constant dense<0.000000e+00> : vector<8x32xf32>
    %7 = tpu.matmul %5, %6, %cst {dimension_numbers = #tpu.dot_dimension_numbers<[1], [0], [0], [1], [0, 0, 1, 1], [], []>} : vector<8x32xbf16>, vector<32x32xbf16>, vector<8x32xf32> -> vector<8x32xf32>
    %8 = vector.shape_cast %7 : vector<8x32xf32> to vector<8x4x8xf32>
    %9 = tpu.transpose %8, [1, 0, 2] : vector<8x4x8xf32> -> vector<4x8x8xf32>
    %10 = arith.truncf %9 : vector<4x8x8xf32> to vector<4x8x8xbf16>
    %c0_5 = arith.constant 0 : index
    %c0_6 = arith.constant 0 : index
    %c0_7 = arith.constant 0 : index
    %11 = vector.load %arg18[%c0_5, %c0_6, %c0_7] : memref<4x8x8xbf16, #tpu.memory_space<vmem>>, vector<4x8x8xbf16>
    "tpu.trace_start"() <{level = 10 : i32, message = "hqe,hke->hqk"}> : () -> ()
    %cst_8 = arith.constant dense<0.000000e+00> : vector<4x8x8xf32>
    %12 = tpu.matmul %10, %11, %cst_8 {dimension_numbers = #tpu.dot_dimension_numbers<[2], [2], [1], [1], [0, 0, 0, 1, 1, 1], [0], [0]>} : vector<4x8x8xbf16>, vector<4x8x8xbf16>, vector<4x8x8xf32> -> vector<4x8x8xf32>
    "tpu.trace_stop"() : () -> ()
    %cst_9 = arith.constant dense<0xFF800000> : vector<4x8xf32>
    %13 = vector.multi_reduction <maximumf>, %12, %cst_9 [2] : vector<4x8x8xf32> to vector<4x8xf32>
    %14 = vector.shape_cast %13 : vector<4x8xf32> to vector<4x8x1xf32>
    %15 = vector.broadcast %14 : vector<4x8x1xf32> to vector<4x8x8xf32>
    %16 = arith.subf %12, %15 : vector<4x8x8xf32>
    %17 = math.exp %16 : vector<4x8x8xf32>
    %cst_10 = arith.constant dense<0.000000e+00> : vector<4x8xf32>
    %18 = vector.multi_reduction <add>, %17, %cst_10 [2] : vector<4x8x8xf32> to vector<4x8xf32>
    %19 = vector.shape_cast %18 : vector<4x8xf32> to vector<4x8x1xf32>
    %20 = tpu.reciprocal %19 {approx = true} : vector<4x8x1xf32> -> vector<4x8x1xf32>
    %21 = vector.broadcast %20 : vector<4x8x1xf32> to vector<4x8x8xf32>
    %22 = arith.mulf %17, %21 : vector<4x8x8xf32>
    %c0_11 = arith.constant 0 : index
    %c0_12 = arith.constant 0 : index
    %c0_13 = arith.constant 0 : index
    %c0_14 = arith.constant 0 : index
    %23 = vector.load %arg17[%c0_11, %c0_12, %c0_13, %c0_14] : memref<1x4x8x8xf32, #tpu.memory_space<vmem>>, vector<1x4x8x8xf32>
    %24 = vector.shape_cast %23 : vector<1x4x8x8xf32> to vector<4x8x8xf32>
    %25 = vector.shape_cast %22 : vector<4x8x8xf32> to vector<1x4x8x8xf32>
    tpu.vector_store %arg17[%c0_11, %c0_12, %c0_13, %c0_14], %25 {strides = array<i32>} : memref<1x4x8x8xf32, #tpu.memory_space<vmem>>, vector<1x4x8x8xf32>,
    %26 = arith.truncf %22 : vector<4x8x8xf32> to vector<4x8x8xbf16>
    %c0_15 = arith.constant 0 : index
    %c0_16 = arith.constant 0 : index
    %c0_17 = arith.constant 0 : index
    %27 = vector.load %arg19[%c0_15, %c0_16, %c0_17] : memref<4x8x8xbf16, #tpu.memory_space<vmem>>, vector<4x8x8xbf16>
    "tpu.trace_start"() <{level = 10 : i32, message = "hqk,hkd->hqd"}> : () -> ()
    %cst_18 = arith.constant dense<0.000000e+00> : vector<4x8x8xf32>
    %28 = tpu.matmul %26, %27, %cst_18 {dimension_numbers = #tpu.dot_dimension_numbers<[2], [1], [1], [2], [0, 0, 0, 1, 1, 2], [0], [0]>} : vector<4x8x8xbf16>, vector<4x8x8xbf16>, vector<4x8x8xf32> -> vector<4x8x8xf32>
    "tpu.trace_stop"() : () -> ()
    %29 = tpu.transpose %28, [1, 0, 2] : vector<4x8x8xf32> -> vector<8x4x8xf32>
    %30 = vector.shape_cast %29 : vector<8x4x8xf32> to vector<8x32xf32>
    %31 = arith.truncf %30 : vector<8x32xf32> to vector<8x32xbf16>
    %c0_19 = arith.constant 0 : index
    %c0_20 = arith.constant 0 : index
    %32 = vector.load %arg7[%c0_19, %c0_20] : memref<32x32xbf16, #tpu.memory_space<vmem>>, vector<32x32xbf16>
    %cst_21 = arith.constant dense<0.000000e+00> : vector<8x32xf32>
    %33 = tpu.matmul %31, %32, %cst_21 {dimension_numbers = #tpu.dot_dimension_numbers<[1], [0], [0], [1], [0, 0, 1, 1], [], []>} : vector<8x32xbf16>, vector<32x32xbf16>, vector<8x32xf32> -> vector<8x32xf32>
    %34 = arith.addf %33, %4 : vector<8x32xf32>
    %c0_22 = arith.constant 0 : index
    %c0_23 = arith.constant 0 : index
    %35 = vector.load %arg8[%c0_22, %c0_23] : memref<1x32xf32, #tpu.memory_space<vmem>>, vector<1x32xf32>
    %c0_24 = arith.constant 0 : index
    %c0_25 = arith.constant 0 : index
    %36 = vector.load %arg9[%c0_24, %c0_25] : memref<1x32xf32, #tpu.memory_space<vmem>>, vector<1x32xf32>
    %cst_26 = arith.constant dense<0.000000e+00> : vector<8xf32>
    %37 = vector.multi_reduction <add>, %34, %cst_26 [1] : vector<8x32xf32> to vector<8xf32>
    %38 = vector.shape_cast %37 : vector<8xf32> to vector<8x1xf32>
    %cst_27 = arith.constant 3.200000e+01 : f32
    %39 = vector.broadcast %cst_27 : f32 to vector<8x1xf32>
    %40 = arith.divf %38, %39 : vector<8x1xf32>
    %41 = vector.broadcast %40 : vector<8x1xf32> to vector<8x32xf32>
    %42 = arith.subf %34, %41 : vector<8x32xf32>
    %43 = arith.mulf %42, %42 : vector<8x32xf32>
    %cst_28 = arith.constant dense<0.000000e+00> : vector<8xf32>
    %44 = vector.multi_reduction <add>, %43, %cst_28 [1] : vector<8x32xf32> to vector<8xf32>
    %45 = vector.shape_cast %44 : vector<8xf32> to vector<8x1xf32>
    %cst_29 = arith.constant 3.200000e+01 : f32
    %46 = vector.broadcast %cst_29 : f32 to vector<8x1xf32>
    %47 = arith.divf %45, %46 : vector<8x1xf32>
    %48 = vector.broadcast %40 : vector<8x1xf32> to vector<8x32xf32>
    %49 = arith.subf %34, %48 : vector<8x32xf32>
    %cst_30 = arith.constant 9.99999997E-7 : f32
    %50 = vector.broadcast %cst_30 : f32 to vector<8x1xf32>
    %51 = arith.addf %47, %50 : vector<8x1xf32>
    %52 = math.rsqrt %51 : vector<8x1xf32>
    %53 = vector.broadcast %52 : vector<8x1xf32> to vector<8x32xf32>
    %54 = arith.mulf %49, %53 : vector<8x32xf32>
    %55 = vector.broadcast %35 : vector<1x32xf32> to vector<8x32xf32>
    %56 = arith.mulf %54, %55 : vector<8x32xf32>
    %57 = vector.broadcast %36 : vector<1x32xf32> to vector<8x32xf32>
    %58 = arith.addf %56, %57 : vector<8x32xf32>
    %59 = arith.truncf %58 : vector<8x32xf32> to vector<8x32xbf16>
    %c0_31 = arith.constant 0 : index
    %c0_32 = arith.constant 0 : index
    %60 = vector.load %arg10[%c0_31, %c0_32] : memref<32x64xbf16, #tpu.memory_space<vmem>>, vector<32x64xbf16>
    %cst_33 = arith.constant dense<0.000000e+00> : vector<8x64xf32>
    %61 = tpu.matmul %59, %60, %cst_33 {dimension_numbers = #tpu.dot_dimension_numbers<[1], [0], [0], [1], [0, 0, 1, 1], [], []>} : vector<8x32xbf16>, vector<32x64xbf16>, vector<8x64xf32> -> vector<8x64xf32>
    %c0_34 = arith.constant 0 : index
    %c0_35 = arith.constant 0 : index
    %62 = vector.load %arg11[%c0_34, %c0_35] : memref<1x64xf32, #tpu.memory_space<vmem>>, vector<1x64xf32>
    %63 = vector.broadcast %62 : vector<1x64xf32> to vector<8x64xf32>
    %64 = arith.addf %61, %63 : vector<8x64xf32>
    %cst_36 = arith.constant 0.000000e+00 : f32
    %65 = vector.broadcast %cst_36 : f32 to vector<8x64xf32>
    %66 = arith.maximumf %64, %65 : vector<8x64xf32>
    %67 = arith.truncf %66 : vector<8x64xf32> to vector<8x64xbf16>
    %c0_37 = arith.constant 0 : index
    %c0_38 = arith.constant 0 : index
    %68 = vector.load %arg12[%c0_37, %c0_38] : memref<64x32xbf16, #tpu.memory_space<vmem>>, vector<64x32xbf16>
    %cst_39 = arith.constant dense<0.000000e+00> : vector<8x32xf32>
    %69 = tpu.matmul %67, %68, %cst_39 {dimension_numbers = #tpu.dot_dimension_numbers<[1], [0], [0], [1], [0, 0, 1, 1], [], []>} : vector<8x64xbf16>, vector<64x32xbf16>, vector<8x32xf32> -> vector<8x32xf32>
    %c0_40 = arith.constant 0 : index
    %c0_41 = arith.constant 0 : index
    %70 = vector.load %arg13[%c0_40, %c0_41] : memref<1x32xf32, #tpu.memory_space<vmem>>, vector<1x32xf32>
    %71 = vector.broadcast %70 : vector<1x32xf32> to vector<8x32xf32>
    %72 = arith.addf %69, %71 : vector<8x32xf32>
    %73 = arith.addf %72, %58 : vector<8x32xf32>
    %c0_42 = arith.constant 0 : index
    %c0_43 = arith.constant 0 : index
    %74 = vector.load %arg14[%c0_42, %c0_43] : memref<1x32xf32, #tpu.memory_space<vmem>>, vector<1x32xf32>
    %c0_44 = arith.constant 0 : index
    %c0_45 = arith.constant 0 : index
    %75 = vector.load %arg15[%c0_44, %c0_45] : memref<1x32xf32, #tpu.memory_space<vmem>>, vector<1x32xf32>
    %cst_46 = arith.constant dense<0.000000e+00> : vector<8xf32>
    %76 = vector.multi_reduction <add>, %73, %cst_46 [1] : vector<8x32xf32> to vector<8xf32>
    %77 = vector.shape_cast %76 : vector<8xf32> to vector<8x1xf32>
    %cst_47 = arith.constant 3.200000e+01 : f32
    %78 = vector.broadcast %cst_47 : f32 to vector<8x1xf32>
    %79 = arith.divf %77, %78 : vector<8x1xf32>
    %80 = vector.broadcast %79 : vector<8x1xf32> to vector<8x32xf32>
    %81 = arith.subf %73, %80 : vector<8x32xf32>
    %82 = arith.mulf %81, %81 : vector<8x32xf32>
    %cst_48 = arith.constant dense<0.000000e+00> : vector<8xf32>
    %83 = vector.multi_reduction <add>, %82, %cst_48 [1] : vector<8x32xf32> to vector<8xf32>
    %84 = vector.shape_cast %83 : vector<8xf32> to vector<8x1xf32>
    %cst_49 = arith.constant 3.200000e+01 : f32
    %85 = vector.broadcast %cst_49 : f32 to vector<8x1xf32>
    %86 = arith.divf %84, %85 : vector<8x1xf32>
    %87 = vector.broadcast %79 : vector<8x1xf32> to vector<8x32xf32>
    %88 = arith.subf %73, %87 : vector<8x32xf32>
    %cst_50 = arith.constant 9.99999997E-7 : f32
    %89 = vector.broadcast %cst_50 : f32 to vector<8x1xf32>
    %90 = arith.addf %86, %89 : vector<8x1xf32>
    %91 = math.rsqrt %90 : vector<8x1xf32>
    %92 = vector.broadcast %91 : vector<8x1xf32> to vector<8x32xf32>
    %93 = arith.mulf %88, %92 : vector<8x32xf32>
    %94 = vector.broadcast %74 : vector<1x32xf32> to vector<8x32xf32>
    %95 = arith.mulf %93, %94 : vector<8x32xf32>
    %96 = vector.broadcast %75 : vector<1x32xf32> to vector<8x32xf32>
    %97 = arith.addf %95, %96 : vector<8x32xf32>
    %c0_51 = arith.constant 0 : index
    %c0_52 = arith.constant 0 : index
    %c0_53 = arith.constant 0 : index
    %98 = vector.load %arg16[%c0_51, %c0_52, %c0_53] : memref<1x8x32xf32, #tpu.memory_space<vmem>>, vector<1x8x32xf32>
    %99 = vector.shape_cast %98 : vector<1x8x32xf32> to vector<8x32xf32>
    %100 = vector.shape_cast %97 : vector<8x32xf32> to vector<1x8x32xf32>
    tpu.vector_store %arg16[%c0_51, %c0_52, %c0_53], %100 {strides = array<i32>} : memref<1x8x32xf32, #tpu.memory_space<vmem>>, vector<1x8x32xf32>,
    return
  }
  func.func @transform_0(%arg0: i32, %arg1: i32) -> (i32, i32, i32) {
    %c0_i32 = arith.constant 0 : i32
    %c0_i32_0 = arith.constant 0 : i32
    return %arg0, %arg1, %c0_i32 : i32, i32, i32
  }
  func.func @transform_1(%arg0: i32, %arg1: i32) -> (i32, i32, i32) {
    %c0_i32 = arith.constant 0 : i32
    %c0_i32_0 = arith.constant 0 : i32
    %c0_i32_1 = arith.constant 0 : i32
    return %arg0, %c0_i32, %c0_i32_0 : i32, i32, i32
  }
  func.func @transform_2(%arg0: i32, %arg1: i32) -> (i32, i32) {
    %c0_i32 = arith.constant 0 : i32
    %c0_i32_0 = arith.constant 0 : i32
    %c0_i32_1 = arith.constant 0 : i32
    return %c0_i32, %c0_i32_0 : i32, i32
  }
  func.func @transform_3(%arg0: i32, %arg1: i32) -> (i32, i32) {
    %c0_i32 = arith.constant 0 : i32
    %c0_i32_0 = arith.constant 0 : i32
    %c0_i32_1 = arith.constant 0 : i32
    return %c0_i32, %c0_i32_0 : i32, i32
  }
  func.func @transform_4(%arg0: i32, %arg1: i32) -> (i32, i32) {
    %c0_i32 = arith.constant 0 : i32
    %c0_i32_0 = arith.constant 0 : i32
    %c0_i32_1 = arith.constant 0 : i32
    return %c0_i32, %c0_i32_0 : i32, i32
  }
  func.func @transform_5(%arg0: i32, %arg1: i32) -> (i32, i32) {
    %c0_i32 = arith.constant 0 : i32
    %c0_i32_0 = arith.constant 0 : i32
    %c0_i32_1 = arith.constant 0 : i32
    return %c0_i32, %c0_i32_0 : i32, i32
  }
  func.func @transform_6(%arg0: i32, %arg1: i32) -> (i32, i32) {
    %c0_i32 = arith.constant 0 : i32
    %c0_i32_0 = arith.constant 0 : i32
    %c0_i32_1 = arith.constant 0 : i32
    return %c0_i32, %c0_i32_0 : i32, i32
  }
  func.func @transform_7(%arg0: i32, %arg1: i32) -> (i32, i32) {
    %c0_i32 = arith.constant 0 : i32
    %c0_i32_0 = arith.constant 0 : i32
    %c0_i32_1 = arith.constant 0 : i32
    return %c0_i32, %c0_i32_0 : i32, i32
  }
  func.func @transform_8(%arg0: i32, %arg1: i32) -> (i32, i32) {
    %c0_i32 = arith.constant 0 : i32
    %c0_i32_0 = arith.constant 0 : i32
    %c0_i32_1 = arith.constant 0 : i32
    return %c0_i32, %c0_i32_0 : i32, i32
  }
  func.func @transform_9(%arg0: i32, %arg1: i32) -> (i32, i32) {
    %c0_i32 = arith.constant 0 : i32
    %c0_i32_0 = arith.constant 0 : i32
    %c0_i32_1 = arith.constant 0 : i32
    return %c0_i32, %c0_i32_0 : i32, i32
  }
  func.func @transform_10(%arg0: i32, %arg1: i32) -> (i32, i32) {
    %c0_i32 = arith.constant 0 : i32
    %c0_i32_0 = arith.constant 0 : i32
    %c0_i32_1 = arith.constant 0 : i32
    return %c0_i32, %c0_i32_0 : i32, i32
  }
  func.func @transform_11(%arg0: i32, %arg1: i32) -> (i32, i32) {
    %c0_i32 = arith.constant 0 : i32
    %c0_i32_0 = arith.constant 0 : i32
    %c0_i32_1 = arith.constant 0 : i32
    return %c0_i32, %c0_i32_0 : i32, i32
  }
  func.func @transform_12(%arg0: i32, %arg1: i32) -> (i32, i32) {
    %c0_i32 = arith.constant 0 : i32
    %c0_i32_0 = arith.constant 0 : i32
    %c0_i32_1 = arith.constant 0 : i32
    return %c0_i32, %c0_i32_0 : i32, i32
  }
  func.func @transform_13(%arg0: i32, %arg1: i32) -> (i32, i32) {
    %c0_i32 = arith.constant 0 : i32
    %c0_i32_0 = arith.constant 0 : i32
    %c0_i32_1 = arith.constant 0 : i32
    return %c0_i32, %c0_i32_0 : i32, i32
  }
  func.func @transform_14(%arg0: i32, %arg1: i32) -> (i32, i32, i32) {
    %c0_i32 = arith.constant 0 : i32
    %c0_i32_0 = arith.constant 0 : i32
    return %arg0, %arg1, %c0_i32 : i32, i32, i32
  }
  func.func @transform_15(%arg0: i32, %arg1: i32) -> (i32, i32, i32, i32) {
    %c0_i32 = arith.constant 0 : i32
    %c0_i32_0 = arith.constant 0 : i32
    %c0_i32_1 = arith.constant 0 : i32
    return %arg0, %c0_i32, %arg1, %c0_i32_0 : i32, i32, i32, i32
  }
}

</mosaic_0001>

<llo_original>
// kernel: tpu_custom_call.1
$region0: #{tpu_custom_call.1}
  #allocation0 [shape = 'u32[]', space=smem, size = 0x4, offset = 0x4, fixed_abs, tag = 'smem constant byte address 0x4 - core index']
  #allocation1 [shape = 'u32[72,128]{1,0:T(1,128)}', space=vmem, size = 0x9000, scoped, tag = 'internal scratch']
  #allocation2 [shape = 'bf16[4,8,8]{2,1,0:T(8,128)(2,1)}', space=vmem, size = 0x2000, scoped, tag = 'scratch operand']
  #allocation3 [shape = 'bf16[4,8,8]{2,1,0:T(8,128)(2,1)}', space=vmem, size = 0x2000, scoped, tag = 'scratch operand']
  %s0 = inlined_call_operand.vmem [shape: f32[2,8,32], index: 0, kind: input, shape index: {}]
  %s1 = inlined_call_operand.vmem [shape: f32[2,8,32], index: 1, kind: input, shape index: {}]
  %s2 = inlined_call_operand.vmem [shape: bf16[32,32], index: 2, kind: input, shape index: {}]
  %s3 = inlined_call_operand.hbm [shape: bf16[32,32], index: 3, kind: input, shape index: {}]
  %s4 = inlined_call_operand.hbm [shape: bf16[32,32], index: 4, kind: input, shape index: {}]
  %s5 = inlined_call_operand.hbm [shape: bf16[32,32], index: 5, kind: input, shape index: {}]
  %s6 = inlined_call_operand.vmem [shape: f32[1,32], index: 6, kind: input, shape index: {}]
  %s7 = inlined_call_operand.vmem [shape: f32[1,32], index: 7, kind: input, shape index: {}]
  %s8 = inlined_call_operand.hbm [shape: bf16[32,64], index: 8, kind: input, shape index: {}]
  %s9 = inlined_call_operand.vmem [shape: f32[1,64], index: 9, kind: input, shape index: {}]
  %s10 = inlined_call_operand.vmem [shape: bf16[64,32], index: 10, kind: input, shape index: {}]
  %s11 = inlined_call_operand.vmem [shape: f32[1,32], index: 11, kind: input, shape index: {}]
  %s12 = inlined_call_operand.vmem [shape: f32[1,32], index: 12, kind: input, shape index: {}]
  %s13 = inlined_call_operand.vmem [shape: f32[1,32], index: 13, kind: input, shape index: {}]
  %s14 = inlined_call_operand.hbm [shape: f32[2,8,32], index: 14, kind: output, shape index: {0}]
  %s15 = inlined_call_operand.hbm [shape: f32[2,4,8,8], index: 15, kind: output, shape index: {1}]
  %16 = xla_tuple %s14, %s15
  %s17 = sld [smem:[#allocation0]]
  $region117: #{tpu_custom_call.1} parent=0
    _
  %s19 = ssub.s32 1, %s17
  %s20 = scalar_select 0, %s19, %s17
  $region1: #{tpu_custom_call.1} parent=0
    #allocation4 [shape = 'u8[8192]{0}', space=vmem, size = 0x2000, scoped, tag = 'input window, operand 3, single buffered']
    #allocation5 [shape = 's32[2]{0}', space=sflag, size = 0x8, scoped, tag = 'scoped memory for tpu_custom_call.1']
    #allocation6 [shape = 's32[2]{0}', space=sflag, size = 0x8, scoped, tag = 'scoped memory for tpu_custom_call.1']
    #allocation7 [shape = 'u8[8192]{0}', space=vmem, size = 0x2000, scoped, tag = 'input window, operand 4, single buffered']
    #allocation8 [shape = 's32[1]{0}', space=sflag, size = 0x4, scoped, tag = 'scoped memory for tpu_custom_call.1']
    #allocation9 [shape = 'u8[8192]{0}', space=vmem, size = 0x2000, scoped, tag = 'input window, operand 5, single buffered']
    #allocation10 [shape = 'u8[8192]{0}', space=vmem, size = 0x2000, scoped, tag = 'input window, operand 8, single buffered']
    #allocation11 [shape = 's32[1]{0}', space=sflag, size = 0x4, scoped, tag = 'scoped memory for tpu_custom_call.1']
    #allocation12 [shape = 'u8[8192]{0}', space=vmem, size = 0x2000, scoped, tag = 'output window, operand 0']
    #allocation13 [shape = 'u8[32768]{0}', space=vmem, size = 0x8000, scoped, tag = 'output window, operand 1']
    #allocation14 [shape = 's32[2]{0}', space=sflag, size = 0x8, scoped, tag = 'scoped memory for tpu_custom_call.1']
    %21 = vsyncpa [#allocation5], 0
    %22 = vsyncpa [#allocation8], 0
    %23 = vsyncpa [#allocation11], 0
    %24 = vsyncpa [#allocation6], 0
    %s25 = scalar_lea.sflag [#allocation6], 1
    %26 = vsyncpa %s25, 0
    %27 = vsyncpa [#allocation14], 0
    %s28 = scalar_lea.sflag [#allocation14], 1
    %29 = vsyncpa %s28, 0
    loop: start=0, step=1, limit=4
    $region2: #{tpu_custom_call.1} parent=1 // loop_pre_header
      _
    $region3: #{tpu_custom_call.1} parent=1 // loop_header
      %s31 = sphi 0, %s35
      %p32 = scmp.ge.s32.totalorder %s31, 4
      %s38 = sphi 0, %s50
      %s39 = sphi 0, %s46
      %s40 = sphi 0, %s38
      %s41 = sphi 0, %s39
      %s42 = sphi 0, %s40
      %s43 = sphi 0, %s41
      %s55 = sphi 0, %s57
      %s58 = sphi 0, %s55
      %s59 = sphi 0, %s58
      %s75 = sphi 0, %s59
      %s81 = sphi 0, %s83
      %s84 = sphi 0, %s81
      %s85 = sphi 0, %s84
      %s101 = sphi 0, %s85
      %s105 = sphi 0, %s105
      %s107 = sphi 0, %s105
      %s108 = sphi 0, %s107
      %s122 = sphi 0, %s108
      %s126 = sphi 0, %s126
      %s128 = sphi 0, %s126
      %s129 = sphi 0, %s128
      %s143 = sphi 0, %s129
      %s147 = sphi 0, %s147
      %s149 = sphi 0, %s147
      %s150 = sphi 0, %s149
      %s164 = sphi 0, %s150
      %s168 = sphi 0, %s168
      %s170 = sphi 0, %s168
      %s171 = sphi 0, %s170
      %s185 = sphi 0, %s171
      %s189 = sphi 0, %s189
      %s191 = sphi 0, %s189
      %s192 = sphi 0, %s191
      %s206 = sphi 0, %s192
      %s210 = sphi 0, %s210
      %s212 = sphi 0, %s210
      %s213 = sphi 0, %s212
      %s227 = sphi 0, %s213
      %s231 = sphi 0, %s231
      %s233 = sphi 0, %s231
      %s234 = sphi 0, %s233
      %s248 = sphi 0, %s234
      %s252 = sphi 0, %s252
      %s254 = sphi 0, %s252
      %s255 = sphi 0, %s254
      %s269 = sphi 0, %s255
      %s273 = sphi 0, %s273
      %s275 = sphi 0, %s273
      %s276 = sphi 0, %s275
      %s290 = sphi 0, %s276
      %s294 = sphi 0, %s294
      %s296 = sphi 0, %s294
      %s297 = sphi 0, %s296
      %s311 = sphi 0, %s297
      %s315 = sphi 0, %s315
      %s317 = sphi 0, %s315
      %s318 = sphi 0, %s317
      %s332 = sphi 0, %s318
      %s336 = sphi 0, %s336
      %s338 = sphi 0, %s336
      %s339 = sphi 0, %s338
      %s353 = sphi 0, %s339
      %s361 = sphi 0, %s363
      %s364 = sphi 0, %s361
      %s365 = sphi 0, %s364
      %s381 = sphi 0, %s365
      %s389 = sphi 0, %s391
      %s392 = sphi 0, %s389
      %s393 = sphi 0, %s392
      %s409 = sphi 0, %s393
    $region4: #{tpu_custom_call.1} parent=1 // loop_header_branch
      %34 = sbr.rel (%p32) target = $region8
    $region5: #{tpu_custom_call.1} parent=1 // loop_body
      %s36 = ssub.s32 %s31, 1
      %s37 = ssub.s32 %s31, 2
      %s44 = sadd.s32 1, %s39
      %p45 = scmp.ge.s32.totalorder %s44, 1
      %s46 = scalar_select %p45, 0, %s44
      %s47 = sadd.s32 1, %s38
      %s48 = scalar_select %p45, %s47, %s38
      %p49 = scmp.ge.s32.totalorder %s48, 2
      %s50 = scalar_select %p49, 0, %s48
      %s51 = ssub.s32 %s38, %s50
      %s52 = ssub.s32 %s39, %s46
      %s53 = sor.u32 %s51, %s52
      %p54 = scmp.eq.s32.totalorder %s53, 0
      %s56 = sadd.s32 %s55, 1
      %s57 = scalar_select %p54, %s55, %s56
      %p60 = pneg %p54
      %p61 = scmp.eq.s32.totalorder %s31, 1
      %p62 = por %p60, %p61
      %p63 = scmp.ne.s32.totalorder %s55, %s58
      %p64 = scmp.eq.s32.totalorder %s31, 0
      %p65 = por %p63, %p64
      %p66 = scmp.ne.s32.totalorder %s55, %s58
      %p67 = scmp.eq.s32.totalorder %s36, 1
      %p68 = por %p66, %p67
      %p69 = scmp.ne.s32.totalorder %s58, %s59
      %p70 = scmp.eq.s32.totalorder %s36, 0
      %p71 = por %p69, %p70
      %p72 = scmp.ne.s32.totalorder %s58, %s59
      %p73 = scmp.eq.s32.totalorder %s37, 1
      %p74 = por %p72, %p73
      %p76 = scmp.ne.s32.totalorder %s59, %s75
      %p77 = scmp.eq.s32.totalorder %s37, 0
      %p78 = por %p76, %p77
      %s79 = ssub.s32 %s38, %s50
      %p80 = scmp.eq.s32.totalorder %s79, 0
      %s82 = sadd.s32 %s81, 1
      %s83 = scalar_select %p80, %s81, %s82
      %p86 = pneg %p80
      %p87 = scmp.eq.s32.totalorder %s31, 1
      %p88 = por %p86, %p87
      %p89 = scmp.ne.s32.totalorder %s81, %s84
      %p90 = scmp.eq.s32.totalorder %s31, 0
      %p91 = por %p89, %p90
      %p92 = scmp.ne.s32.totalorder %s81, %s84
      %p93 = scmp.eq.s32.totalorder %s36, 1
      %p94 = por %p92, %p93
      %p95 = scmp.ne.s32.totalorder %s84, %s85
      %p96 = scmp.eq.s32.totalorder %s36, 0
      %p97 = por %p95, %p96
      %p98 = scmp.ne.s32.totalorder %s84, %s85
      %p99 = scmp.eq.s32.totalorder %s37, 1
      %p100 = por %p98, %p99
      %p102 = scmp.ne.s32.totalorder %s85, %s101
      %p103 = scmp.eq.s32.totalorder %s37, 0
      %p104 = por %p102, %p103
      %s106 = sadd.s32 %s105, 1
      %p109 = scmp.eq.s32.totalorder %s31, 1
      %p110 = scmp.ne.s32.totalorder %s105, %s107
      %p111 = scmp.eq.s32.totalorder %s31, 0
      %p112 = por %p110, %p111
      %p113 = scmp.ne.s32.totalorder %s105, %s107
      %p114 = scmp.eq.s32.totalorder %s36, 1
      %p115 = por %p113, %p114
      %p116 = scmp.ne.s32.totalorder %s107, %s108
      %p117 = scmp.eq.s32.totalorder %s36, 0
      %p118 = por %p116, %p117
      %p119 = scmp.ne.s32.totalorder %s107, %s108
      %p120 = scmp.eq.s32.totalorder %s37, 1
      %p121 = por %p119, %p120
      %p123 = scmp.ne.s32.totalorder %s108, %s122
      %p124 = scmp.eq.s32.totalorder %s37, 0
      %p125 = por %p123, %p124
      %s127 = sadd.s32 %s126, 1
      %p130 = scmp.eq.s32.totalorder %s31, 1
      %p131 = scmp.ne.s32.totalorder %s126, %s128
      %p132 = scmp.eq.s32.totalorder %s31, 0
      %p133 = por %p131, %p132
      %p134 = scmp.ne.s32.totalorder %s126, %s128
      %p135 = scmp.eq.s32.totalorder %s36, 1
      %p136 = por %p134, %p135
      %p137 = scmp.ne.s32.totalorder %s128, %s129
      %p138 = scmp.eq.s32.totalorder %s36, 0
      %p139 = por %p137, %p138
      %p140 = scmp.ne.s32.totalorder %s128, %s129
      %p141 = scmp.eq.s32.totalorder %s37, 1
      %p142 = por %p140, %p141
      %p144 = scmp.ne.s32.totalorder %s129, %s143
      %p145 = scmp.eq.s32.totalorder %s37, 0
      %p146 = por %p144, %p145
      %s148 = sadd.s32 %s147, 1
      %p151 = scmp.eq.s32.totalorder %s31, 1
      %p152 = scmp.ne.s32.totalorder %s147, %s149
      %p153 = scmp.eq.s32.totalorder %s31, 0
      %p154 = por %p152, %p153
      %p155 = scmp.ne.s32.totalorder %s147, %s149
      %p156 = scmp.eq.s32.totalorder %s36, 1
      %p157 = por %p155, %p156
      %p158 = scmp.ne.s32.totalorder %s149, %s150
      %p159 = scmp.eq.s32.totalorder %s36, 0
      %p160 = por %p158, %p159
      %p161 = scmp.ne.s32.totalorder %s149, %s150
      %p162 = scmp.eq.s32.totalorder %s37, 1
      %p163 = por %p161, %p162
      %p165 = scmp.ne.s32.totalorder %s150, %s164
      %p166 = scmp.eq.s32.totalorder %s37, 0
      %p167 = por %p165, %p166
      %s169 = sadd.s32 %s168, 1
      %p172 = scmp.eq.s32.totalorder %s31, 1
      %p173 = scmp.ne.s32.totalorder %s168, %s170
      %p174 = scmp.eq.s32.totalorder %s31, 0
      %p175 = por %p173, %p174
      %p176 = scmp.ne.s32.totalorder %s168, %s170
      %p177 = scmp.eq.s32.totalorder %s36, 1
      %p178 = por %p176, %p177
      %p179 = scmp.ne.s32.totalorder %s170, %s171
      %p180 = scmp.eq.s32.totalorder %s36, 0
      %p181 = por %p179, %p180
      %p182 = scmp.ne.s32.totalorder %s170, %s171
      %p183 = scmp.eq.s32.totalorder %s37, 1
      %p184 = por %p182, %p183
      %p186 = scmp.ne.s32.totalorder %s171, %s185
      %p187 = scmp.eq.s32.totalorder %s37, 0
      %p188 = por %p186, %p187
      %s190 = sadd.s32 %s189, 1
      %p193 = scmp.eq.s32.totalorder %s31, 1
      %p194 = scmp.ne.s32.totalorder %s189, %s191
      %p195 = scmp.eq.s32.totalorder %s31, 0
      %p196 = por %p194, %p195
      %p197 = scmp.ne.s32.totalorder %s189, %s191
      %p198 = scmp.eq.s32.totalorder %s36, 1
      %p199 = por %p197, %p198
      %p200 = scmp.ne.s32.totalorder %s191, %s192
      %p201 = scmp.eq.s32.totalorder %s36, 0
      %p202 = por %p200, %p201
      %p203 = scmp.ne.s32.totalorder %s191, %s192
      %p204 = scmp.eq.s32.totalorder %s37, 1
      %p205 = por %p203, %p204
      %p207 = scmp.ne.s32.totalorder %s192, %s206
      %p208 = scmp.eq.s32.totalorder %s37, 0
      %p209 = por %p207, %p208
      %s211 = sadd.s32 %s210, 1
      %p214 = scmp.eq.s32.totalorder %s31, 1
      %p215 = scmp.ne.s32.totalorder %s210, %s212
      %p216 = scmp.eq.s32.totalorder %s31, 0
      %p217 = por %p215, %p216
      %p218 = scmp.ne.s32.totalorder %s210, %s212
      %p219 = scmp.eq.s32.totalorder %s36, 1
      %p220 = por %p218, %p219
      %p221 = scmp.ne.s32.totalorder %s212, %s213
      %p222 = scmp.eq.s32.totalorder %s36, 0
      %p223 = por %p221, %p222
      %p224 = scmp.ne.s32.totalorder %s212, %s213
      %p225 = scmp.eq.s32.totalorder %s37, 1
      %p226 = por %p224, %p225
      %p228 = scmp.ne.s32.totalorder %s213, %s227
      %p229 = scmp.eq.s32.totalorder %s37, 0
      %p230 = por %p228, %p229
      %s232 = sadd.s32 %s231, 1
      %p235 = scmp.eq.s32.totalorder %s31, 1
      %p236 = scmp.ne.s32.totalorder %s231, %s233
      %p237 = scmp.eq.s32.totalorder %s31, 0
      %p238 = por %p236, %p237
      %p239 = scmp.ne.s32.totalorder %s231, %s233
      %p240 = scmp.eq.s32.totalorder %s36, 1
      %p241 = por %p239, %p240
      %p242 = scmp.ne.s32.totalorder %s233, %s234
      %p243 = scmp.eq.s32.totalorder %s36, 0
      %p244 = por %p242, %p243
      %p245 = scmp.ne.s32.totalorder %s233, %s234
      %p246 = scmp.eq.s32.totalorder %s37, 1
      %p247 = por %p245, %p246
      %p249 = scmp.ne.s32.totalorder %s234, %s248
      %p250 = scmp.eq.s32.totalorder %s37, 0
      %p251 = por %p249, %p250
      %s253 = sadd.s32 %s252, 1
      %p256 = scmp.eq.s32.totalorder %s31, 1
      %p257 = scmp.ne.s32.totalorder %s252, %s254
      %p258 = scmp.eq.s32.totalorder %s31, 0
      %p259 = por %p257, %p258
      %p260 = scmp.ne.s32.totalorder %s252, %s254
      %p261 = scmp.eq.s32.totalorder %s36, 1
      %p262 = por %p260, %p261
      %p263 = scmp.ne.s32.totalorder %s254, %s255
      %p264 = scmp.eq.s32.totalorder %s36, 0
      %p265 = por %p263, %p264
      %p266 = scmp.ne.s32.totalorder %s254, %s255
      %p267 = scmp.eq.s32.totalorder %s37, 1
      %p268 = por %p266, %p267
      %p270 = scmp.ne.s32.totalorder %s255, %s269
      %p271 = scmp.eq.s32.totalorder %s37, 0
      %p272 = por %p270, %p271
      %s274 = sadd.s32 %s273, 1
      %p277 = scmp.eq.s32.totalorder %s31, 1
      %p278 = scmp.ne.s32.totalorder %s273, %s275
      %p279 = scmp.eq.s32.totalorder %s31, 0
      %p280 = por %p278, %p279
      %p281 = scmp.ne.s32.totalorder %s273, %s275
      %p282 = scmp.eq.s32.totalorder %s36, 1
      %p283 = por %p281, %p282
      %p284 = scmp.ne.s32.totalorder %s275, %s276
      %p285 = scmp.eq.s32.totalorder %s36, 0
      %p286 = por %p284, %p285
      %p287 = scmp.ne.s32.totalorder %s275, %s276
      %p288 = scmp.eq.s32.totalorder %s37, 1
      %p289 = por %p287, %p288
      %p291 = scmp.ne.s32.totalorder %s276, %s290
      %p292 = scmp.eq.s32.totalorder %s37, 0
      %p293 = por %p291, %p292
      %s295 = sadd.s32 %s294, 1
      %p298 = scmp.eq.s32.totalorder %s31, 1
      %p299 = scmp.ne.s32.totalorder %s294, %s296
      %p300 = scmp.eq.s32.totalorder %s31, 0
      %p301 = por %p299, %p300
      %p302 = scmp.ne.s32.totalorder %s294, %s296
      %p303 = scmp.eq.s32.totalorder %s36, 1
      %p304 = por %p302, %p303
      %p305 = scmp.ne.s32.totalorder %s296, %s297
      %p306 = scmp.eq.s32.totalorder %s36, 0
      %p307 = por %p305, %p306
      %p308 = scmp.ne.s32.totalorder %s296, %s297
      %p309 = scmp.eq.s32.totalorder %s37, 1
      %p310 = por %p308, %p309
      %p312 = scmp.ne.s32.totalorder %s297, %s311
      %p313 = scmp.eq.s32.totalorder %s37, 0
      %p314 = por %p312, %p313
      %s316 = sadd.s32 %s315, 1
      %p319 = scmp.eq.s32.totalorder %s31, 1
      %p320 = scmp.ne.s32.totalorder %s315, %s317
      %p321 = scmp.eq.s32.totalorder %s31, 0
      %p322 = por %p320, %p321
      %p323 = scmp.ne.s32.totalorder %s315, %s317
      %p324 = scmp.eq.s32.totalorder %s36, 1
      %p325 = por %p323, %p324
      %p326 = scmp.ne.s32.totalorder %s317, %s318
      %p327 = scmp.eq.s32.totalorder %s36, 0
      %p328 = por %p326, %p327
      %p329 = scmp.ne.s32.totalorder %s317, %s318
      %p330 = scmp.eq.s32.totalorder %s37, 1
      %p331 = por %p329, %p330
      %p333 = scmp.ne.s32.totalorder %s318, %s332
      %p334 = scmp.eq.s32.totalorder %s37, 0
      %p335 = por %p333, %p334
      %s337 = sadd.s32 %s336, 1
      %p340 = scmp.eq.s32.totalorder %s31, 1
      %p341 = scmp.ne.s32.totalorder %s336, %s338
      %p342 = scmp.eq.s32.totalorder %s31, 0
      %p343 = por %p341, %p342
      %p344 = scmp.ne.s32.totalorder %s336, %s338
      %p345 = scmp.eq.s32.totalorder %s36, 1
      %p346 = por %p344, %p345
      %p347 = scmp.ne.s32.totalorder %s338, %s339
      %p348 = scmp.eq.s32.totalorder %s36, 0
      %p349 = por %p347, %p348
      %p350 = scmp.ne.s32.totalorder %s338, %s339
      %p351 = scmp.eq.s32.totalorder %s37, 1
      %p352 = por %p350, %p351
      %p354 = scmp.ne.s32.totalorder %s339, %s353
      %p355 = scmp.eq.s32.totalorder %s37, 0
      %p356 = por %p354, %p355
      %s357 = ssub.s32 %s38, %s50
      %s358 = ssub.s32 %s39, %s46
      %s359 = sor.u32 %s357, %s358
      %p360 = scmp.eq.s32.totalorder %s359, 0
      %s362 = sadd.s32 %s361, 1
      %s363 = scalar_select %p360, %s361, %s362
      %p366 = pneg %p360
      %p367 = scmp.eq.s32.totalorder %s31, 1
      %p368 = por %p366, %p367
      %p369 = scmp.ne.s32.totalorder %s361, %s364
      %p370 = scmp.eq.s32.totalorder %s31, 0
      %p371 = por %p369, %p370
      %p372 = scmp.ne.s32.totalorder %s361, %s364
      %p373 = scmp.eq.s32.totalorder %s36, 1
      %p374 = por %p372, %p373
      %p375 = scmp.ne.s32.totalorder %s364, %s365
      %p376 = scmp.eq.s32.totalorder %s36, 0
      %p377 = por %p375, %p376
      %p378 = scmp.ne.s32.totalorder %s364, %s365
      %p379 = scmp.eq.s32.totalorder %s37, 1
      %p380 = por %p378, %p379
      %p382 = scmp.ne.s32.totalorder %s365, %s381
      %p383 = scmp.eq.s32.totalorder %s37, 0
      %p384 = por %p382, %p383
      %s385 = ssub.s32 %s38, %s50
      %s386 = ssub.s32 %s39, %s46
      %s387 = sor.u32 %s385, %s386
      %p388 = scmp.eq.s32.totalorder %s387, 0
      %s390 = sadd.s32 %s389, 1
      %s391 = scalar_select %p388, %s389, %s390
      %p394 = pneg %p388
      %p395 = scmp.eq.s32.totalorder %s31, 1
      %p396 = por %p394, %p395
      %p397 = scmp.ne.s32.totalorder %s389, %s392
      %p398 = scmp.eq.s32.totalorder %s31, 0
      %p399 = por %p397, %p398
      %p400 = scmp.ne.s32.totalorder %s389, %s392
      %p401 = scmp.eq.s32.totalorder %s36, 1
      %p402 = por %p400, %p401
      %p403 = scmp.ne.s32.totalorder %s392, %s393
      %p404 = scmp.eq.s32.totalorder %s36, 0
      %p405 = por %p403, %p404
      %p406 = scmp.ne.s32.totalorder %s392, %s393
      %p407 = scmp.eq.s32.totalorder %s37, 1
      %p408 = por %p406, %p407
      %p410 = scmp.ne.s32.totalorder %s393, %s409
      %p411 = scmp.eq.s32.totalorder %s37, 0
      %p412 = por %p410, %p411
      %p413 = scmp.le.s32.totalorder 1, %s31
      %p414 = scmp.lt.s32.totalorder %s31, 3
      %p415 = pnand %p413, %p414
      %p416 = pneg %p415
      // Predicated region
      $region9: #{tpu_custom_call.1} parent=5 // pred_check
        _
      $region10: #{tpu_custom_call.1} parent=5 // pred_check_branch
        %418 = sbr.rel (%p415) target = $region12
      $region11: #{tpu_custom_call.1} parent=5 // pred_region
        %s419 = ssub.s32 %s31, 1
        // Predicated region
        $region13: #{tpu_custom_call.1} parent=11 // pred_check
          %p420 = pneg %p118
        $region14: #{tpu_custom_call.1} parent=11 // pred_check_branch
          %422 = sbr.rel (%p420) target = $region16
        $region15: #{tpu_custom_call.1} parent=11 // pred_region
          _
        $region16: #{tpu_custom_call.1} parent=11 // pred_fallthru
          _
        // Predicated region
        $region17: #{tpu_custom_call.1} parent=11 // pred_check
          %p423 = pneg %p139
        $region18: #{tpu_custom_call.1} parent=11 // pred_check_branch
          %425 = sbr.rel (%p423) target = $region20
        $region19: #{tpu_custom_call.1} parent=11 // pred_region
          %427 = vsyncadd [#allocation5], 0
          %s428 = sshll.u32 %s3, 4
          %s429 = int_to_ptr.hbm [resolvable:$true] %s428
          %s430 = sshll.u32 [#allocation4], 4
          %s431 = int_to_ptr.vmem [resolvable:$true] %s430
          %436 = dma.hbm_to_vmem [thread:$0]  %s429, 256, %s431, [#allocation5], 64, 64, 4
        $region20: #{tpu_custom_call.1} parent=11 // pred_fallthru
          _
        // Predicated region
        $region21: #{tpu_custom_call.1} parent=11 // pred_check
          %p437 = pneg %p160
        $region22: #{tpu_custom_call.1} parent=11 // pred_check_branch
          %439 = sbr.rel (%p437) target = $region24
        $region23: #{tpu_custom_call.1} parent=11 // pred_region
          %441 = vsyncadd [#allocation8], 0
          %s442 = sshll.u32 %s4, 4
          %s443 = int_to_ptr.hbm [resolvable:$true] %s442
          %s444 = sshll.u32 [#allocation7], 4
          %s445 = int_to_ptr.vmem [resolvable:$true] %s444
          %450 = dma.hbm_to_vmem [thread:$0]  %s443, 256, %s445, [#allocation8], 64, 64, 4
        $region24: #{tpu_custom_call.1} parent=11 // pred_fallthru
          _
        // Predicated region
        $region25: #{tpu_custom_call.1} parent=11 // pred_check
          %p451 = pneg %p181
        $region26: #{tpu_custom_call.1} parent=11 // pred_check_branch
          %453 = sbr.rel (%p451) target = $region28
        $region27: #{tpu_custom_call.1} parent=11 // pred_region
          %455 = vsyncadd [#allocation8], 0
          %s456 = sshll.u32 %s5, 4
          %s457 = int_to_ptr.hbm [resolvable:$true] %s456
          %s458 = sshll.u32 [#allocation9], 4
          %s459 = int_to_ptr.vmem [resolvable:$true] %s458
          %464 = dma.hbm_to_vmem [thread:$0]  %s457, 256, %s459, [#allocation8], 64, 64, 4
        $region28: #{tpu_custom_call.1} parent=11 // pred_fallthru
          _
        // Predicated region
        $region29: #{tpu_custom_call.1} parent=11 // pred_check
          %p465 = pneg %p202
        $region30: #{tpu_custom_call.1} parent=11 // pred_check_branch
          %467 = sbr.rel (%p465) target = $region32
        $region31: #{tpu_custom_call.1} parent=11 // pred_region
          _
        $region32: #{tpu_custom_call.1} parent=11 // pred_fallthru
          _
        // Predicated region
        $region33: #{tpu_custom_call.1} parent=11 // pred_check
          %p468 = pneg %p223
        $region34: #{tpu_custom_call.1} parent=11 // pred_check_branch
          %470 = sbr.rel (%p468) target = $region36
        $region35: #{tpu_custom_call.1} parent=11 // pred_region
          _
        $region36: #{tpu_custom_call.1} parent=11 // pred_fallthru
          _
        // Predicated region
        $region37: #{tpu_custom_call.1} parent=11 // pred_check
          %p471 = pneg %p244
        $region38: #{tpu_custom_call.1} parent=11 // pred_check_branch
          %473 = sbr.rel (%p471) target = $region40
        $region39: #{tpu_custom_call.1} parent=11 // pred_region
          %475 = vsyncadd [#allocation11], 0
          %s476 = sshll.u32 %s8, 4
          %s477 = int_to_ptr.hbm [resolvable:$true] %s476
          %s478 = sshll.u32 [#allocation10], 4
          %s479 = int_to_ptr.vmem [resolvable:$true] %s478
          %484 = dma.hbm_to_vmem [thread:$0]  %s477, 256, %s479, [#allocation11], 64, 64, 4
        $region40: #{tpu_custom_call.1} parent=11 // pred_fallthru
          _
        // Predicated region
        $region41: #{tpu_custom_call.1} parent=11 // pred_check
          %p485 = pneg %p265
        $region42: #{tpu_custom_call.1} parent=11 // pred_check_branch
          %487 = sbr.rel (%p485) target = $region44
        $region43: #{tpu_custom_call.1} parent=11 // pred_region
          _
        $region44: #{tpu_custom_call.1} parent=11 // pred_fallthru
          _
        // Predicated region
        $region45: #{tpu_custom_call.1} parent=11 // pred_check
          %p488 = pneg %p286
        $region46: #{tpu_custom_call.1} parent=11 // pred_check_branch
          %490 = sbr.rel (%p488) target = $region48
        $region47: #{tpu_custom_call.1} parent=11 // pred_region
          _
        $region48: #{tpu_custom_call.1} parent=11 // pred_fallthru
          _
        // Predicated region
        $region49: #{tpu_custom_call.1} parent=11 // pred_check
          %p491 = pneg %p307
        $region50: #{tpu_custom_call.1} parent=11 // pred_check_branch
          %493 = sbr.rel (%p491) target = $region52
        $region51: #{tpu_custom_call.1} parent=11 // pred_region
          _
        $region52: #{tpu_custom_call.1} parent=11 // pred_fallthru
          _
        // Predicated region
        $region53: #{tpu_custom_call.1} parent=11 // pred_check
          %p494 = pneg %p328
        $region54: #{tpu_custom_call.1} parent=11 // pred_check_branch
          %496 = sbr.rel (%p494) target = $region56
        $region55: #{tpu_custom_call.1} parent=11 // pred_region
          _
        $region56: #{tpu_custom_call.1} parent=11 // pred_fallthru
          _
        // Predicated region
        $region57: #{tpu_custom_call.1} parent=11 // pred_check
          %p497 = pneg %p349
        $region58: #{tpu_custom_call.1} parent=11 // pred_check_branch
          %499 = sbr.rel (%p497) target = $region60
        $region59: #{tpu_custom_call.1} parent=11 // pred_region
          _
        $region60: #{tpu_custom_call.1} parent=11 // pred_fallthru
          _
      $region12: #{tpu_custom_call.1} parent=5 // pred_fallthru
        _
      %p500 = scmp.lt.s32.totalorder %s31, 2
      // Predicated region
      $region61: #{tpu_custom_call.1} parent=5 // pred_check
        %p501 = pneg %p500
      $region62: #{tpu_custom_call.1} parent=5 // pred_check_branch
        %503 = sbr.rel (%p501) target = $region64
      $region63: #{tpu_custom_call.1} parent=5 // pred_region
        // Predicated region
        $region65: #{tpu_custom_call.1} parent=63 // pred_check
          %p504 = pneg %p65
        $region66: #{tpu_custom_call.1} parent=63 // pred_check_branch
          %506 = sbr.rel (%p504) target = $region68
        $region67: #{tpu_custom_call.1} parent=63 // pred_region
          %p507 = scmp.lt.s32.totalorder %s38, 1
          %s508 = scalar_select %p507, %s38, 1
          %p509 = scmp.lt.s32.totalorder %s39, 0
          %s510 = scalar_select %p509, %s39, 0
          %s511 = sadd.s32 %s510, %s508
          %s512 = smul.addr %s511, 8
          %s513 = scalar_lea.vmem %s0, %s512
        $region68: #{tpu_custom_call.1} parent=63 // pred_fallthru
          _
        // Predicated region
        $region69: #{tpu_custom_call.1} parent=63 // pred_check
          %p514 = pneg %p91
        $region70: #{tpu_custom_call.1} parent=63 // pred_check_branch
          %516 = sbr.rel (%p514) target = $region72
        $region71: #{tpu_custom_call.1} parent=63 // pred_region
          %p517 = scmp.lt.s32.totalorder %s38, 1
          %s518 = scalar_select %p517, %s38, 1
          %s519 = smul.addr %s518, 8
          %s520 = scalar_lea.vmem %s1, %s519
        $region72: #{tpu_custom_call.1} parent=63 // pred_fallthru
          _
      $region64: #{tpu_custom_call.1} parent=5 // pred_fallthru
        _
      %p521 = scmp.le.s32.totalorder 1, %s31
      %p522 = scmp.lt.s32.totalorder %s31, 3
      %p523 = pnand %p521, %p522
      %p524 = pneg %p523
      // Predicated region
      $region73: #{tpu_custom_call.1} parent=5 // pred_check
        _
      $region74: #{tpu_custom_call.1} parent=5 // pred_check_branch
        %526 = sbr.rel (%p523) target = $region76
      $region75: #{tpu_custom_call.1} parent=5 // pred_region
        %s527 = ssub.s32 %s31, 1
        // Predicated region
        $region77: #{tpu_custom_call.1} parent=75 // pred_check
          %p528 = pneg %p139
        $region78: #{tpu_custom_call.1} parent=75 // pred_check_branch
          %530 = sbr.rel (%p528) target = $region80
        $region79: #{tpu_custom_call.1} parent=75 // pred_region
          %532 = dma.done [#allocation5], 256
        $region80: #{tpu_custom_call.1} parent=75 // pred_fallthru
          _
        // Predicated region
        $region81: #{tpu_custom_call.1} parent=75 // pred_check
          %p533 = pneg %p160
        $region82: #{tpu_custom_call.1} parent=75 // pred_check_branch
          %535 = sbr.rel (%p533) target = $region84
        $region83: #{tpu_custom_call.1} parent=75 // pred_region
          %537 = dma.done [#allocation8], 256
        $region84: #{tpu_custom_call.1} parent=75 // pred_fallthru
          _
        // Predicated region
        $region85: #{tpu_custom_call.1} parent=75 // pred_check
          %p538 = pneg %p181
        $region86: #{tpu_custom_call.1} parent=75 // pred_check_branch
          %540 = sbr.rel (%p538) target = $region88
        $region87: #{tpu_custom_call.1} parent=75 // pred_region
          %542 = dma.done [#allocation8], 256
        $region88: #{tpu_custom_call.1} parent=75 // pred_fallthru
          _
        // Predicated region
        $region89: #{tpu_custom_call.1} parent=75 // pred_check
          %p543 = pneg %p244
        $region90: #{tpu_custom_call.1} parent=75 // pred_check_branch
          %545 = sbr.rel (%p543) target = $region92
        $region91: #{tpu_custom_call.1} parent=75 // pred_region
          %547 = dma.done [#allocation11], 256
        $region92: #{tpu_custom_call.1} parent=75 // pred_fallthru
          _
        %p548 = scmp.lt.s32.totalorder %s40, 1
        %s549 = scalar_select %p548, %s40, 1
        %p550 = scmp.lt.s32.totalorder %s41, 0
        %s551 = scalar_select %p550, %s41, 0
        %s552 = sadd.s32 %s551, %s549
        %s553 = smul.addr %s552, 8
        %s554 = scalar_lea.vmem %s0, %s553
        %p555 = pneg %p71
        %p556 = pneg %p68
        %p557 = scmp.lt.s32.totalorder %s40, 1
        %s558 = scalar_select %p557, %s40, 1
        %s559 = smul.addr %s558, 8
        %s560 = scalar_lea.vmem %s1, %s559
        %p561 = pneg %p97
        %p562 = pneg %p94
        %p563 = pneg %p118
        %p564 = pneg %p115
        %p565 = pneg %p139
        %p566 = pneg %p136
        %p567 = pneg %p160
        %p568 = pneg %p157
        %p569 = pneg %p181
        %p570 = pneg %p178
        %p571 = pneg %p202
        %p572 = pneg %p199
        %p573 = pneg %p223
        %p574 = pneg %p220
        %p575 = pneg %p244
        %p576 = pneg %p241
        %p577 = pneg %p265
        %p578 = pneg %p262
        %p579 = pneg %p286
        %p580 = pneg %p283
        %p581 = pneg %p307
        %p582 = pneg %p304
        %p583 = pneg %p328
        %p584 = pneg %p325
        %p585 = pneg %p349
        %p586 = pneg %p346
        %p587 = pneg %p377
        %p588 = pneg %p374
        %s589 = sand.u32 %s364, 1
        %s590 = scalar_lea.sflag [#allocation6], %s589
        %s591 = sand.u32 %s364, 1
        %s592 = smul.addr %s591, 8
        %s593 = scalar_lea.vmem [#allocation12], %s592
        %p594 = pneg %p405
        %p595 = pneg %p402
        %s596 = sand.u32 %s392, 1
        %s597 = scalar_lea.sflag [#allocation14], %s596
        %s598 = sand.u32 %s392, 1
        %s599 = smul.addr %s598, 32
        %s600 = scalar_lea.vmem [#allocation13], %s599
        %p601 = scmp.lt.s32.totalorder %s40, 1
        %s602 = scalar_select %p601, %s40, 1
        %p603 = scmp.lt.s32.totalorder %s41, 0
        %s604 = scalar_select %p603, %s41, 0
        %s605 = sadd.s32 %s604, %s602
        %s606 = smul.addr %s605, 8
        %s607 = scalar_lea.vmem %s0, %s606
        %p608 = scmp.lt.s32.totalorder %s40, 1
        %s609 = scalar_select %p608, %s40, 1
        %s610 = smul.addr %s609, 8
        %s611 = scalar_lea.vmem %s1, %s610
        %p613 = scmp.eq.s32.totalorder %s41, 0
        // Predicated region
        $region93: #{tpu_custom_call.1} parent=75 // pred_check
          %p614 = pneg %p613
        $region94: #{tpu_custom_call.1} parent=75 // pred_check_branch
          %616 = sbr.rel (%p614) target = $region96
        $region95: #{tpu_custom_call.1} parent=75 // pred_region
          %v617 = vld [vmem:[%s611] sm:$0xff]
          %v618 = vpack.c.bf16 %v617, %v617
          %v619 = vld [vmem:[#allocation4] sm:$0xf]
          %v620 = vld [vmem:[#allocation4 + $0x4] sm:$0xf]
          %v621 = vld [vmem:[#allocation4 + $0x8] sm:$0xf]
          %v622 = vld [vmem:[#allocation4 + $0xc] sm:$0xf]
          %v627 = vunpack.c.l.b16 %v619
          %v628 = vunpack.c.l.b16 %v620
          %v629 = vunpack.c.l.b16 %v621
          %v630 = vunpack.c.l.b16 %v622
          %v631 = vpack.c.b16 %v628, %v627
          %v632 = vpack.c.b16 %v630, %v629
          %vm635 = vcmask 261120
          %v637 = vsel %vm635, %v618, 0
          %639 = vmatpush.bf16.msra.mxu0 0
          %640 = vmatpush.bf16.msra.mxu0 0
          %641 = vmatpush.bf16.msra.mxu0 0
          %642 = vmatpush.bf16.msra.mxu0 0
          %643 = vmatpush.bf16.msra.mxu0 0
          %644 = vmatpush.bf16.msra.mxu0 0
          %645 = vmatpush.bf16.msra.mxu0 %v632
          %646 = vmatpush.bf16.msra.mxu0 %v631
          %647 = vmatmul.bf16.gmra.mxu0 %v637
          %v648 = vpop.f32.mrf.mxu0
          %v649 = vadd.f32 0.0, %v648
          %v650 = vpop.f32.mrf.mxu0
          %651 = vdwg.mxu0
          %v652 = vld [vmem:[#allocation7] sm:$0xf]
          %v653 = vld [vmem:[#allocation7 + $0x4] sm:$0xf]
          %v654 = vld [vmem:[#allocation7 + $0x8] sm:$0xf]
          %v655 = vld [vmem:[#allocation7 + $0xc] sm:$0xf]
          %v660 = vunpack.c.l.b16 %v652
          %v661 = vunpack.c.l.b16 %v653
          %v662 = vunpack.c.l.b16 %v654
          %v663 = vunpack.c.l.b16 %v655
          %v664 = vpack.c.b16 %v661, %v660
          %v665 = vpack.c.b16 %v663, %v662
          %668 = vmatpush.bf16.msra.mxu0 0
          %669 = vmatpush.bf16.msra.mxu0 0
          %670 = vmatpush.bf16.msra.mxu0 0
          %671 = vmatpush.bf16.msra.mxu0 0
          %672 = vmatpush.bf16.msra.mxu0 0
          %673 = vmatpush.bf16.msra.mxu0 0
          %674 = vmatpush.bf16.msra.mxu0 %v665
          %675 = vmatpush.bf16.msra.mxu0 %v664
          %676 = vmatmul.bf16.gmra.mxu0 %v637
          %v677 = vpop.f32.mrf.mxu0
          %v678 = vadd.f32 0.0, %v677
          %v679 = vpop.f32.mrf.mxu0
          %680 = vdwg.mxu0
          %v681 = vpack.c.bf16 %v649, %v649
          %683 = vrot.lane.b32.xlu0 %v681, 120
          %v684 = vpop.permute.xlu0 %683
          %685 = vrot.lane.b32.xlu0 %v681, 112
          %v686 = vpop.permute.xlu0 %685
          %687 = vrot.lane.b32.xlu0 %v681, 104
          %v688 = vpop.permute.xlu0 %687
          %v691 = vpack.i.b16 %v684, %v681
          %v692 = vshrl.u32 %v681, 16
          %v693 = vshrl.u32 %v684, 16
          %v694 = vpack.i.b16 %v693, %v692
          %v697 = vpack.i.b16 %v688, %v686
          %v698 = vshrl.u32 %v686, 16
          %v699 = vshrl.u32 %v688, 16
          %v700 = vpack.i.b16 %v699, %v698
          %v703 = vunpack.c.l.s4 1983009808
          %v704 = vunpack.c.0.s8 %v703
          %v705 = vperm.slane %v691, %v704
          %v708 = vunpack.c.l.s4 1983009808
          %v709 = vunpack.c.0.s8 %v708
          %v710 = vperm.slane %v697, %v709
          %v711 = vrot.slane %v710, 4
          %vm712 = vcmask 1047556
          %v713 = vsel %vm712, %v711, %v705
          %v714 = vrot.slane %v705, 4
          %v715 = vsel %vm712, %v710, %v714
          %v717 = vunpack.c.l.s4 1934713408
          %v718 = vunpack.c.0.s8 %v717
          %v719 = vperm.slane %v713, %v718
          %v721 = vunpack.c.l.s4 1934713408
          %v722 = vunpack.c.0.s8 %v721
          %v723 = vperm.slane %v715, %v722
          %v724 = vrot.slane %v719, 4
          %v725 = vsel %vm712, 0, %v724
          %v726 = vrot.slane %v723, 4
          %v727 = vsel %vm712, 0, %v726
          %v730 = vunpack.c.l.s4 1983009808
          %v731 = vunpack.c.0.s8 %v730
          %v732 = vperm.slane %v694, %v731
          %v735 = vunpack.c.l.s4 1983009808
          %v736 = vunpack.c.0.s8 %v735
          %v737 = vperm.slane %v700, %v736
          %v738 = vrot.slane %v737, 4
          %v739 = vsel %vm712, %v738, %v732
          %v740 = vrot.slane %v732, 4
          %v741 = vsel %vm712, %v737, %v740
          %v743 = vunpack.c.l.s4 1934713408
          %v744 = vunpack.c.0.s8 %v743
          %v745 = vperm.slane %v739, %v744
          %v747 = vunpack.c.l.s4 1934713408
          %v748 = vunpack.c.0.s8 %v747
          %v749 = vperm.slane %v741, %v748
          %v750 = vrot.slane %v745, 4
          %v751 = vsel %vm712, 0, %v750
          %v752 = vrot.slane %v749, 4
          %v753 = vsel %vm712, 0, %v752
          %v754 = vpack.c.bf16 %v678, %v678
          %756 = vrot.lane.b32.xlu0 %v754, 120
          %v757 = vpop.permute.xlu0 %756
          %758 = vrot.lane.b32.xlu0 %v754, 112
          %v759 = vpop.permute.xlu0 %758
          %760 = vrot.lane.b32.xlu0 %v754, 104
          %v761 = vpop.permute.xlu0 %760
          %v764 = vpack.i.b16 %v757, %v754
          %v765 = vshrl.u32 %v754, 16
          %v766 = vshrl.u32 %v757, 16
          %v767 = vpack.i.b16 %v766, %v765
          %v770 = vpack.i.b16 %v761, %v759
          %v771 = vshrl.u32 %v759, 16
          %v772 = vshrl.u32 %v761, 16
          %v773 = vpack.i.b16 %v772, %v771
          %v776 = vunpack.c.l.s4 1983009808
          %v777 = vunpack.c.0.s8 %v776
          %v778 = vperm.slane %v764, %v777
          %v781 = vunpack.c.l.s4 1983009808
          %v782 = vunpack.c.0.s8 %v781
          %v783 = vperm.slane %v770, %v782
          %v784 = vrot.slane %v783, 4
          %v785 = vsel %vm712, %v784, %v778
          %v786 = vrot.slane %v778, 4
          %v787 = vsel %vm712, %v783, %v786
          %v789 = vunpack.c.l.s4 1934713408
          %v790 = vunpack.c.0.s8 %v789
          %v791 = vperm.slane %v785, %v790
          %v793 = vunpack.c.l.s4 1934713408
          %v794 = vunpack.c.0.s8 %v793
          %v795 = vperm.slane %v787, %v794
          %v796 = vrot.slane %v791, 4
          %v797 = vsel %vm712, 0, %v796
          %v798 = vrot.slane %v795, 4
          %v799 = vsel %vm712, 0, %v798
          %v802 = vunpack.c.l.s4 1983009808
          %v803 = vunpack.c.0.s8 %v802
          %v804 = vperm.slane %v767, %v803
          %v807 = vunpack.c.l.s4 1983009808
          %v808 = vunpack.c.0.s8 %v807
          %v809 = vperm.slane %v773, %v808
          %v810 = vrot.slane %v809, 4
          %v811 = vsel %vm712, %v810, %v804
          %v812 = vrot.slane %v804, 4
          %v813 = vsel %vm712, %v809, %v812
          %v815 = vunpack.c.l.s4 1934713408
          %v816 = vunpack.c.0.s8 %v815
          %v817 = vperm.slane %v811, %v816
          %v819 = vunpack.c.l.s4 1934713408
          %v820 = vunpack.c.0.s8 %v819
          %v821 = vperm.slane %v813, %v820
          %v822 = vrot.slane %v817, 4
          %v823 = vsel %vm712, 0, %v822
          %v824 = vrot.slane %v821, 4
          %v825 = vsel %vm712, 0, %v824
          %v826 = vsel %vm712, %v726, %v719
          %v828 = vunpack.c.l.s4 1983009808
          %v829 = vunpack.c.0.s8 %v828
          %v830 = vperm.slane %v826, %v829
          %v831 = vrot.slane %v727, 4
          %v832 = vsel %vm712, %v831, %v725
          %v834 = vunpack.c.l.s4 1983009808
          %v835 = vunpack.c.0.s8 %v834
          %v836 = vperm.slane %v832, %v835
          %v837 = vrot.slane %v836, 4
          %v838 = vsel %vm712, %v837, %v830
          %v840 = vunpack.c.l.s4 1934713408
          %v841 = vunpack.c.0.s8 %v840
          %v842 = vperm.slane %v838, %v841
          %v843 = vrot.slane %v842, 4
          %v844 = vsel %vm712, 0, %v843
          %v845 = vsel %vm712, %v752, %v745
          %v847 = vunpack.c.l.s4 1983009808
          %v848 = vunpack.c.0.s8 %v847
          %v849 = vperm.slane %v845, %v848
          %v850 = vrot.slane %v753, 4
          %v851 = vsel %vm712, %v850, %v751
          %v853 = vunpack.c.l.s4 1983009808
          %v854 = vunpack.c.0.s8 %v853
          %v855 = vperm.slane %v851, %v854
          %v856 = vrot.slane %v855, 4
          %v857 = vsel %vm712, %v856, %v849
          %v859 = vunpack.c.l.s4 1934713408
          %v860 = vunpack.c.0.s8 %v859
          %v861 = vperm.slane %v857, %v860
          %v862 = vrot.slane %v861, 4
          %v863 = vsel %vm712, 0, %v862
          %v866 = vpack.i.b16 %v861, %v842
          %v868 = vshrl.u32 %v842, 16
          %v869 = vshrl.u32 %v861, 16
          %v870 = vpack.i.b16 %v869, %v868
          %v874 = vpack.i.b16 %v863, %v844
          %v876 = vshrl.u32 %v844, 16
          %v877 = vshrl.u32 %v863, 16
          %v878 = vpack.i.b16 %v877, %v876
          %vm880 = vcmask 60416
          %881 = vst.msk [vmem:[#allocation2] sm:$0xf] %vm880, %v866
          %882 = vst.msk [vmem:[#allocation2 + $0x4] sm:$0xf] %vm880, %v870
          %883 = vst.msk [vmem:[#allocation2 + $0x8] sm:$0xf] %vm880, %v874
          %884 = vst.msk [vmem:[#allocation2 + $0xc] sm:$0xf] %vm880, %v878
          %v885 = vsel %vm712, %v798, %v791
          %v887 = vunpack.c.l.s4 1983009808
          %v888 = vunpack.c.0.s8 %v887
          %v889 = vperm.slane %v885, %v888
          %v890 = vrot.slane %v799, 4
          %v891 = vsel %vm712, %v890, %v797
          %v893 = vunpack.c.l.s4 1983009808
          %v894 = vunpack.c.0.s8 %v893
          %v895 = vperm.slane %v891, %v894
          %v896 = vrot.slane %v895, 4
          %v897 = vsel %vm712, %v896, %v889
          %v899 = vunpack.c.l.s4 1934713408
          %v900 = vunpack.c.0.s8 %v899
          %v901 = vperm.slane %v897, %v900
          %v902 = vrot.slane %v901, 4
          %v903 = vsel %vm712, 0, %v902
          %v904 = vsel %vm712, %v824, %v817
          %v906 = vunpack.c.l.s4 1983009808
          %v907 = vunpack.c.0.s8 %v906
          %v908 = vperm.slane %v904, %v907
          %v909 = vrot.slane %v825, 4
          %v910 = vsel %vm712, %v909, %v823
          %v912 = vunpack.c.l.s4 1983009808
          %v913 = vunpack.c.0.s8 %v912
          %v914 = vperm.slane %v910, %v913
          %v915 = vrot.slane %v914, 4
          %v916 = vsel %vm712, %v915, %v908
          %v918 = vunpack.c.l.s4 1934713408
          %v919 = vunpack.c.0.s8 %v918
          %v920 = vperm.slane %v916, %v919
          %v921 = vrot.slane %v920, 4
          %v922 = vsel %vm712, 0, %v921
          %v925 = vpack.i.b16 %v920, %v901
          %v927 = vshrl.u32 %v901, 16
          %v928 = vshrl.u32 %v920, 16
          %v929 = vpack.i.b16 %v928, %v927
          %v933 = vpack.i.b16 %v922, %v903
          %v935 = vshrl.u32 %v903, 16
          %v936 = vshrl.u32 %v922, 16
          %v937 = vpack.i.b16 %v936, %v935
          %939 = vst.msk [vmem:[#allocation3] sm:$0xf] %vm880, %v925
          %940 = vst.msk [vmem:[#allocation3 + $0x4] sm:$0xf] %vm880, %v929
          %941 = vst.msk [vmem:[#allocation3 + $0x8] sm:$0xf] %vm880, %v933
          %942 = vst.msk [vmem:[#allocation3 + $0xc] sm:$0xf] %vm880, %v937
        $region96: #{tpu_custom_call.1} parent=75 // pred_fallthru
          _
        %v943 = vld [vmem:[%s607] sm:$0xff]
        %v944 = vpack.c.bf16 %v943, %v943
        %v945 = vld [vmem:[%s2] sm:$0xf]
        %v946 = vld [vmem:[%s2 + $0x4] sm:$0xf]
        %v947 = vld [vmem:[%s2 + $0x8] sm:$0xf]
        %v948 = vld [vmem:[%s2 + $0xc] sm:$0xf]
        %v953 = vunpack.c.l.b16 %v945
        %v954 = vunpack.c.l.b16 %v946
        %v955 = vunpack.c.l.b16 %v947
        %v956 = vunpack.c.l.b16 %v948
        %v957 = vpack.c.b16 %v954, %v953
        %v958 = vpack.c.b16 %v956, %v955
        %vm961 = vcmask 261120
        %v963 = vsel %vm961, %v944, 0
        %965 = vmatpush.bf16.msra.mxu0 0
        %966 = vmatpush.bf16.msra.mxu0 0
        %967 = vmatpush.bf16.msra.mxu0 0
        %968 = vmatpush.bf16.msra.mxu0 0
        %969 = vmatpush.bf16.msra.mxu0 0
        %970 = vmatpush.bf16.msra.mxu0 0
        %971 = vmatpush.bf16.msra.mxu0 %v958
        %972 = vmatpush.bf16.msra.mxu0 %v957
        %973 = vmatmul.bf16.gmra.mxu0 %v963
        %v974 = vpop.f32.mrf.mxu0
        %v975 = vadd.f32 0.0, %v974
        %v976 = vpop.f32.mrf.mxu0
        %977 = vdwg.mxu0
        %979 = vrot.lane.b32.xlu0 %v975, 120
        %v980 = vpop.permute.xlu0 %979
        %982 = vrot.lane.b32.xlu0 %v975, 112
        %v983 = vpop.permute.xlu0 %982
        %985 = vrot.lane.b32.xlu0 %v975, 104
        %v986 = vpop.permute.xlu0 %985
        %v988 = vrot.slane %v983, 4
        %vm989 = vcmask 1047556
        %v990 = vsel %vm989, %v988, %v975
        %v991 = vrot.slane %v975, 4
        %v992 = vsel %vm989, %v983, %v991
        %v994 = vunpack.c.l.s4 1983009808
        %v995 = vunpack.c.0.s8 %v994
        %v996 = vperm.slane %v990, %v995
        %v998 = vunpack.c.l.s4 1983009808
        %v999 = vunpack.c.0.s8 %v998
        %v1000 = vperm.slane %v992, %v999
        %v1001 = vrot.slane %v986, 4
        %v1002 = vsel %vm989, %v1001, %v980
        %v1003 = vrot.slane %v980, 4
        %v1004 = vsel %vm989, %v986, %v1003
        %v1006 = vunpack.c.l.s4 1983009808
        %v1007 = vunpack.c.0.s8 %v1006
        %v1008 = vperm.slane %v1002, %v1007
        %v1010 = vunpack.c.l.s4 1983009808
        %v1011 = vunpack.c.0.s8 %v1010
        %v1012 = vperm.slane %v1004, %v1011
        %v1013 = vrot.slane %v1008, 4
        %v1014 = vsel %vm989, %v1013, %v996
        %v1015 = vrot.slane %v996, 4
        %v1016 = vsel %vm989, %v1008, %v1015
        %v1018 = vunpack.c.l.s4 1934713408
        %v1019 = vunpack.c.0.s8 %v1018
        %v1020 = vperm.slane %v1014, %v1019
        %v1022 = vunpack.c.l.s4 1934713408
        %v1023 = vunpack.c.0.s8 %v1022
        %v1024 = vperm.slane %v1016, %v1023
        %v1025 = vrot.slane %v1012, 4
        %v1026 = vsel %vm989, %v1025, %v1000
        %v1027 = vrot.slane %v1000, 4
        %v1028 = vsel %vm989, %v1012, %v1027
        %v1030 = vunpack.c.l.s4 1934713408
        %v1031 = vunpack.c.0.s8 %v1030
        %v1032 = vperm.slane %v1026, %v1031
        %v1034 = vunpack.c.l.s4 1934713408
        %v1035 = vunpack.c.0.s8 %v1034
        %v1036 = vperm.slane %v1028, %v1035
        %v1037 = vrot.slane %v1020, 4
        %v1038 = vsel %vm989, 0.0, %v1037
        %v1039 = vrot.slane %v1024, 4
        %v1040 = vsel %vm989, 0.0, %v1039
        %v1041 = vrot.slane %v1032, 4
        %v1042 = vsel %vm989, 0.0, %v1041
        %v1043 = vrot.slane %v1036, 4
        %v1044 = vsel %vm989, 0.0, %v1043
        %v1045 = vsel %vm989, %v1039, %v1020
        %v1047 = vunpack.c.l.s4 1983009808
        %v1048 = vunpack.c.0.s8 %v1047
        %v1049 = vperm.slane %v1045, %v1048
        %v1050 = vrot.slane %v1040, 4
        %v1051 = vsel %vm989, %v1050, %v1038
        %v1053 = vunpack.c.l.s4 1983009808
        %v1054 = vunpack.c.0.s8 %v1053
        %v1055 = vperm.slane %v1051, %v1054
        %v1056 = vsel %vm989, %v1043, %v1032
        %v1058 = vunpack.c.l.s4 1983009808
        %v1059 = vunpack.c.0.s8 %v1058
        %v1060 = vperm.slane %v1056, %v1059
        %v1061 = vrot.slane %v1044, 4
        %v1062 = vsel %vm989, %v1061, %v1042
        %v1064 = vunpack.c.l.s4 1983009808
        %v1065 = vunpack.c.0.s8 %v1064
        %v1066 = vperm.slane %v1062, %v1065
        %v1067 = vrot.slane %v1055, 4
        %v1068 = vsel %vm989, %v1067, %v1049
        %v1069 = vrot.slane %v1049, 4
        %v1070 = vsel %vm989, %v1055, %v1069
        %v1072 = vunpack.c.l.s4 1934713408
        %v1073 = vunpack.c.0.s8 %v1072
        %v1074 = vperm.slane %v1068, %v1073
        %v1076 = vunpack.c.l.s4 1934713408
        %v1077 = vunpack.c.0.s8 %v1076
        %v1078 = vperm.slane %v1070, %v1077
        %v1079 = vrot.slane %v1066, 4
        %v1080 = vsel %vm989, %v1079, %v1060
        %v1081 = vrot.slane %v1060, 4
        %v1082 = vsel %vm989, %v1066, %v1081
        %v1084 = vunpack.c.l.s4 1934713408
        %v1085 = vunpack.c.0.s8 %v1084
        %v1086 = vperm.slane %v1080, %v1085
        %v1088 = vunpack.c.l.s4 1934713408
        %v1089 = vunpack.c.0.s8 %v1088
        %v1090 = vperm.slane %v1082, %v1089
        %v1091 = vrot.slane %v1086, 4
        %v1092 = vsel %vm989, %v1091, %v1074
        %v1093 = vrot.slane %v1074, 4
        %v1094 = vsel %vm989, %v1086, %v1093
        %v1095 = vrot.slane %v1090, 4
        %v1096 = vsel %vm989, %v1095, %v1078
        %v1097 = vrot.slane %v1078, 4
        %v1098 = vsel %vm989, %v1090, %v1097
        %v1099 = vpack.c.bf16 %v1092, %v1092
        %v1100 = vpack.c.bf16 %v1094, %v1094
        %v1101 = vpack.c.bf16 %v1096, %v1096
        %v1102 = vpack.c.bf16 %v1098, %v1098
        %v1103 = vld [vmem:[#allocation2] sm:$0xf]
        %v1104 = vld [vmem:[#allocation2 + $0x4] sm:$0xf]
        %v1105 = vld [vmem:[#allocation2 + $0x8] sm:$0xf]
        %v1106 = vld [vmem:[#allocation2 + $0xc] sm:$0xf]
        %vm1107 = vcmask 64512
        %v1109 = vsel %vm1107, %v1099, 0
        %v1112 = vsel %vm1107, %v1103, 0
        %1114 = vmatpush.bf16.xpose.msra.mxu0 0
        %1115 = vmatpush.bf16.xpose.msra.mxu0 0
        %1116 = vmatpush.bf16.xpose.msra.mxu0 0
        %1117 = vmatpush.bf16.xpose.msra.mxu0 0
        %1118 = vmatpush.bf16.xpose.msra.mxu0 0
        %1119 = vmatpush.bf16.xpose.msra.mxu0 0
        %1120 = vmatpush.bf16.xpose.msra.mxu0 0
        %1121 = vmatpush.bf16.xpose.msra.mxu0 %v1112
        %1122 = vmatmul.bf16.gmra.mxu0 %v1109
        %v1123 = vpop.f32.mrf.mxu0
        %v1124 = vadd.f32 0.0, %v1123
        %v1125 = vpop.f32.mrf.mxu0
        %1126 = vdwg.mxu0
        %v1128 = vsel %vm1107, %v1100, 0
        %v1131 = vsel %vm1107, %v1104, 0
        %1133 = vmatpush.bf16.xpose.msra.mxu0 0
        %1134 = vmatpush.bf16.xpose.msra.mxu0 0
        %1135 = vmatpush.bf16.xpose.msra.mxu0 0
        %1136 = vmatpush.bf16.xpose.msra.mxu0 0
        %1137 = vmatpush.bf16.xpose.msra.mxu0 0
        %1138 = vmatpush.bf16.xpose.msra.mxu0 0
        %1139 = vmatpush.bf16.xpose.msra.mxu0 0
        %1140 = vmatpush.bf16.xpose.msra.mxu0 %v1131
        %1141 = vmatmul.bf16.gmra.mxu0 %v1128
        %v1142 = vpop.f32.mrf.mxu0
        %v1143 = vadd.f32 0.0, %v1142
        %v1144 = vpop.f32.mrf.mxu0
        %1145 = vdwg.mxu0
        %v1147 = vsel %vm1107, %v1101, 0
        %v1150 = vsel %vm1107, %v1105, 0
        %1152 = vmatpush.bf16.xpose.msra.mxu0 0
        %1153 = vmatpush.bf16.xpose.msra.mxu0 0
        %1154 = vmatpush.bf16.xpose.msra.mxu0 0
        %1155 = vmatpush.bf16.xpose.msra.mxu0 0
        %1156 = vmatpush.bf16.xpose.msra.mxu0 0
        %1157 = vmatpush.bf16.xpose.msra.mxu0 0
        %1158 = vmatpush.bf16.xpose.msra.mxu0 0
        %1159 = vmatpush.bf16.xpose.msra.mxu0 %v1150
        %1160 = vmatmul.bf16.gmra.mxu0 %v1147
        %v1161 = vpop.f32.mrf.mxu0
        %v1162 = vadd.f32 0.0, %v1161
        %v1163 = vpop.f32.mrf.mxu0
        %1164 = vdwg.mxu0
        %v1166 = vsel %vm1107, %v1102, 0
        %v1169 = vsel %vm1107, %v1106, 0
        %1171 = vmatpush.bf16.xpose.msra.mxu0 0
        %1172 = vmatpush.bf16.xpose.msra.mxu0 0
        %1173 = vmatpush.bf16.xpose.msra.mxu0 0
        %1174 = vmatpush.bf16.xpose.msra.mxu0 0
        %1175 = vmatpush.bf16.xpose.msra.mxu0 0
        %1176 = vmatpush.bf16.xpose.msra.mxu0 0
        %1177 = vmatpush.bf16.xpose.msra.mxu0 0
        %1178 = vmatpush.bf16.xpose.msra.mxu0 %v1169
        %1179 = vmatmul.bf16.gmra.mxu0 %v1166
        %v1180 = vpop.f32.mrf.mxu0
        %v1181 = vadd.f32 0.0, %v1180
        %v1182 = vpop.f32.mrf.mxu0
        %1183 = vdwg.mxu0
        %v1184 = vsel %vm1107, %v1124, -inf
        %1185 = vmax.xlane.f32.xlu0 %v1184
        %v1186 = vpop.xlane.xlu0 %1185
        %v1187 = vsel %vm1107, %v1143, -inf
        %1188 = vmax.xlane.f32.xlu0 %v1187
        %v1189 = vpop.xlane.xlu0 %1188
        %v1190 = vsel %vm1107, %v1162, -inf
        %1191 = vmax.xlane.f32.xlu0 %v1190
        %v1192 = vpop.xlane.xlu0 %1191
        %v1193 = vsel %vm1107, %v1181, -inf
        %1194 = vmax.xlane.f32.xlu0 %v1193
        %v1195 = vpop.xlane.xlu0 %1194
        %v1196 = vsub.f32 %v1124, %v1186
        %v1197 = vsub.f32 %v1143, %v1189
        %v1198 = vsub.f32 %v1162, %v1192
        %v1199 = vsub.f32 %v1181, %v1195
        %v1200 = vmul.f32 %v1196, 1.442695
        %v1201 = vpow.pop %v1200
        %v1202 = vmul.f32 %v1197, 1.442695
        %v1203 = vpow.pop %v1202
        %v1204 = vmul.f32 %v1198, 1.442695
        %v1205 = vpow.pop %v1204
        %v1206 = vmul.f32 %v1199, 1.442695
        %v1207 = vpow.pop %v1206
        %v1208 = vsel %vm1107, %v1201, 0.0
        %1209 = vadd.xlane.f32.xlu0 %v1208
        %v1210 = vpop.xlane.xlu0 %1209
        %v1211 = vsel %vm1107, %v1203, 0.0
        %1212 = vadd.xlane.f32.xlu0 %v1211
        %v1213 = vpop.xlane.xlu0 %1212
        %v1214 = vsel %vm1107, %v1205, 0.0
        %1215 = vadd.xlane.f32.xlu0 %v1214
        %v1216 = vpop.xlane.xlu0 %1215
        %v1217 = vsel %vm1107, %v1207, 0.0
        %1218 = vadd.xlane.f32.xlu0 %v1217
        %v1219 = vpop.xlane.xlu0 %1218
        %v1220 = vrcp.pop %v1210
        %v1221 = vrcp.pop %v1213
        %v1222 = vrcp.pop %v1216
        %v1223 = vrcp.pop %v1219
        %v1224 = vmul.f32 %v1201, %v1220
        %v1225 = vmul.f32 %v1203, %v1221
        %v1226 = vmul.f32 %v1205, %v1222
        %v1227 = vmul.f32 %v1207, %v1223
        %1228 = vst.msk [vmem:[%s600] sm:$0xff] %vm1107, %v1224
        %1229 = vst.msk [vmem:[%s600 + $0x8] sm:$0xff] %vm1107, %v1225
        %1230 = vst.msk [vmem:[%s600 + $0x10] sm:$0xff] %vm1107, %v1226
        %1231 = vst.msk [vmem:[%s600 + $0x18] sm:$0xff] %vm1107, %v1227
        %v1232 = vpack.c.bf16 %v1224, %v1224
        %v1233 = vpack.c.bf16 %v1225, %v1225
        %v1234 = vpack.c.bf16 %v1226, %v1226
        %v1235 = vpack.c.bf16 %v1227, %v1227
        %v1236 = vld [vmem:[#allocation3] sm:$0xf]
        %v1237 = vld [vmem:[#allocation3 + $0x4] sm:$0xf]
        %v1238 = vld [vmem:[#allocation3 + $0x8] sm:$0xf]
        %v1239 = vld [vmem:[#allocation3 + $0xc] sm:$0xf]
        %v1241 = vsel %vm1107, %v1232, 0
        %vm1243 = vcmask 1043456
        %v1245 = vsel %vm1243, %v1236, 0
        %1247 = vmatpush.bf16.msra.mxu0 0
        %1248 = vmatpush.bf16.msra.mxu0 0
        %1249 = vmatpush.bf16.msra.mxu0 0
        %1250 = vmatpush.bf16.msra.mxu0 0
        %1251 = vmatpush.bf16.msra.mxu0 0
        %1252 = vmatpush.bf16.msra.mxu0 0
        %1253 = vmatpush.bf16.msra.mxu0 0
        %1254 = vmatpush.bf16.msra.mxu0 %v1245
        %1255 = vmatmul.bf16.gmra.mxu0 %v1241
        %v1256 = vpop.f32.mrf.mxu0
        %v1257 = vadd.f32 0.0, %v1256
        %v1258 = vpop.f32.mrf.mxu0
        %1259 = vdwg.mxu0
        %v1261 = vsel %vm1107, %v1233, 0
        %v1264 = vsel %vm1243, %v1237, 0
        %1266 = vmatpush.bf16.msra.mxu0 0
        %1267 = vmatpush.bf16.msra.mxu0 0
        %1268 = vmatpush.bf16.msra.mxu0 0
        %1269 = vmatpush.bf16.msra.mxu0 0
        %1270 = vmatpush.bf16.msra.mxu0 0
        %1271 = vmatpush.bf16.msra.mxu0 0
        %1272 = vmatpush.bf16.msra.mxu0 0
        %1273 = vmatpush.bf16.msra.mxu0 %v1264
        %1274 = vmatmul.bf16.gmra.mxu0 %v1261
        %v1275 = vpop.f32.mrf.mxu0
        %v1276 = vadd.f32 0.0, %v1275
        %v1277 = vpop.f32.mrf.mxu0
        %1278 = vdwg.mxu0
        %v1280 = vsel %vm1107, %v1234, 0
        %v1283 = vsel %vm1243, %v1238, 0
        %1285 = vmatpush.bf16.msra.mxu0 0
        %1286 = vmatpush.bf16.msra.mxu0 0
        %1287 = vmatpush.bf16.msra.mxu0 0
        %1288 = vmatpush.bf16.msra.mxu0 0
        %1289 = vmatpush.bf16.msra.mxu0 0
        %1290 = vmatpush.bf16.msra.mxu0 0
        %1291 = vmatpush.bf16.msra.mxu0 0
        %1292 = vmatpush.bf16.msra.mxu0 %v1283
        %1293 = vmatmul.bf16.gmra.mxu0 %v1280
        %v1294 = vpop.f32.mrf.mxu0
        %v1295 = vadd.f32 0.0, %v1294
        %v1296 = vpop.f32.mrf.mxu0
        %1297 = vdwg.mxu0
        %v1299 = vsel %vm1107, %v1235, 0
        %v1302 = vsel %vm1243, %v1239, 0
        %1304 = vmatpush.bf16.msra.mxu0 0
        %1305 = vmatpush.bf16.msra.mxu0 0
        %1306 = vmatpush.bf16.msra.mxu0 0
        %1307 = vmatpush.bf16.msra.mxu0 0
        %1308 = vmatpush.bf16.msra.mxu0 0
        %1309 = vmatpush.bf16.msra.mxu0 0
        %1310 = vmatpush.bf16.msra.mxu0 0
        %1311 = vmatpush.bf16.msra.mxu0 %v1302
        %1312 = vmatmul.bf16.gmra.mxu0 %v1299
        %v1313 = vpop.f32.mrf.mxu0
        %v1314 = vadd.f32 0.0, %v1313
        %v1315 = vpop.f32.mrf.mxu0
        %1316 = vdwg.mxu0
        %v1317 = vrot.slane %v1295, 4
        %v1318 = vsel %vm989, %v1317, %v1257
        %v1319 = vrot.slane %v1257, 4
        %v1320 = vsel %vm989, %v1295, %v1319
        %v1322 = vunpack.c.l.s4 1983009808
        %v1323 = vunpack.c.0.s8 %v1322
        %v1324 = vperm.slane %v1318, %v1323
        %v1326 = vunpack.c.l.s4 1983009808
        %v1327 = vunpack.c.0.s8 %v1326
        %v1328 = vperm.slane %v1320, %v1327
        %v1329 = vrot.slane %v1314, 4
        %v1330 = vsel %vm989, %v1329, %v1276
        %v1331 = vrot.slane %v1276, 4
        %v1332 = vsel %vm989, %v1314, %v1331
        %v1334 = vunpack.c.l.s4 1983009808
        %v1335 = vunpack.c.0.s8 %v1334
        %v1336 = vperm.slane %v1330, %v1335
        %v1338 = vunpack.c.l.s4 1983009808
        %v1339 = vunpack.c.0.s8 %v1338
        %v1340 = vperm.slane %v1332, %v1339
        %v1341 = vrot.slane %v1336, 4
        %v1342 = vsel %vm989, %v1341, %v1324
        %v1343 = vrot.slane %v1324, 4
        %v1344 = vsel %vm989, %v1336, %v1343
        %v1346 = vunpack.c.l.s4 1934713408
        %v1347 = vunpack.c.0.s8 %v1346
        %v1348 = vperm.slane %v1342, %v1347
        %v1350 = vunpack.c.l.s4 1934713408
        %v1351 = vunpack.c.0.s8 %v1350
        %v1352 = vperm.slane %v1344, %v1351
        %v1353 = vrot.slane %v1340, 4
        %v1354 = vsel %vm989, %v1353, %v1328
        %v1355 = vrot.slane %v1328, 4
        %v1356 = vsel %vm989, %v1340, %v1355
        %v1358 = vunpack.c.l.s4 1934713408
        %v1359 = vunpack.c.0.s8 %v1358
        %v1360 = vperm.slane %v1354, %v1359
        %v1362 = vunpack.c.l.s4 1934713408
        %v1363 = vunpack.c.0.s8 %v1362
        %v1364 = vperm.slane %v1356, %v1363
        %v1365 = vrot.slane %v1348, 4
        %v1366 = vsel %vm989, 0.0, %v1365
        %v1367 = vrot.slane %v1352, 4
        %v1368 = vsel %vm989, 0.0, %v1367
        %v1369 = vrot.slane %v1360, 4
        %v1370 = vsel %vm989, 0.0, %v1369
        %v1371 = vrot.slane %v1364, 4
        %v1372 = vsel %vm989, 0.0, %v1371
        %v1373 = vsel %vm989, %v1367, %v1348
        %v1375 = vunpack.c.l.s4 1983009808
        %v1376 = vunpack.c.0.s8 %v1375
        %v1377 = vperm.slane %v1373, %v1376
        %v1378 = vrot.slane %v1368, 4
        %v1379 = vsel %vm989, %v1378, %v1366
        %v1381 = vunpack.c.l.s4 1983009808
        %v1382 = vunpack.c.0.s8 %v1381
        %v1383 = vperm.slane %v1379, %v1382
        %v1384 = vsel %vm989, %v1371, %v1360
        %v1386 = vunpack.c.l.s4 1983009808
        %v1387 = vunpack.c.0.s8 %v1386
        %v1388 = vperm.slane %v1384, %v1387
        %v1389 = vrot.slane %v1372, 4
        %v1390 = vsel %vm989, %v1389, %v1370
        %v1392 = vunpack.c.l.s4 1983009808
        %v1393 = vunpack.c.0.s8 %v1392
        %v1394 = vperm.slane %v1390, %v1393
        %v1395 = vrot.slane %v1383, 4
        %v1396 = vsel %vm989, %v1395, %v1377
        %v1397 = vrot.slane %v1377, 4
        %v1398 = vsel %vm989, %v1383, %v1397
        %v1400 = vunpack.c.l.s4 1934713408
        %v1401 = vunpack.c.0.s8 %v1400
        %v1402 = vperm.slane %v1396, %v1401
        %v1404 = vunpack.c.l.s4 1934713408
        %v1405 = vunpack.c.0.s8 %v1404
        %v1406 = vperm.slane %v1398, %v1405
        %v1407 = vrot.slane %v1394, 4
        %v1408 = vsel %vm989, %v1407, %v1388
        %v1409 = vrot.slane %v1388, 4
        %v1410 = vsel %vm989, %v1394, %v1409
        %v1412 = vunpack.c.l.s4 1934713408
        %v1413 = vunpack.c.0.s8 %v1412
        %v1414 = vperm.slane %v1408, %v1413
        %v1416 = vunpack.c.l.s4 1934713408
        %v1417 = vunpack.c.0.s8 %v1416
        %v1418 = vperm.slane %v1410, %v1417
        %v1419 = vrot.slane %v1414, 4
        %v1420 = vsel %vm989, %v1419, %v1402
        %v1421 = vrot.slane %v1402, 4
        %v1422 = vsel %vm989, %v1414, %v1421
        %v1423 = vrot.slane %v1418, 4
        %v1424 = vsel %vm989, %v1423, %v1406
        %v1425 = vrot.slane %v1406, 4
        %v1426 = vsel %vm989, %v1418, %v1425
        %1428 = vrot.lane.b32.xlu0 %v1422, 8
        %v1429 = vpop.permute.xlu0 %1428
        %1432 = vrot.lane.b32.xlu0 %v1424, 16
        %v1433 = vpop.permute.xlu0 %1432
        %1436 = vrot.lane.b32.xlu0 %v1426, 24
        %v1437 = vpop.permute.xlu0 %1436
        %v1439 = vsel %vm1107, %v1420, %v1429
        %vm1440 = vcmask 130048
        %v1441 = vsel %vm1440, %v1439, %v1433
        %vm1442 = vcmask 195584
        %v1443 = vsel %vm1442, %v1441, %v1437
        %v1444 = vpack.c.bf16 %v1443, %v1443
        %v1445 = vld [vmem:[#allocation9] sm:$0xf]
        %v1446 = vld [vmem:[#allocation9 + $0x4] sm:$0xf]
        %v1447 = vld [vmem:[#allocation9 + $0x8] sm:$0xf]
        %v1448 = vld [vmem:[#allocation9 + $0xc] sm:$0xf]
        %v1453 = vunpack.c.l.b16 %v1445
        %v1454 = vunpack.c.l.b16 %v1446
        %v1455 = vunpack.c.l.b16 %v1447
        %v1456 = vunpack.c.l.b16 %v1448
        %v1457 = vpack.c.b16 %v1454, %v1453
        %v1458 = vpack.c.b16 %v1456, %v1455
        %v1462 = vsel %vm961, %v1444, 0
        %1464 = vmatpush.bf16.msra.mxu0 0
        %1465 = vmatpush.bf16.msra.mxu0 0
        %1466 = vmatpush.bf16.msra.mxu0 0
        %1467 = vmatpush.bf16.msra.mxu0 0
        %1468 = vmatpush.bf16.msra.mxu0 0
        %1469 = vmatpush.bf16.msra.mxu0 0
        %1470 = vmatpush.bf16.msra.mxu0 %v1458
        %1471 = vmatpush.bf16.msra.mxu0 %v1457
        %1472 = vmatmul.bf16.gmra.mxu0 %v1462
        %v1473 = vpop.f32.mrf.mxu0
        %v1474 = vadd.f32 %v943, %v1473
        %v1475 = vpop.f32.mrf.mxu0
        %1476 = vdwg.mxu0
        %v1477 = vld [vmem:[%s6] sm:$0x1]
        %v1478 = vld [vmem:[%s7] sm:$0x1]
        %v1479 = vsel %vm961, %v1474, 0.0
        %1480 = vadd.xlane.f32.xlu0 %v1479
        %v1481 = vpop.xlane.xlu0 %1480
        %v1482 = vrcp.pop 32.0
        %v1483 = vmul.f32 32.0, %v1482
        %v1484 = vsub.f32 1.0, %v1483
        %v1485 = vmul.f32 %v1482, %v1484
        %v1486 = vadd.f32 %v1482, %v1485
        %vm1487 = vweird.f32 %v1482
        %v1488 = vsel %vm1487, %v1482, %v1486
        %v1489 = vmul.f32 %v1481, %v1488
        %v1490 = vsub.f32 %v1474, %v1489
        %v1491 = vmul.f32 %v1490, %v1490
        %v1492 = vsel %vm961, %v1491, 0.0
        %1493 = vadd.xlane.f32.xlu0 %v1492
        %v1494 = vpop.xlane.xlu0 %1493
        %v1495 = vmul.f32 %v1494, %v1488
        %v1496 = vadd.f32 %v1495, 1e-06
        %v1497 = vrsqrt.pop %v1496
        %v1498 = vmul.f32 %v1497, %v1496
        %v1499 = vmul.f32 %v1498, %v1497
        %v1500 = vmul.f32 0.5, %v1499
        %v1501 = vsub.f32 1.5, %v1500
        %v1502 = vmul.f32 %v1497, %v1501
        %vm1503 = vweird.f32 %v1496
        %vm1504 = vweird.f32 %v1497
        %vm1505 = vmor %vm1503, %vm1504
        %v1506 = vsel %vm1505, %v1497, %v1502
        %v1507 = vmul.f32 %v1490, %v1506
        %v1509 = vperm.slane %v1477, 0
        %v1511 = vmul.f32 %v1507, %v1509
        %v1513 = vperm.slane %v1478, 0
        %v1515 = vadd.f32 %v1511, %v1513
        %v1516 = vpack.c.bf16 %v1515, %v1515
        %v1517 = vld [vmem:[#allocation10] sm:$0xf]
        %v1518 = vld [vmem:[#allocation10 + $0x4] sm:$0xf]
        %v1519 = vld [vmem:[#allocation10 + $0x8] sm:$0xf]
        %v1520 = vld [vmem:[#allocation10 + $0xc] sm:$0xf]
        %v1521 = vld [vmem:[%s9] sm:$0x1]
        %v1523 = vperm.slane %v1521, 0
        %v1529 = vunpack.c.l.b16 %v1517
        %v1530 = vunpack.c.l.b16 %v1518
        %v1531 = vunpack.c.l.b16 %v1519
        %v1532 = vunpack.c.l.b16 %v1520
        %v1533 = vpack.c.b16 %v1530, %v1529
        %v1534 = vpack.c.b16 %v1532, %v1531
        %v1538 = vsel %vm961, %v1516, 0
        %1540 = vmatpush.bf16.msra.mxu0 0
        %1541 = vmatpush.bf16.msra.mxu0 0
        %1542 = vmatpush.bf16.msra.mxu0 0
        %1543 = vmatpush.bf16.msra.mxu0 0
        %1544 = vmatpush.bf16.msra.mxu0 0
        %1545 = vmatpush.bf16.msra.mxu0 0
        %1546 = vmatpush.bf16.msra.mxu0 %v1534
        %1547 = vmatpush.bf16.msra.mxu0 %v1533
        %1548 = vmatmul.bf16.gmra.mxu0 %v1538
        %v1549 = vpop.f32.mrf.mxu0
        %v1550 = vadd.f32 %v1523, %v1549
        %v1551 = vpop.f32.mrf.mxu0
        %1552 = vdwg.mxu0
        %v1553 = vmax.f32 %v1550, 0.0
        %v1554 = vpack.c.bf16 %v1553, %v1553
        %v1555 = vld [vmem:[%s10] sm:$0xf]
        %v1556 = vld [vmem:[%s10 + $0x4] sm:$0xf]
        %v1557 = vld [vmem:[%s10 + $0x8] sm:$0xf]
        %v1558 = vld [vmem:[%s10 + $0xc] sm:$0xf]
        %v1559 = vld [vmem:[%s10 + $0x10] sm:$0xf]
        %v1560 = vld [vmem:[%s10 + $0x14] sm:$0xf]
        %v1561 = vld [vmem:[%s10 + $0x18] sm:$0xf]
        %v1562 = vld [vmem:[%s10 + $0x1c] sm:$0xf]
        %v1563 = vld [vmem:[%s11] sm:$0x1]
        %v1565 = vperm.slane %v1563, 0
        %v1575 = vunpack.c.l.b16 %v1555
        %v1576 = vunpack.c.l.b16 %v1556
        %v1577 = vunpack.c.l.b16 %v1557
        %v1578 = vunpack.c.l.b16 %v1558
        %v1579 = vunpack.c.l.b16 %v1559
        %v1580 = vunpack.c.l.b16 %v1560
        %v1581 = vunpack.c.l.b16 %v1561
        %v1582 = vunpack.c.l.b16 %v1562
        %v1583 = vpack.c.b16 %v1576, %v1575
        %v1584 = vpack.c.b16 %v1578, %v1577
        %v1585 = vpack.c.b16 %v1580, %v1579
        %v1586 = vpack.c.b16 %v1582, %v1581
        %vm1591 = vcmask 523264
        %v1593 = vsel %vm1591, %v1554, 0
        %1595 = vmatpush.bf16.msra.mxu0 0
        %1596 = vmatpush.bf16.msra.mxu0 0
        %1597 = vmatpush.bf16.msra.mxu0 0
        %1598 = vmatpush.bf16.msra.mxu0 0
        %1599 = vmatpush.bf16.msra.mxu0 %v1586
        %1600 = vmatpush.bf16.msra.mxu0 %v1585
        %1601 = vmatpush.bf16.msra.mxu0 %v1584
        %1602 = vmatpush.bf16.msra.mxu0 %v1583
        %1603 = vmatmul.bf16.gmra.mxu0 %v1593
        %v1604 = vpop.f32.mrf.mxu0
        %v1605 = vadd.f32 %v1565, %v1604
        %v1606 = vpop.f32.mrf.mxu0
        %1607 = vdwg.mxu0
        %v1608 = vadd.f32 %v1605, %v1515
        %v1609 = vld [vmem:[%s12] sm:$0x1]
        %v1610 = vld [vmem:[%s13] sm:$0x1]
        %v1611 = vsel %vm961, %v1608, 0.0
        %1612 = vadd.xlane.f32.xlu0 %v1611
        %v1613 = vpop.xlane.xlu0 %1612
        %v1614 = vmul.f32 %v1613, %v1488
        %v1615 = vsub.f32 %v1608, %v1614
        %v1616 = vmul.f32 %v1615, %v1615
        %v1617 = vsel %vm961, %v1616, 0.0
        %1618 = vadd.xlane.f32.xlu0 %v1617
        %v1619 = vpop.xlane.xlu0 %1618
        %v1620 = vmul.f32 %v1619, %v1488
        %v1621 = vadd.f32 %v1620, 1e-06
        %v1622 = vrsqrt.pop %v1621
        %v1623 = vmul.f32 %v1622, %v1621
        %v1624 = vmul.f32 %v1623, %v1622
        %v1625 = vmul.f32 0.5, %v1624
        %v1626 = vsub.f32 1.5, %v1625
        %v1627 = vmul.f32 %v1622, %v1626
        %vm1628 = vweird.f32 %v1621
        %vm1629 = vweird.f32 %v1622
        %vm1630 = vmor %vm1628, %vm1629
        %v1631 = vsel %vm1630, %v1622, %v1627
        %v1632 = vmul.f32 %v1615, %v1631
        %v1634 = vperm.slane %v1609, 0
        %v1636 = vmul.f32 %v1632, %v1634
        %v1638 = vperm.slane %v1610, 0
        %v1640 = vadd.f32 %v1636, %v1638
        %1641 = vst.msk [vmem:[%s593] sm:$0xff] %vm961, %v1640
        %s1642 = sand.u32 %s364, 1
        %s1643 = scalar_lea.sflag [#allocation6], %s1642
        %s1644 = sand.u32 %s364, 1
        %s1645 = smul.addr %s1644, 8
        %s1646 = scalar_lea.vmem [#allocation12], %s1645
        %s1647 = sand.u32 %s392, 1
        %s1648 = scalar_lea.sflag [#allocation14], %s1647
        %s1649 = sand.u32 %s392, 1
        %s1650 = smul.addr %s1649, 32
        %s1651 = scalar_lea.vmem [#allocation13], %s1650
        // Predicated region
        $region97: #{tpu_custom_call.1} parent=75 // pred_check
          %p1652 = pneg %p374
        $region98: #{tpu_custom_call.1} parent=75 // pred_check_branch
          %1654 = sbr.rel (%p1652) target = $region100
        $region99: #{tpu_custom_call.1} parent=75 // pred_region
          %1656 = vsyncadd %s1643, 0
          %s1657 = sadd.s32 %s41, %s40
          %s1658 = smul.addr %s1657, 8
          %s1659 = scalar_lea.hbm %s14, %s1658
          %s1661 = sshll.u32 %s1646, 4
          %s1662 = int_to_ptr.vmem [resolvable:$true] %s1661
          %s1663 = sshll.u32 %s1659, 4
          %s1664 = int_to_ptr.hbm [resolvable:$true] %s1663
          %1666 = dma.vmem_to_hbm [thread:$0]  %s1662, 128, %s1664, %s1643
        $region100: #{tpu_custom_call.1} parent=75 // pred_fallthru
          _
        // Predicated region
        $region101: #{tpu_custom_call.1} parent=75 // pred_check
          %p1667 = pneg %p402
        $region102: #{tpu_custom_call.1} parent=75 // pred_check_branch
          %1669 = sbr.rel (%p1667) target = $region104
        $region103: #{tpu_custom_call.1} parent=75 // pred_region
          %1671 = vsyncadd %s1648, 0
          %s1672 = smul.addr %s40, 4
          %s1673 = sadd.s32 %s41, %s1672
          %s1674 = smul.addr %s1673, 8
          %s1675 = scalar_lea.hbm %s15, %s1674
          %s1676 = sshll.u32 %s1651, 4
          %s1677 = int_to_ptr.vmem [resolvable:$true] %s1676
          %s1678 = sshll.u32 %s1675, 4
          %s1679 = int_to_ptr.hbm [resolvable:$true] %s1678
          %1684 = dma.vmem_to_hbm [thread:$0]  %s1677, 512, %s1679, %s1648, 128, 128, 8
        $region104: #{tpu_custom_call.1} parent=75 // pred_fallthru
          _
      $region76: #{tpu_custom_call.1} parent=5 // pred_fallthru
        _
      %p1685 = scmp.le.s32.totalorder 2, %s31
      // Predicated region
      $region105: #{tpu_custom_call.1} parent=5 // pred_check
        %p1686 = pneg %p1685
      $region106: #{tpu_custom_call.1} parent=5 // pred_check_branch
        %1688 = sbr.rel (%p1686) target = $region108
      $region107: #{tpu_custom_call.1} parent=5 // pred_region
        %s1689 = ssub.s32 %s31, 2
        // Predicated region
        $region109: #{tpu_custom_call.1} parent=107 // pred_check
          %p1690 = pneg %p380
        $region110: #{tpu_custom_call.1} parent=107 // pred_check_branch
          %1692 = sbr.rel (%p1690) target = $region112
        $region111: #{tpu_custom_call.1} parent=107 // pred_region
          %s1693 = sand.u32 %s365, 1
          %s1694 = scalar_lea.sflag [#allocation6], %s1693
          %s1695 = sand.u32 %s365, 1
          %s1696 = smul.addr %s1695, 8
          %s1697 = scalar_lea.vmem [#allocation12], %s1696
          %1699 = dma.done %s1694, 128
        $region112: #{tpu_custom_call.1} parent=107 // pred_fallthru
          _
        // Predicated region
        $region113: #{tpu_custom_call.1} parent=107 // pred_check
          %p1700 = pneg %p408
        $region114: #{tpu_custom_call.1} parent=107 // pred_check_branch
          %1702 = sbr.rel (%p1700) target = $region116
        $region115: #{tpu_custom_call.1} parent=107 // pred_region
          %s1703 = sand.u32 %s393, 1
          %s1704 = scalar_lea.sflag [#allocation14], %s1703
          %s1705 = sand.u32 %s393, 1
          %s1706 = smul.addr %s1705, 32
          %s1707 = scalar_lea.vmem [#allocation13], %s1706
          %1709 = dma.done %s1704, 512
        $region116: #{tpu_custom_call.1} parent=107 // pred_fallthru
          _
      $region108: #{tpu_custom_call.1} parent=5 // pred_fallthru
        _
    $region6: #{tpu_custom_call.1} parent=1 // loop_footer
      %s35 = sadd.s32 1, %s31
    $region7: #{tpu_custom_call.1} parent=1 // loop_footer_branch
      %30 = sbr.rel target = $region3
    $region8: #{tpu_custom_call.1} parent=1 // loop_exit
      _
    %1710 = vsyncpa [#allocation5], 1
    %s1711 = scalar_lea.sflag [#allocation5], 1
    %1712 = vsyncpa %s1711, 1
    %1713 = vsyncpa [#allocation8], 1
    %1714 = vsyncpa [#allocation11], 1
    %1715 = vsyncpa [#allocation6], 1
    %s1716 = scalar_lea.sflag [#allocation6], 1
    %1717 = vsyncpa %s1716, 1
    %1718 = vsyncpa [#allocation14], 1
    %s1719 = scalar_lea.sflag [#allocation14], 1
    %1720 = vsyncpa %s1719, 1

// kernel: tpu_custom_call.1
$region0: #{tpu_custom_call.1}
  #allocation0 [shape = 'u32[]', space=smem, size = 0x4, offset = 0x4, fixed_abs, tag = 'smem constant byte address 0x4 - core index']
  #allocation1 [shape = 'u32[72,128]{1,0:T(1,128)}', space=vmem, size = 0x9000, scoped, tag = 'internal scratch']
  #allocation2 [shape = 'bf16[4,8,8]{2,1,0:T(8,128)(2,1)}', space=vmem, size = 0x2000, scoped, tag = 'scratch operand']
  #allocation3 [shape = 'bf16[4,8,8]{2,1,0:T(8,128)(2,1)}', space=vmem, size = 0x2000, scoped, tag = 'scratch operand']
  %s0 = inlined_call_operand.vmem [shape: f32[2,8,32], index: 0, kind: input, shape index: {}]
  %s1 = inlined_call_operand.vmem [shape: f32[2,8,32], index: 1, kind: input, shape index: {}]
  %s2 = inlined_call_operand.vmem [shape: bf16[32,32], index: 2, kind: input, shape index: {}]
  %s3 = inlined_call_operand.hbm [shape: bf16[32,32], index: 3, kind: input, shape index: {}]
  %s4 = inlined_call_operand.hbm [shape: bf16[32,32], index: 4, kind: input, shape index: {}]
  %s5 = inlined_call_operand.hbm [shape: bf16[32,32], index: 5, kind: input, shape index: {}]
  %s6 = inlined_call_operand.vmem [shape: f32[1,32], index: 6, kind: input, shape index: {}]
  %s7 = inlined_call_operand.vmem [shape: f32[1,32], index: 7, kind: input, shape index: {}]
  %s8 = inlined_call_operand.hbm [shape: bf16[32,64], index: 8, kind: input, shape index: {}]
  %s9 = inlined_call_operand.vmem [shape: f32[1,64], index: 9, kind: input, shape index: {}]
  %s10 = inlined_call_operand.vmem [shape: bf16[64,32], index: 10, kind: input, shape index: {}]
  %s11 = inlined_call_operand.vmem [shape: f32[1,32], index: 11, kind: input, shape index: {}]
  %s12 = inlined_call_operand.vmem [shape: f32[1,32], index: 12, kind: input, shape index: {}]
  %s13 = inlined_call_operand.vmem [shape: f32[1,32], index: 13, kind: input, shape index: {}]
  %s14 = inlined_call_operand.hbm [shape: f32[2,8,32], index: 14, kind: output, shape index: {0}]
  %s15 = inlined_call_operand.hbm [shape: f32[2,4,8,8], index: 15, kind: output, shape index: {1}]
  %16 = xla_tuple %s14, %s15
  %s17 = sld [smem:[#allocation0]]
  $region117: #{tpu_custom_call.1} parent=0
    _
  %s19 = ssub.s32 1, %s17
  %s20 = scalar_select 0, %s19, %s17
  $region1: #{tpu_custom_call.1} parent=0
    #allocation4 [shape = 'u8[8192]{0}', space=vmem, size = 0x2000, scoped, tag = 'input window, operand 3, single buffered']
    #allocation5 [shape = 's32[2]{0}', space=sflag, size = 0x8, scoped, tag = 'scoped memory for tpu_custom_call.1']
    #allocation6 [shape = 's32[2]{0}', space=sflag, size = 0x8, scoped, tag = 'scoped memory for tpu_custom_call.1']
    #allocation7 [shape = 'u8[8192]{0}', space=vmem, size = 0x2000, scoped, tag = 'input window, operand 4, single buffered']
    #allocation8 [shape = 's32[1]{0}', space=sflag, size = 0x4, scoped, tag = 'scoped memory for tpu_custom_call.1']
    #allocation9 [shape = 'u8[8192]{0}', space=vmem, size = 0x2000, scoped, tag = 'input window, operand 5, single buffered']
    #allocation10 [shape = 'u8[8192]{0}', space=vmem, size = 0x2000, scoped, tag = 'input window, operand 8, single buffered']
    #allocation11 [shape = 's32[1]{0}', space=sflag, size = 0x4, scoped, tag = 'scoped memory for tpu_custom_call.1']
    #allocation12 [shape = 'u8[8192]{0}', space=vmem, size = 0x2000, scoped, tag = 'output window, operand 0']
    #allocation13 [shape = 'u8[32768]{0}', space=vmem, size = 0x8000, scoped, tag = 'output window, operand 1']
    #allocation14 [shape = 's32[2]{0}', space=sflag, size = 0x8, scoped, tag = 'scoped memory for tpu_custom_call.1']
    %21 = vsyncpa [#allocation5], 0
    %22 = vsyncpa [#allocation8], 0
    %23 = vsyncpa [#allocation11], 0
    %24 = vsyncpa [#allocation6], 0
    %s25 = scalar_lea.sflag [#allocation6], 1
    %26 = vsyncpa %s25, 0
    %27 = vsyncpa [#allocation14], 0
    %s28 = scalar_lea.sflag [#allocation14], 1
    %29 = vsyncpa %s28, 0
    loop: start=0, step=1, limit=4
    $region2: #{tpu_custom_call.1} parent=1 // loop_pre_header
      _
    $region3: #{tpu_custom_call.1} parent=1 // loop_header
      %s31 = sphi 0, %s35
      %p32 = scmp.ge.s32.totalorder %s31, 4
      %s38 = sphi 0, %s50
      %s39 = sphi 0, %s46
      %s40 = sphi 0, %s38
      %s41 = sphi 0, %s39
      %s42 = sphi 0, %s40
      %s43 = sphi 0, %s41
      %s55 = sphi 0, %s57
      %s58 = sphi 0, %s55
      %s59 = sphi 0, %s58
      %s75 = sphi 0, %s59
      %s81 = sphi 0, %s83
      %s84 = sphi 0, %s81
      %s85 = sphi 0, %s84
      %s101 = sphi 0, %s85
      %s105 = sphi 0, %s105
      %s107 = sphi 0, %s105
      %s108 = sphi 0, %s107
      %s122 = sphi 0, %s108
      %s126 = sphi 0, %s126
      %s128 = sphi 0, %s126
      %s129 = sphi 0, %s128
      %s143 = sphi 0, %s129
      %s147 = sphi 0, %s147
      %s149 = sphi 0, %s147
      %s150 = sphi 0, %s149
      %s164 = sphi 0, %s150
      %s168 = sphi 0, %s168
      %s170 = sphi 0, %s168
      %s171 = sphi 0, %s170
      %s185 = sphi 0, %s171
      %s189 = sphi 0, %s189
      %s191 = sphi 0, %s189
      %s192 = sphi 0, %s191
      %s206 = sphi 0, %s192
      %s210 = sphi 0, %s210
      %s212 = sphi 0, %s210
      %s213 = sphi 0, %s212
      %s227 = sphi 0, %s213
      %s231 = sphi 0, %s231
      %s233 = sphi 0, %s231
      %s234 = sphi 0, %s233
      %s248 = sphi 0, %s234
      %s252 = sphi 0, %s252
      %s254 = sphi 0, %s252
      %s255 = sphi 0, %s254
      %s269 = sphi 0, %s255
      %s273 = sphi 0, %s273
      %s275 = sphi 0, %s273
      %s276 = sphi 0, %s275
      %s290 = sphi 0, %s276
      %s294 = sphi 0, %s294
      %s296 = sphi 0, %s294
      %s297 = sphi 0, %s296
      %s311 = sphi 0, %s297
      %s315 = sphi 0, %s315
      %s317 = sphi 0, %s315
      %s318 = sphi 0, %s317
      %s332 = sphi 0, %s318
      %s336 = sphi 0, %s336
      %s338 = sphi 0, %s336
      %s339 = sphi 0, %s338
      %s353 = sphi 0, %s339
      %s361 = sphi 0, %s363
      %s364 = sphi 0, %s361
      %s365 = sphi 0, %s364
      %s381 = sphi 0, %s365
      %s389 = sphi 0, %s391
      %s392 = sphi 0, %s389
      %s393 = sphi 0, %s392
      %s409 = sphi 0, %s393
    $region4: #{tpu_custom_call.1} parent=1 // loop_header_branch
      %34 = sbr.rel (%p32) target = $region8
    $region5: #{tpu_custom_call.1} parent=1 // loop_body
      %s36 = ssub.s32 %s31, 1
      %s37 = ssub.s32 %s31, 2
      %s44 = sadd.s32 1, %s39
      %p45 = scmp.ge.s32.totalorder %s44, 1
      %s46 = scalar_select %p45, 0, %s44
      %s47 = sadd.s32 1, %s38
      %s48 = scalar_select %p45, %s47, %s38
      %p49 = scmp.ge.s32.totalorder %s48, 2
      %s50 = scalar_select %p49, 0, %s48
      %s51 = ssub.s32 %s38, %s50
      %s52 = ssub.s32 %s39, %s46
      %s53 = sor.u32 %s51, %s52
      %p54 = scmp.eq.s32.totalorder %s53, 0
      %s56 = sadd.s32 %s55, 1
      %s57 = scalar_select %p54, %s55, %s56
      %p60 = pneg %p54
      %p61 = scmp.eq.s32.totalorder %s31, 1
      %p62 = por %p60, %p61
      %p63 = scmp.ne.s32.totalorder %s55, %s58
      %p64 = scmp.eq.s32.totalorder %s31, 0
      %p65 = por %p63, %p64
      %p66 = scmp.ne.s32.totalorder %s55, %s58
      %p67 = scmp.eq.s32.totalorder %s36, 1
      %p68 = por %p66, %p67
      %p69 = scmp.ne.s32.totalorder %s58, %s59
      %p70 = scmp.eq.s32.totalorder %s36, 0
      %p71 = por %p69, %p70
      %p72 = scmp.ne.s32.totalorder %s58, %s59
      %p73 = scmp.eq.s32.totalorder %s37, 1
      %p74 = por %p72, %p73
      %p76 = scmp.ne.s32.totalorder %s59, %s75
      %p77 = scmp.eq.s32.totalorder %s37, 0
      %p78 = por %p76, %p77
      %s79 = ssub.s32 %s38, %s50
      %p80 = scmp.eq.s32.totalorder %s79, 0
      %s82 = sadd.s32 %s81, 1
      %s83 = scalar_select %p80, %s81, %s82
      %p86 = pneg %p80
      %p87 = scmp.eq.s32.totalorder %s31, 1
      %p88 = por %p86, %p87
      %p89 = scmp.ne.s32.totalorder %s81, %s84
      %p90 = scmp.eq.s32.totalorder %s31, 0
      %p91 = por %p89, %p90
      %p92 = scmp.ne.s32.totalorder %s81, %s84
      %p93 = scmp.eq.s32.totalorder %s36, 1
      %p94 = por %p92, %p93
      %p95 = scmp.ne.s32.totalorder %s84, %s85
      %p96 = scmp.eq.s32.totalorder %s36, 0
      %p97 = por %p95, %p96
      %p98 = scmp.ne.s32.totalorder %s84, %s85
      %p99 = scmp.eq.s32.totalorder %s37, 1
      %p100 = por %p98, %p99
      %p102 = scmp.ne.s32.totalorder %s85, %s101
      %p103 = scmp.eq.s32.totalorder %s37, 0
      %p104 = por %p102, %p103
      %s106 = sadd.s32 %s105, 1
      %p109 = scmp.eq.s32.totalorder %s31, 1
      %p110 = scmp.ne.s32.totalorder %s105, %s107
      %p111 = scmp.eq.s32.totalorder %s31, 0
      %p112 = por %p110, %p111
      %p113 = scmp.ne.s32.totalorder %s105, %s107
      %p114 = scmp.eq.s32.totalorder %s36, 1
      %p115 = por %p113, %p114
      %p116 = scmp.ne.s32.totalorder %s107, %s108
      %p117 = scmp.eq.s32.totalorder %s36, 0
      %p118 = por %p116, %p117
      %p119 = scmp.ne.s32.totalorder %s107, %s108
      %p120 = scmp.eq.s32.totalorder %s37, 1
      %p121 = por %p119, %p120
      %p123 = scmp.ne.s32.totalorder %s108, %s122
      %p124 = scmp.eq.s32.totalorder %s37, 0
      %p125 = por %p123, %p124
      %s127 = sadd.s32 %s126, 1
      %p130 = scmp.eq.s32.totalorder %s31, 1
      %p131 = scmp.ne.s32.totalorder %s126, %s128
      %p132 = scmp.eq.s32.totalorder %s31, 0
      %p133 = por %p131, %p132
      %p134 = scmp.ne.s32.totalorder %s126, %s128
      %p135 = scmp.eq.s32.totalorder %s36, 1
      %p136 = por %p134, %p135
      %p137 = scmp.ne.s32.totalorder %s128, %s129
      %p138 = scmp.eq.s32.totalorder %s36, 0
      %p139 = por %p137, %p138
      %p140 = scmp.ne.s32.totalorder %s128, %s129
      %p141 = scmp.eq.s32.totalorder %s37, 1
      %p142 = por %p140, %p141
      %p144 = scmp.ne.s32.totalorder %s129, %s143
      %p145 = scmp.eq.s32.totalorder %s37, 0
      %p146 = por %p144, %p145
      %s148 = sadd.s32 %s147, 1
      %p151 = scmp.eq.s32.totalorder %s31, 1
      %p152 = scmp.ne.s32.totalorder %s147, %s149
      %p153 = scmp.eq.s32.totalorder %s31, 0
      %p154 = por %p152, %p153
      %p155 = scmp.ne.s32.totalorder %s147, %s149
      %p156 = scmp.eq.s32.totalorder %s36, 1
      %p157 = por %p155, %p156
      %p158 = scmp.ne.s32.totalorder %s149, %s150
      %p159 = scmp.eq.s32.totalorder %s36, 0
      %p160 = por %p158, %p159
      %p161 = scmp.ne.s32.totalorder %s149, %s150
      %p162 = scmp.eq.s32.totalorder %s37, 1
      %p163 = por %p161, %p162
      %p165 = scmp.ne.s32.totalorder %s150, %s164
      %p166 = scmp.eq.s32.totalorder %s37, 0
      %p167 = por %p165, %p166
      %s169 = sadd.s32 %s168, 1
      %p172 = scmp.eq.s32.totalorder %s31, 1
      %p173 = scmp.ne.s32.totalorder %s168, %s170
      %p174 = scmp.eq.s32.totalorder %s31, 0
      %p175 = por %p173, %p174
      %p176 = scmp.ne.s32.totalorder %s168, %s170
      %p177 = scmp.eq.s32.totalorder %s36, 1
      %p178 = por %p176, %p177
      %p179 = scmp.ne.s32.totalorder %s170, %s171
      %p180 = scmp.eq.s32.totalorder %s36, 0
      %p181 = por %p179, %p180
      %p182 = scmp.ne.s32.totalorder %s170, %s171
      %p183 = scmp.eq.s32.totalorder %s37, 1
      %p184 = por %p182, %p183
      %p186 = scmp.ne.s32.totalorder %s171, %s185
      %p187 = scmp.eq.s32.totalorder %s37, 0
      %p188 = por %p186, %p187
      %s190 = sadd.s32 %s189, 1
      %p193 = scmp.eq.s32.totalorder %s31, 1
      %p194 = scmp.ne.s32.totalorder %s189, %s191
      %p195 = scmp.eq.s32.totalorder %s31, 0
      %p196 = por %p194, %p195
      %p197 = scmp.ne.s32.totalorder %s189, %s191
      %p198 = scmp.eq.s32.totalorder %s36, 1
      %p199 = por %p197, %p198
      %p200 = scmp.ne.s32.totalorder %s191, %s192
      %p201 = scmp.eq.s32.totalorder %s36, 0
      %p202 = por %p200, %p201
      %p203 = scmp.ne.s32.totalorder %s191, %s192
      %p204 = scmp.eq.s32.totalorder %s37, 1
      %p205 = por %p203, %p204
      %p207 = scmp.ne.s32.totalorder %s192, %s206
      %p208 = scmp.eq.s32.totalorder %s37, 0
      %p209 = por %p207, %p208
      %s211 = sadd.s32 %s210, 1
      %p214 = scmp.eq.s32.totalorder %s31, 1
      %p215 = scmp.ne.s32.totalorder %s210, %s212
      %p216 = scmp.eq.s32.totalorder %s31, 0
      %p217 = por %p215, %p216
      %p218 = scmp.ne.s32.totalorder %s210, %s212
      %p219 = scmp.eq.s32.totalorder %s36, 1
      %p220 = por %p218, %p219
      %p221 = scmp.ne.s32.totalorder %s212, %s213
      %p222 = scmp.eq.s32.totalorder %s36, 0
      %p223 = por %p221, %p222
      %p224 = scmp.ne.s32.totalorder %s212, %s213
      %p225 = scmp.eq.s32.totalorder %s37, 1
      %p226 = por %p224, %p225
      %p228 = scmp.ne.s32.totalorder %s213, %s227
      %p229 = scmp.eq.s32.totalorder %s37, 0
      %p230 = por %p228, %p229
      %s232 = sadd.s32 %s231, 1
      %p235 = scmp.eq.s32.totalorder %s31, 1
      %p236 = scmp.ne.s32.totalorder %s231, %s233
      %p237 = scmp.eq.s32.totalorder %s31, 0
      %p238 = por %p236, %p237
      %p239 = scmp.ne.s32.totalorder %s231, %s233
      %p240 = scmp.eq.s32.totalorder %s36, 1
      %p241 = por %p239, %p240
      %p242 = scmp.ne.s32.totalorder %s233, %s234
      %p243 = scmp.eq.s32.totalorder %s36, 0
      %p244 = por %p242, %p243
      %p245 = scmp.ne.s32.totalorder %s233, %s234
      %p246 = scmp.eq.s32.totalorder %s37, 1
      %p247 = por %p245, %p246
      %p249 = scmp.ne.s32.totalorder %s234, %s248
      %p250 = scmp.eq.s32.totalorder %s37, 0
      %p251 = por %p249, %p250
      %s253 = sadd.s32 %s252, 1
      %p256 = scmp.eq.s32.totalorder %s31, 1
      %p257 = scmp.ne.s32.totalorder %s252, %s254
      %p258 = scmp.eq.s32.totalorder %s31, 0
      %p259 = por %p257, %p258
      %p260 = scmp.ne.s32.totalorder %s252, %s254
      %p261 = scmp.eq.s32.totalorder %s36, 1
      %p262 = por %p260, %p261
      %p263 = scmp.ne.s32.totalorder %s254, %s255
      %p264 = scmp.eq.s32.totalorder %s36, 0
      %p265 = por %p263, %p264
      %p266 = scmp.ne.s32.totalorder %s254, %s255
      %p267 = scmp.eq.s32.totalorder %s37, 1
      %p268 = por %p266, %p267
      %p270 = scmp.ne.s32.totalorder %s255, %s269
      %p271 = scmp.eq.s32.totalorder %s37, 0
      %p272 = por %p270, %p271
      %s274 = sadd.s32 %s273, 1
      %p277 = scmp.eq.s32.totalorder %s31, 1
      %p278 = scmp.ne.s32.totalorder %s273, %s275
      %p279 = scmp.eq.s32.totalorder %s31, 0
      %p280 = por %p278, %p279
      %p281 = scmp.ne.s32.totalorder %s273, %s275
      %p282 = scmp.eq.s32.totalorder %s36, 1
      %p283 = por %p281, %p282
      %p284 = scmp.ne.s32.totalorder %s275, %s276
      %p285 = scmp.eq.s32.totalorder %s36, 0
      %p286 = por %p284, %p285
      %p287 = scmp.ne.s32.totalorder %s275, %s276
      %p288 = scmp.eq.s32.totalorder %s37, 1
      %p289 = por %p287, %p288
      %p291 = scmp.ne.s32.totalorder %s276, %s290
      %p292 = scmp.eq.s32.totalorder %s37, 0
      %p293 = por %p291, %p292
      %s295 = sadd.s32 %s294, 1
      %p298 = scmp.eq.s32.totalorder %s31, 1
      %p299 = scmp.ne.s32.totalorder %s294, %s296
      %p300 = scmp.eq.s32.totalorder %s31, 0
      %p301 = por %p299, %p300
      %p302 = scmp.ne.s32.totalorder %s294, %s296
      %p303 = scmp.eq.s32.totalorder %s36, 1
      %p304 = por %p302, %p303
      %p305 = scmp.ne.s32.totalorder %s296, %s297
      %p306 = scmp.eq.s32.totalorder %s36, 0
      %p307 = por %p305, %p306
      %p308 = scmp.ne.s32.totalorder %s296, %s297
      %p309 = scmp.eq.s32.totalorder %s37, 1
      %p310 = por %p308, %p309
      %p312 = scmp.ne.s32.totalorder %s297, %s311
      %p313 = scmp.eq.s32.totalorder %s37, 0
      %p314 = por %p312, %p313
      %s316 = sadd.s32 %s315, 1
      %p319 = scmp.eq.s32.totalorder %s31, 1
      %p320 = scmp.ne.s32.totalorder %s315, %s317
      %p321 = scmp.eq.s32.totalorder %s31, 0
      %p322 = por %p320, %p321
      %p323 = scmp.ne.s32.totalorder %s315, %s317
      %p324 = scmp.eq.s32.totalorder %s36, 1
      %p325 = por %p323, %p324
      %p326 = scmp.ne.s32.totalorder %s317, %s318
      %p327 = scmp.eq.s32.totalorder %s36, 0
      %p328 = por %p326, %p327
      %p329 = scmp.ne.s32.totalorder %s317, %s318
      %p330 = scmp.eq.s32.totalorder %s37, 1
      %p331 = por %p329, %p330
      %p333 = scmp.ne.s32.totalorder %s318, %s332
      %p334 = scmp.eq.s32.totalorder %s37, 0
      %p335 = por %p333, %p334
      %s337 = sadd.s32 %s336, 1
      %p340 = scmp.eq.s32.totalorder %s31, 1
      %p341 = scmp.ne.s32.totalorder %s336, %s338
      %p342 = scmp.eq.s32.totalorder %s31, 0
      %p343 = por %p341, %p342
      %p344 = scmp.ne.s32.totalorder %s336, %s338
      %p345 = scmp.eq.s32.totalorder %s36, 1
      %p346 = por %p344, %p345
      %p347 = scmp.ne.s32.totalorder %s338, %s339
      %p348 = scmp.eq.s32.totalorder %s36, 0
      %p349 = por %p347, %p348
      %p350 = scmp.ne.s32.totalorder %s338, %s339
      %p351 = scmp.eq.s32.totalorder %s37, 1
      %p352 = por %p350, %p351
      %p354 = scmp.ne.s32.totalorder %s339, %s353
      %p355 = scmp.eq.s32.totalorder %s37, 0
      %p356 = por %p354, %p355
      %s357 = ssub.s32 %s38, %s50
      %s358 = ssub.s32 %s39, %s46
      %s359 = sor.u32 %s357, %s358
      %p360 = scmp.eq.s32.totalorder %s359, 0
      %s362 = sadd.s32 %s361, 1
      %s363 = scalar_select %p360, %s361, %s362
      %p366 = pneg %p360
      %p367 = scmp.eq.s32.totalorder %s31, 1
      %p368 = por %p366, %p367
      %p369 = scmp.ne.s32.totalorder %s361, %s364
      %p370 = scmp.eq.s32.totalorder %s31, 0
      %p371 = por %p369, %p370
      %p372 = scmp.ne.s32.totalorder %s361, %s364
      %p373 = scmp.eq.s32.totalorder %s36, 1
      %p374 = por %p372, %p373
      %p375 = scmp.ne.s32.totalorder %s364, %s365
      %p376 = scmp.eq.s32.totalorder %s36, 0
      %p377 = por %p375, %p376
      %p378 = scmp.ne.s32.totalorder %s364, %s365
      %p379 = scmp.eq.s32.totalorder %s37, 1
      %p380 = por %p378, %p379
      %p382 = scmp.ne.s32.totalorder %s365, %s381
      %p383 = scmp.eq.s32.totalorder %s37, 0
      %p384 = por %p382, %p383
      %s385 = ssub.s32 %s38, %s50
      %s386 = ssub.s32 %s39, %s46
      %s387 = sor.u32 %s385, %s386
      %p388 = scmp.eq.s32.totalorder %s387, 0
      %s390 = sadd.s32 %s389, 1
      %s391 = scalar_select %p388, %s389, %s390
      %p394 = pneg %p388
      %p395 = scmp.eq.s32.totalorder %s31, 1
      %p396 = por %p394, %p395
      %p397 = scmp.ne.s32.totalorder %s389, %s392
      %p398 = scmp.eq.s32.totalorder %s31, 0
      %p399 = por %p397, %p398
      %p400 = scmp.ne.s32.totalorder %s389, %s392
      %p401 = scmp.eq.s32.totalorder %s36, 1
      %p402 = por %p400, %p401
      %p403 = scmp.ne.s32.totalorder %s392, %s393
      %p404 = scmp.eq.s32.totalorder %s36, 0
      %p405 = por %p403, %p404
      %p406 = scmp.ne.s32.totalorder %s392, %s393
      %p407 = scmp.eq.s32.totalorder %s37, 1
      %p408 = por %p406, %p407
      %p410 = scmp.ne.s32.totalorder %s393, %s409
      %p411 = scmp.eq.s32.totalorder %s37, 0
      %p412 = por %p410, %p411
      %p413 = scmp.le.s32.totalorder 1, %s31
      %p414 = scmp.lt.s32.totalorder %s31, 3
      %p415 = pnand %p413, %p414
      %p416 = pneg %p415
      // Predicated region
      $region9: #{tpu_custom_call.1} parent=5 // pred_check
        _
      $region10: #{tpu_custom_call.1} parent=5 // pred_check_branch
        %418 = sbr.rel (%p415) target = $region12
      $region11: #{tpu_custom_call.1} parent=5 // pred_region
        %s419 = ssub.s32 %s31, 1
        // Predicated region
        $region13: #{tpu_custom_call.1} parent=11 // pred_check
          %p420 = pneg %p118
        $region14: #{tpu_custom_call.1} parent=11 // pred_check_branch
          %422 = sbr.rel (%p420) target = $region16
        $region15: #{tpu_custom_call.1} parent=11 // pred_region
          _
        $region16: #{tpu_custom_call.1} parent=11 // pred_fallthru
          _
        // Predicated region
        $region17: #{tpu_custom_call.1} parent=11 // pred_check
          %p423 = pneg %p139
        $region18: #{tpu_custom_call.1} parent=11 // pred_check_branch
          %425 = sbr.rel (%p423) target = $region20
        $region19: #{tpu_custom_call.1} parent=11 // pred_region
          %427 = vsyncadd [#allocation5], 0
          %s428 = sshll.u32 %s3, 4
          %s429 = int_to_ptr.hbm [resolvable:$true] %s428
          %s430 = sshll.u32 [#allocation4], 4
          %s431 = int_to_ptr.vmem [resolvable:$true] %s430
          %436 = dma.hbm_to_vmem [thread:$0]  %s429, 256, %s431, [#allocation5], 64, 64, 4
        $region20: #{tpu_custom_call.1} parent=11 // pred_fallthru
          _
        // Predicated region
        $region21: #{tpu_custom_call.1} parent=11 // pred_check
          %p437 = pneg %p160
        $region22: #{tpu_custom_call.1} parent=11 // pred_check_branch
          %439 = sbr.rel (%p437) target = $region24
        $region23: #{tpu_custom_call.1} parent=11 // pred_region
          %441 = vsyncadd [#allocation8], 0
          %s442 = sshll.u32 %s4, 4
          %s443 = int_to_ptr.hbm [resolvable:$true] %s442
          %s444 = sshll.u32 [#allocation7], 4
          %s445 = int_to_ptr.vmem [resolvable:$true] %s444
          %450 = dma.hbm_to_vmem [thread:$0]  %s443, 256, %s445, [#allocation8], 64, 64, 4
        $region24: #{tpu_custom_call.1} parent=11 // pred_fallthru
          _
        // Predicated region
        $region25: #{tpu_custom_call.1} parent=11 // pred_check
          %p451 = pneg %p181
        $region26: #{tpu_custom_call.1} parent=11 // pred_check_branch
          %453 = sbr.rel (%p451) target = $region28
        $region27: #{tpu_custom_call.1} parent=11 // pred_region
          %455 = vsyncadd [#allocation8], 0
          %s456 = sshll.u32 %s5, 4
          %s457 = int_to_ptr.hbm [resolvable:$true] %s456
          %s458 = sshll.u32 [#allocation9], 4
          %s459 = int_to_ptr.vmem [resolvable:$true] %s458
          %464 = dma.hbm_to_vmem [thread:$0]  %s457, 256, %s459, [#allocation8], 64, 64, 4
        $region28: #{tpu_custom_call.1} parent=11 // pred_fallthru
          _
        // Predicated region
        $region29: #{tpu_custom_call.1} parent=11 // pred_check
          %p465 = pneg %p202
        $region30: #{tpu_custom_call.1} parent=11 // pred_check_branch
          %467 = sbr.rel (%p465) target = $region32
        $region31: #{tpu_custom_call.1} parent=11 // pred_region
          _
        $region32: #{tpu_custom_call.1} parent=11 // pred_fallthru
          _
        // Predicated region
        $region33: #{tpu_custom_call.1} parent=11 // pred_check
          %p468 = pneg %p223
        $region34: #{tpu_custom_call.1} parent=11 // pred_check_branch
          %470 = sbr.rel (%p468) target = $region36
        $region35: #{tpu_custom_call.1} parent=11 // pred_region
          _
        $region36: #{tpu_custom_call.1} parent=11 // pred_fallthru
          _
        // Predicated region
        $region37: #{tpu_custom_call.1} parent=11 // pred_check
          %p471 = pneg %p244
        $region38: #{tpu_custom_call.1} parent=11 // pred_check_branch
          %473 = sbr.rel (%p471) target = $region40
        $region39: #{tpu_custom_call.1} parent=11 // pred_region
          %475 = vsyncadd [#allocation11], 0
          %s476 = sshll.u32 %s8, 4
          %s477 = int_to_ptr.hbm [resolvable:$true] %s476
          %s478 = sshll.u32 [#allocation10], 4
          %s479 = int_to_ptr.vmem [resolvable:$true] %s478
          %484 = dma.hbm_to_vmem [thread:$0]  %s477, 256, %s479, [#allocation11], 64, 64, 4
        $region40: #{tpu_custom_call.1} parent=11 // pred_fallthru
          _
        // Predicated region
        $region41: #{tpu_custom_call.1} parent=11 // pred_check
          %p485 = pneg %p265
        $region42: #{tpu_custom_call.1} parent=11 // pred_check_branch
          %487 = sbr.rel (%p485) target = $region44
        $region43: #{tpu_custom_call.1} parent=11 // pred_region
          _
        $region44: #{tpu_custom_call.1} parent=11 // pred_fallthru
          _
        // Predicated region
        $region45: #{tpu_custom_call.1} parent=11 // pred_check
          %p488 = pneg %p286
        $region46: #{tpu_custom_call.1} parent=11 // pred_check_branch
          %490 = sbr.rel (%p488) target = $region48
        $region47: #{tpu_custom_call.1} parent=11 // pred_region
          _
        $region48: #{tpu_custom_call.1} parent=11 // pred_fallthru
          _
        // Predicated region
        $region49: #{tpu_custom_call.1} parent=11 // pred_check
          %p491 = pneg %p307
        $region50: #{tpu_custom_call.1} parent=11 // pred_check_branch
          %493 = sbr.rel (%p491) target = $region52
        $region51: #{tpu_custom_call.1} parent=11 // pred_region
          _
        $region52: #{tpu_custom_call.1} parent=11 // pred_fallthru
          _
        // Predicated region
        $region53: #{tpu_custom_call.1} parent=11 // pred_check
          %p494 = pneg %p328
        $region54: #{tpu_custom_call.1} parent=11 // pred_check_branch
          %496 = sbr.rel (%p494) target = $region56
        $region55: #{tpu_custom_call.1} parent=11 // pred_region
          _
        $region56: #{tpu_custom_call.1} parent=11 // pred_fallthru
          _
        // Predicated region
        $region57: #{tpu_custom_call.1} parent=11 // pred_check
          %p497 = pneg %p349
        $region58: #{tpu_custom_call.1} parent=11 // pred_check_branch
          %499 = sbr.rel (%p497) target = $region60
        $region59: #{tpu_custom_call.1} parent=11 // pred_region
          _
        $region60: #{tpu_custom_call.1} parent=11 // pred_fallthru
          _
      $region12: #{tpu_custom_call.1} parent=5 // pred_fallthru
        _
      %p500 = scmp.lt.s32.totalorder %s31, 2
      // Predicated region
      $region61: #{tpu_custom_call.1} parent=5 // pred_check
        %p501 = pneg %p500
      $region62: #{tpu_custom_call.1} parent=5 // pred_check_branch
        %503 = sbr.rel (%p501) target = $region64
      $region63: #{tpu_custom_call.1} parent=5 // pred_region
        // Predicated region
        $region65: #{tpu_custom_call.1} parent=63 // pred_check
          %p504 = pneg %p65
        $region66: #{tpu_custom_call.1} parent=63 // pred_check_branch
          %506 = sbr.rel (%p504) target = $region68
        $region67: #{tpu_custom_call.1} parent=63 // pred_region
          %p507 = scmp.lt.s32.totalorder %s38, 1
          %s508 = scalar_select %p507, %s38, 1
          %p509 = scmp.lt.s32.totalorder %s39, 0
          %s510 = scalar_select %p509, %s39, 0
          %s511 = sadd.s32 %s510, %s508
          %s512 = smul.addr %s511, 8
          %s513 = scalar_lea.vmem %s0, %s512
        $region68: #{tpu_custom_call.1} parent=63 // pred_fallthru
          _
        // Predicated region
        $region69: #{tpu_custom_call.1} parent=63 // pred_check
          %p514 = pneg %p91
        $region70: #{tpu_custom_call.1} parent=63 // pred_check_branch
          %516 = sbr.rel (%p514) target = $region72
        $region71: #{tpu_custom_call.1} parent=63 // pred_region
          %p517 = scmp.lt.s32.totalorder %s38, 1
          %s518 = scalar_select %p517, %s38, 1
          %s519 = smul.addr %s518, 8
          %s520 = scalar_lea.vmem %s1, %s519
        $region72: #{tpu_custom_call.1} parent=63 // pred_fallthru
          _
      $region64: #{tpu_custom_call.1} parent=5 // pred_fallthru
        _
      %p521 = scmp.le.s32.totalorder 1, %s31
      %p522 = scmp.lt.s32.totalorder %s31, 3
      %p523 = pnand %p521, %p522
      %p524 = pneg %p523
      // Predicated region
      $region73: #{tpu_custom_call.1} parent=5 // pred_check
        _
      $region74: #{tpu_custom_call.1} parent=5 // pred_check_branch
        %526 = sbr.rel (%p523) target = $region76
      $region75: #{tpu_custom_call.1} parent=5 // pred_region
        %s527 = ssub.s32 %s31, 1
        // Predicated region
        $region77: #{tpu_custom_call.1} parent=75 // pred_check
          %p528 = pneg %p139
        $region78: #{tpu_custom_call.1} parent=75 // pred_check_branch
          %530 = sbr.rel (%p528) target = $region80
        $region79: #{tpu_custom_call.1} parent=75 // pred_region
          %532 = dma.done [#allocation5], 256
        $region80: #{tpu_custom_call.1} parent=75 // pred_fallthru
          _
        // Predicated region
        $region81: #{tpu_custom_call.1} parent=75 // pred_check
          %p533 = pneg %p160
        $region82: #{tpu_custom_call.1} parent=75 // pred_check_branch
          %535 = sbr.rel (%p533) target = $region84
        $region83: #{tpu_custom_call.1} parent=75 // pred_region
          %537 = dma.done [#allocation8], 256
        $region84: #{tpu_custom_call.1} parent=75 // pred_fallthru
          _
        // Predicated region
        $region85: #{tpu_custom_call.1} parent=75 // pred_check
          %p538 = pneg %p181
        $region86: #{tpu_custom_call.1} parent=75 // pred_check_branch
          %540 = sbr.rel (%p538) target = $region88
        $region87: #{tpu_custom_call.1} parent=75 // pred_region
          %542 = dma.done [#allocation8], 256
        $region88: #{tpu_custom_call.1} parent=75 // pred_fallthru
          _
        // Predicated region
        $region89: #{tpu_custom_call.1} parent=75 // pred_check
          %p543 = pneg %p244
        $region90: #{tpu_custom_call.1} parent=75 // pred_check_branch
          %545 = sbr.rel (%p543) target = $region92
        $region91: #{tpu_custom_call.1} parent=75 // pred_region
          %547 = dma.done [#allocation11], 256
        $region92: #{tpu_custom_call.1} parent=75 // pred_fallthru
          _
        %p548 = scmp.lt.s32.totalorder %s40, 1
        %s549 = scalar_select %p548, %s40, 1
        %p550 = scmp.lt.s32.totalorder %s41, 0
        %s551 = scalar_select %p550, %s41, 0
        %s552 = sadd.s32 %s551, %s549
        %s553 = smul.addr %s552, 8
        %s554 = scalar_lea.vmem %s0, %s553
        %p555 = pneg %p71
        %p556 = pneg %p68
        %p557 = scmp.lt.s32.totalorder %s40, 1
        %s558 = scalar_select %p557, %s40, 1
        %s559 = smul.addr %s558, 8
        %s560 = scalar_lea.vmem %s1, %s559
        %p561 = pneg %p97
        %p562 = pneg %p94
        %p563 = pneg %p118
        %p564 = pneg %p115
        %p565 = pneg %p139
        %p566 = pneg %p136
        %p567 = pneg %p160
        %p568 = pneg %p157
        %p569 = pneg %p181
        %p570 = pneg %p178
        %p571 = pneg %p202
        %p572 = pneg %p199
        %p573 = pneg %p223
        %p574 = pneg %p220
        %p575 = pneg %p244
        %p576 = pneg %p241
        %p577 = pneg %p265
        %p578 = pneg %p262
        %p579 = pneg %p286
        %p580 = pneg %p283
        %p581 = pneg %p307
        %p582 = pneg %p304
        %p583 = pneg %p328
        %p584 = pneg %p325
        %p585 = pneg %p349
        %p586 = pneg %p346
        %p587 = pneg %p377
        %p588 = pneg %p374
        %s589 = sand.u32 %s364, 1
        %s590 = scalar_lea.sflag [#allocation6], %s589
        %s591 = sand.u32 %s364, 1
        %s592 = smul.addr %s591, 8
        %s593 = scalar_lea.vmem [#allocation12], %s592
        %p594 = pneg %p405
        %p595 = pneg %p402
        %s596 = sand.u32 %s392, 1
        %s597 = scalar_lea.sflag [#allocation14], %s596
        %s598 = sand.u32 %s392, 1
        %s599 = smul.addr %s598, 32
        %s600 = scalar_lea.vmem [#allocation13], %s599
        %p601 = scmp.lt.s32.totalorder %s40, 1
        %s602 = scalar_select %p601, %s40, 1
        %p603 = scmp.lt.s32.totalorder %s41, 0
        %s604 = scalar_select %p603, %s41, 0
        %s605 = sadd.s32 %s604, %s602
        %s606 = smul.addr %s605, 8
        %s607 = scalar_lea.vmem %s0, %s606
        %p608 = scmp.lt.s32.totalorder %s40, 1
        %s609 = scalar_select %p608, %s40, 1
        %s610 = smul.addr %s609, 8
        %s611 = scalar_lea.vmem %s1, %s610
        %p613 = scmp.eq.s32.totalorder %s41, 0
        // Predicated region
        $region93: #{tpu_custom_call.1} parent=75 // pred_check
          %p614 = pneg %p613
        $region94: #{tpu_custom_call.1} parent=75 // pred_check_branch
          %616 = sbr.rel (%p614) target = $region96
        $region95: #{tpu_custom_call.1} parent=75 // pred_region
          %v617 = vld [vmem:[%s611] sm:$0xff]
          %v618 = vpack.c.bf16 %v617, %v617
          %v619 = vld [vmem:[#allocation4] sm:$0xf]
          %v620 = vld [vmem:[#allocation4 + $0x4] sm:$0xf]
          %v621 = vld [vmem:[#allocation4 + $0x8] sm:$0xf]
          %v622 = vld [vmem:[#allocation4 + $0xc] sm:$0xf]
          %v627 = vunpack.c.l.b16 %v619
          %v628 = vunpack.c.l.b16 %v620
          %v629 = vunpack.c.l.b16 %v621
          %v630 = vunpack.c.l.b16 %v622
          %v631 = vpack.c.b16 %v628, %v627
          %v632 = vpack.c.b16 %v630, %v629
          %vm635 = vcmask 261120
          %v637 = vsel %vm635, %v618, 0
          %639 = vmatpush.bf16.msra.mxu0 0
          %640 = vmatpush.bf16.msra.mxu0 0
          %641 = vmatpush.bf16.msra.mxu0 0
          %642 = vmatpush.bf16.msra.mxu0 0
          %643 = vmatpush.bf16.msra.mxu0 0
          %644 = vmatpush.bf16.msra.mxu0 0
          %645 = vmatpush.bf16.msra.mxu0 %v632
          %646 = vmatpush.bf16.msra.mxu0 %v631
          %647 = vmatmul.bf16.gmra.mxu0 %v637
          %v648 = vpop.f32.mrf.mxu0
          %v649 = vadd.f32 0.0, %v648
          %v650 = vpop.f32.mrf.mxu0
          %651 = vdwg.mxu0
          %v652 = vld [vmem:[#allocation7] sm:$0xf]
          %v653 = vld [vmem:[#allocation7 + $0x4] sm:$0xf]
          %v654 = vld [vmem:[#allocation7 + $0x8] sm:$0xf]
          %v655 = vld [vmem:[#allocation7 + $0xc] sm:$0xf]
          %v660 = vunpack.c.l.b16 %v652
          %v661 = vunpack.c.l.b16 %v653
          %v662 = vunpack.c.l.b16 %v654
          %v663 = vunpack.c.l.b16 %v655
          %v664 = vpack.c.b16 %v661, %v660
          %v665 = vpack.c.b16 %v663, %v662
          %668 = vmatpush.bf16.msra.mxu0 0
          %669 = vmatpush.bf16.msra.mxu0 0
          %670 = vmatpush.bf16.msra.mxu0 0
          %671 = vmatpush.bf16.msra.mxu0 0
          %672 = vmatpush.bf16.msra.mxu0 0
          %673 = vmatpush.bf16.msra.mxu0 0
          %674 = vmatpush.bf16.msra.mxu0 %v665
          %675 = vmatpush.bf16.msra.mxu0 %v664
          %676 = vmatmul.bf16.gmra.mxu0 %v637
          %v677 = vpop.f32.mrf.mxu0
          %v678 = vadd.f32 0.0, %v677
          %v679 = vpop.f32.mrf.mxu0
          %680 = vdwg.mxu0
          %v681 = vpack.c.bf16 %v649, %v649
          %683 = vrot.lane.b32.xlu0 %v681, 120
          %v684 = vpop.permute.xlu0 %683
          %685 = vrot.lane.b32.xlu0 %v681, 112
          %v686 = vpop.permute.xlu0 %685
          %687 = vrot.lane.b32.xlu0 %v681, 104
          %v688 = vpop.permute.xlu0 %687
          %v691 = vpack.i.b16 %v684, %v681
          %v692 = vshrl.u32 %v681, 16
          %v693 = vshrl.u32 %v684, 16
          %v694 = vpack.i.b16 %v693, %v692
          %v697 = vpack.i.b16 %v688, %v686
          %v698 = vshrl.u32 %v686, 16
          %v699 = vshrl.u32 %v688, 16
          %v700 = vpack.i.b16 %v699, %v698
          %v703 = vunpack.c.l.s4 1983009808
          %v704 = vunpack.c.0.s8 %v703
          %v705 = vperm.slane %v691, %v704
          %v708 = vunpack.c.l.s4 1983009808
          %v709 = vunpack.c.0.s8 %v708
          %v710 = vperm.slane %v697, %v709
          %v711 = vrot.slane %v710, 4
          %vm712 = vcmask 1047556
          %v713 = vsel %vm712, %v711, %v705
          %v714 = vrot.slane %v705, 4
          %v715 = vsel %vm712, %v710, %v714
          %v717 = vunpack.c.l.s4 1934713408
          %v718 = vunpack.c.0.s8 %v717
          %v719 = vperm.slane %v713, %v718
          %v721 = vunpack.c.l.s4 1934713408
          %v722 = vunpack.c.0.s8 %v721
          %v723 = vperm.slane %v715, %v722
          %v724 = vrot.slane %v719, 4
          %v725 = vsel %vm712, 0, %v724
          %v726 = vrot.slane %v723, 4
          %v727 = vsel %vm712, 0, %v726
          %v730 = vunpack.c.l.s4 1983009808
          %v731 = vunpack.c.0.s8 %v730
          %v732 = vperm.slane %v694, %v731
          %v735 = vunpack.c.l.s4 1983009808
          %v736 = vunpack.c.0.s8 %v735
          %v737 = vperm.slane %v700, %v736
          %v738 = vrot.slane %v737, 4
          %v739 = vsel %vm712, %v738, %v732
          %v740 = vrot.slane %v732, 4
          %v741 = vsel %vm712, %v737, %v740
          %v743 = vunpack.c.l.s4 1934713408
          %v744 = vunpack.c.0.s8 %v743
          %v745 = vperm.slane %v739, %v744
          %v747 = vunpack.c.l.s4 1934713408
          %v748 = vunpack.c.0.s8 %v747
          %v749 = vperm.slane %v741, %v748
          %v750 = vrot.slane %v745, 4
          %v751 = vsel %vm712, 0, %v750
          %v752 = vrot.slane %v749, 4
          %v753 = vsel %vm712, 0, %v752
          %v754 = vpack.c.bf16 %v678, %v678
          %756 = vrot.lane.b32.xlu0 %v754, 120
          %v757 = vpop.permute.xlu0 %756
          %758 = vrot.lane.b32.xlu0 %v754, 112
          %v759 = vpop.permute.xlu0 %758
          %760 = vrot.lane.b32.xlu0 %v754, 104
          %v761 = vpop.permute.xlu0 %760
          %v764 = vpack.i.b16 %v757, %v754
          %v765 = vshrl.u32 %v754, 16
          %v766 = vshrl.u32 %v757, 16
          %v767 = vpack.i.b16 %v766, %v765
          %v770 = vpack.i.b16 %v761, %v759
          %v771 = vshrl.u32 %v759, 16
          %v772 = vshrl.u32 %v761, 16
          %v773 = vpack.i.b16 %v772, %v771
          %v776 = vunpack.c.l.s4 1983009808
          %v777 = vunpack.c.0.s8 %v776
          %v778 = vperm.slane %v764, %v777
          %v781 = vunpack.c.l.s4 1983009808
          %v782 = vunpack.c.0.s8 %v781
          %v783 = vperm.slane %v770, %v782
          %v784 = vrot.slane %v783, 4
          %v785 = vsel %vm712, %v784, %v778
          %v786 = vrot.slane %v778, 4
          %v787 = vsel %vm712, %v783, %v786
          %v789 = vunpack.c.l.s4 1934713408
          %v790 = vunpack.c.0.s8 %v789
          %v791 = vperm.slane %v785, %v790
          %v793 = vunpack.c.l.s4 1934713408
          %v794 = vunpack.c.0.s8 %v793
          %v795 = vperm.slane %v787, %v794
          %v796 = vrot.slane %v791, 4
          %v797 = vsel %vm712, 0, %v796
          %v798 = vrot.slane %v795, 4
          %v799 = vsel %vm712, 0, %v798
          %v802 = vunpack.c.l.s4 1983009808
          %v803 = vunpack.c.0.s8 %v802
          %v804 = vperm.slane %v767, %v803
          %v807 = vunpack.c.l.s4 1983009808
          %v808 = vunpack.c.0.s8 %v807
          %v809 = vperm.slane %v773, %v808
          %v810 = vrot.slane %v809, 4
          %v811 = vsel %vm712, %v810, %v804
          %v812 = vrot.slane %v804, 4
          %v813 = vsel %vm712, %v809, %v812
          %v815 = vunpack.c.l.s4 1934713408
          %v816 = vunpack.c.0.s8 %v815
          %v817 = vperm.slane %v811, %v816
          %v819 = vunpack.c.l.s4 1934713408
          %v820 = vunpack.c.0.s8 %v819
          %v821 = vperm.slane %v813, %v820
          %v822 = vrot.slane %v817, 4
          %v823 = vsel %vm712, 0, %v822
          %v824 = vrot.slane %v821, 4
          %v825 = vsel %vm712, 0, %v824
          %v826 = vsel %vm712, %v726, %v719
          %v828 = vunpack.c.l.s4 1983009808
          %v829 = vunpack.c.0.s8 %v828
          %v830 = vperm.slane %v826, %v829
          %v831 = vrot.slane %v727, 4
          %v832 = vsel %vm712, %v831, %v725
          %v834 = vunpack.c.l.s4 1983009808
          %v835 = vunpack.c.0.s8 %v834
          %v836 = vperm.slane %v832, %v835
          %v837 = vrot.slane %v836, 4
          %v838 = vsel %vm712, %v837, %v830
          %v840 = vunpack.c.l.s4 1934713408
          %v841 = vunpack.c.0.s8 %v840
          %v842 = vperm.slane %v838, %v841
          %v843 = vrot.slane %v842, 4
          %v844 = vsel %vm712, 0, %v843
          %v845 = vsel %vm712, %v752, %v745
          %v847 = vunpack.c.l.s4 1983009808
          %v848 = vunpack.c.0.s8 %v847
          %v849 = vperm.slane %v845, %v848
          %v850 = vrot.slane %v753, 4
          %v851 = vsel %vm712, %v850, %v751
          %v853 = vunpack.c.l.s4 1983009808
          %v854 = vunpack.c.0.s8 %v853
          %v855 = vperm.slane %v851, %v854
          %v856 = vrot.slane %v855, 4
          %v857 = vsel %vm712, %v856, %v849
          %v859 = vunpack.c.l.s4 1934713408
          %v860 = vunpack.c.0.s8 %v859
          %v861 = vperm.slane %v857, %v860
          %v862 = vrot.slane %v861, 4
          %v863 = vsel %vm712, 0, %v862
          %v866 = vpack.i.b16 %v861, %v842
          %v868 = vshrl.u32 %v842, 16
          %v869 = vshrl.u32 %v861, 16
          %v870 = vpack.i.b16 %v869, %v868
          %v874 = vpack.i.b16 %v863, %v844
          %v876 = vshrl.u32 %v844, 16
          %v877 = vshrl.u32 %v863, 16
          %v878 = vpack.i.b16 %v877, %v876
          %vm880 = vcmask 60416
          %881 = vst.msk [vmem:[#allocation2] sm:$0xf] %vm880, %v866
          %882 = vst.msk [vmem:[#allocation2 + $0x4] sm:$0xf] %vm880, %v870
          %883 = vst.msk [vmem:[#allocation2 + $0x8] sm:$0xf] %vm880, %v874
          %884 = vst.msk [vmem:[#allocation2 + $0xc] sm:$0xf] %vm880, %v878
          %v885 = vsel %vm712, %v798, %v791
          %v887 = vunpack.c.l.s4 1983009808
          %v888 = vunpack.c.0.s8 %v887
          %v889 = vperm.slane %v885, %v888
          %v890 = vrot.slane %v799, 4
          %v891 = vsel %vm712, %v890, %v797
          %v893 = vunpack.c.l.s4 1983009808
          %v894 = vunpack.c.0.s8 %v893
          %v895 = vperm.slane %v891, %v894
          %v896 = vrot.slane %v895, 4
          %v897 = vsel %vm712, %v896, %v889
          %v899 = vunpack.c.l.s4 1934713408
          %v900 = vunpack.c.0.s8 %v899
          %v901 = vperm.slane %v897, %v900
          %v902 = vrot.slane %v901, 4
          %v903 = vsel %vm712, 0, %v902
          %v904 = vsel %vm712, %v824, %v817
          %v906 = vunpack.c.l.s4 1983009808
          %v907 = vunpack.c.0.s8 %v906
          %v908 = vperm.slane %v904, %v907
          %v909 = vrot.slane %v825, 4
          %v910 = vsel %vm712, %v909, %v823
          %v912 = vunpack.c.l.s4 1983009808
          %v913 = vunpack.c.0.s8 %v912
          %v914 = vperm.slane %v910, %v913
          %v915 = vrot.slane %v914, 4
          %v916 = vsel %vm712, %v915, %v908
          %v918 = vunpack.c.l.s4 1934713408
          %v919 = vunpack.c.0.s8 %v918
          %v920 = vperm.slane %v916, %v919
          %v921 = vrot.slane %v920, 4
          %v922 = vsel %vm712, 0, %v921
          %v925 = vpack.i.b16 %v920, %v901
          %v927 = vshrl.u32 %v901, 16
          %v928 = vshrl.u32 %v920, 16
          %v929 = vpack.i.b16 %v928, %v927
          %v933 = vpack.i.b16 %v922, %v903
          %v935 = vshrl.u32 %v903, 16
          %v936 = vshrl.u32 %v922, 16
          %v937 = vpack.i.b16 %v936, %v935
          %939 = vst.msk [vmem:[#allocation3] sm:$0xf] %vm880, %v925
          %940 = vst.msk [vmem:[#allocation3 + $0x4] sm:$0xf] %vm880, %v929
          %941 = vst.msk [vmem:[#allocation3 + $0x8] sm:$0xf] %vm880, %v933
          %942 = vst.msk [vmem:[#allocation3 + $0xc] sm:$0xf] %vm880, %v937
        $region96: #{tpu_custom_call.1} parent=75 // pred_fallthru
          _
        %v943 = vld [vmem:[%s607] sm:$0xff]
        %v944 = vpack.c.bf16 %v943, %v943
        %v945 = vld [vmem:[%s2] sm:$0xf]
        %v946 = vld [vmem:[%s2 + $0x4] sm:$0xf]
        %v947 = vld [vmem:[%s2 + $0x8] sm:$0xf]
        %v948 = vld [vmem:[%s2 + $0xc] sm:$0xf]
        %v953 = vunpack.c.l.b16 %v945
        %v954 = vunpack.c.l.b16 %v946
        %v955 = vunpack.c.l.b16 %v947
        %v956 = vunpack.c.l.b16 %v948
        %v957 = vpack.c.b16 %v954, %v953
        %v958 = vpack.c.b16 %v956, %v955
        %vm961 = vcmask 261120
        %v963 = vsel %vm961, %v944, 0
        %965 = vmatpush.bf16.msra.mxu0 0
        %966 = vmatpush.bf16.msra.mxu0 0
        %967 = vmatpush.bf16.msra.mxu0 0
        %968 = vmatpush.bf16.msra.mxu0 0
        %969 = vmatpush.bf16.msra.mxu0 0
        %970 = vmatpush.bf16.msra.mxu0 0
        %971 = vmatpush.bf16.msra.mxu0 %v958
        %972 = vmatpush.bf16.msra.mxu0 %v957
        %973 = vmatmul.bf16.gmra.mxu0 %v963
        %v974 = vpop.f32.mrf.mxu0
        %v975 = vadd.f32 0.0, %v974
        %v976 = vpop.f32.mrf.mxu0
        %977 = vdwg.mxu0
        %979 = vrot.lane.b32.xlu0 %v975, 120
        %v980 = vpop.permute.xlu0 %979
        %982 = vrot.lane.b32.xlu0 %v975, 112
        %v983 = vpop.permute.xlu0 %982
        %985 = vrot.lane.b32.xlu0 %v975, 104
        %v986 = vpop.permute.xlu0 %985
        %v988 = vrot.slane %v983, 4
        %vm989 = vcmask 1047556
        %v990 = vsel %vm989, %v988, %v975
        %v991 = vrot.slane %v975, 4
        %v992 = vsel %vm989, %v983, %v991
        %v994 = vunpack.c.l.s4 1983009808
        %v995 = vunpack.c.0.s8 %v994
        %v996 = vperm.slane %v990, %v995
        %v998 = vunpack.c.l.s4 1983009808
        %v999 = vunpack.c.0.s8 %v998
        %v1000 = vperm.slane %v992, %v999
        %v1001 = vrot.slane %v986, 4
        %v1002 = vsel %vm989, %v1001, %v980
        %v1003 = vrot.slane %v980, 4
        %v1004 = vsel %vm989, %v986, %v1003
        %v1006 = vunpack.c.l.s4 1983009808
        %v1007 = vunpack.c.0.s8 %v1006
        %v1008 = vperm.slane %v1002, %v1007
        %v1010 = vunpack.c.l.s4 1983009808
        %v1011 = vunpack.c.0.s8 %v1010
        %v1012 = vperm.slane %v1004, %v1011
        %v1013 = vrot.slane %v1008, 4
        %v1014 = vsel %vm989, %v1013, %v996
        %v1015 = vrot.slane %v996, 4
        %v1016 = vsel %vm989, %v1008, %v1015
        %v1018 = vunpack.c.l.s4 1934713408
        %v1019 = vunpack.c.0.s8 %v1018
        %v1020 = vperm.slane %v1014, %v1019
        %v1022 = vunpack.c.l.s4 1934713408
        %v1023 = vunpack.c.0.s8 %v1022
        %v1024 = vperm.slane %v1016, %v1023
        %v1025 = vrot.slane %v1012, 4
        %v1026 = vsel %vm989, %v1025, %v1000
        %v1027 = vrot.slane %v1000, 4
        %v1028 = vsel %vm989, %v1012, %v1027
        %v1030 = vunpack.c.l.s4 1934713408
        %v1031 = vunpack.c.0.s8 %v1030
        %v1032 = vperm.slane %v1026, %v1031
        %v1034 = vunpack.c.l.s4 1934713408
        %v1035 = vunpack.c.0.s8 %v1034
        %v1036 = vperm.slane %v1028, %v1035
        %v1037 = vrot.slane %v1020, 4
        %v1038 = vsel %vm989, 0.0, %v1037
        %v1039 = vrot.slane %v1024, 4
        %v1040 = vsel %vm989, 0.0, %v1039
        %v1041 = vrot.slane %v1032, 4
        %v1042 = vsel %vm989, 0.0, %v1041
        %v1043 = vrot.slane %v1036, 4
        %v1044 = vsel %vm989, 0.0, %v1043
        %v1045 = vsel %vm989, %v1039, %v1020
        %v1047 = vunpack.c.l.s4 1983009808
        %v1048 = vunpack.c.0.s8 %v1047
        %v1049 = vperm.slane %v1045, %v1048
        %v1050 = vrot.slane %v1040, 4
        %v1051 = vsel %vm989, %v1050, %v1038
        %v1053 = vunpack.c.l.s4 1983009808
        %v1054 = vunpack.c.0.s8 %v1053
        %v1055 = vperm.slane %v1051, %v1054
        %v1056 = vsel %vm989, %v1043, %v1032
        %v1058 = vunpack.c.l.s4 1983009808
        %v1059 = vunpack.c.0.s8 %v1058
        %v1060 = vperm.slane %v1056, %v1059
        %v1061 = vrot.slane %v1044, 4
        %v1062 = vsel %vm989, %v1061, %v1042
        %v1064 = vunpack.c.l.s4 1983009808
        %v1065 = vunpack.c.0.s8 %v1064
        %v1066 = vperm.slane %v1062, %v1065
        %v1067 = vrot.slane %v1055, 4
        %v1068 = vsel %vm989, %v1067, %v1049
        %v1069 = vrot.slane %v1049, 4
        %v1070 = vsel %vm989, %v1055, %v1069
        %v1072 = vunpack.c.l.s4 1934713408
        %v1073 = vunpack.c.0.s8 %v1072
        %v1074 = vperm.slane %v1068, %v1073
        %v1076 = vunpack.c.l.s4 1934713408
        %v1077 = vunpack.c.0.s8 %v1076
        %v1078 = vperm.slane %v1070, %v1077
        %v1079 = vrot.slane %v1066, 4
        %v1080 = vsel %vm989, %v1079, %v1060
        %v1081 = vrot.slane %v1060, 4
        %v1082 = vsel %vm989, %v1066, %v1081
        %v1084 = vunpack.c.l.s4 1934713408
        %v1085 = vunpack.c.0.s8 %v1084
        %v1086 = vperm.slane %v1080, %v1085
        %v1088 = vunpack.c.l.s4 1934713408
        %v1089 = vunpack.c.0.s8 %v1088
        %v1090 = vperm.slane %v1082, %v1089
        %v1091 = vrot.slane %v1086, 4
        %v1092 = vsel %vm989, %v1091, %v1074
        %v1093 = vrot.slane %v1074, 4
        %v1094 = vsel %vm989, %v1086, %v1093
        %v1095 = vrot.slane %v1090, 4
        %v1096 = vsel %vm989, %v1095, %v1078
        %v1097 = vrot.slane %v1078, 4
        %v1098 = vsel %vm989, %v1090, %v1097
        %v1099 = vpack.c.bf16 %v1092, %v1092
        %v1100 = vpack.c.bf16 %v1094, %v1094
        %v1101 = vpack.c.bf16 %v1096, %v1096
        %v1102 = vpack.c.bf16 %v1098, %v1098
        %v1103 = vld [vmem:[#allocation2] sm:$0xf]
        %v1104 = vld [vmem:[#allocation2 + $0x4] sm:$0xf]
        %v1105 = vld [vmem:[#allocation2 + $0x8] sm:$0xf]
        %v1106 = vld [vmem:[#allocation2 + $0xc] sm:$0xf]
        %vm1107 = vcmask 64512
        %v1109 = vsel %vm1107, %v1099, 0
        %v1112 = vsel %vm1107, %v1103, 0
        %1114 = vmatpush.bf16.xpose.msra.mxu0 0
        %1115 = vmatpush.bf16.xpose.msra.mxu0 0
        %1116 = vmatpush.bf16.xpose.msra.mxu0 0
        %1117 = vmatpush.bf16.xpose.msra.mxu0 0
        %1118 = vmatpush.bf16.xpose.msra.mxu0 0
        %1119 = vmatpush.bf16.xpose.msra.mxu0 0
        %1120 = vmatpush.bf16.xpose.msra.mxu0 0
        %1121 = vmatpush.bf16.xpose.msra.mxu0 %v1112
        %1122 = vmatmul.bf16.gmra.mxu0 %v1109
        %v1123 = vpop.f32.mrf.mxu0
        %v1124 = vadd.f32 0.0, %v1123
        %v1125 = vpop.f32.mrf.mxu0
        %1126 = vdwg.mxu0
        %v1128 = vsel %vm1107, %v1100, 0
        %v1131 = vsel %vm1107, %v1104, 0
        %1133 = vmatpush.bf16.xpose.msra.mxu0 0
        %1134 = vmatpush.bf16.xpose.msra.mxu0 0
        %1135 = vmatpush.bf16.xpose.msra.mxu0 0
        %1136 = vmatpush.bf16.xpose.msra.mxu0 0
        %1137 = vmatpush.bf16.xpose.msra.mxu0 0
        %1138 = vmatpush.bf16.xpose.msra.mxu0 0
        %1139 = vmatpush.bf16.xpose.msra.mxu0 0
        %1140 = vmatpush.bf16.xpose.msra.mxu0 %v1131
        %1141 = vmatmul.bf16.gmra.mxu0 %v1128
        %v1142 = vpop.f32.mrf.mxu0
        %v1143 = vadd.f32 0.0, %v1142
        %v1144 = vpop.f32.mrf.mxu0
        %1145 = vdwg.mxu0
        %v1147 = vsel %vm1107, %v1101, 0
        %v1150 = vsel %vm1107, %v1105, 0
        %1152 = vmatpush.bf16.xpose.msra.mxu0 0
        %1153 = vmatpush.bf16.xpose.msra.mxu0 0
        %1154 = vmatpush.bf16.xpose.msra.mxu0 0
        %1155 = vmatpush.bf16.xpose.msra.mxu0 0
        %1156 = vmatpush.bf16.xpose.msra.mxu0 0
        %1157 = vmatpush.bf16.xpose.msra.mxu0 0
        %1158 = vmatpush.bf16.xpose.msra.mxu0 0
        %1159 = vmatpush.bf16.xpose.msra.mxu0 %v1150
        %1160 = vmatmul.bf16.gmra.mxu0 %v1147
        %v1161 = vpop.f32.mrf.mxu0
        %v1162 = vadd.f32 0.0, %v1161
        %v1163 = vpop.f32.mrf.mxu0
        %1164 = vdwg.mxu0
        %v1166 = vsel %vm1107, %v1102, 0
        %v1169 = vsel %vm1107, %v1106, 0
        %1171 = vmatpush.bf16.xpose.msra.mxu0 0
        %1172 = vmatpush.bf16.xpose.msra.mxu0 0
        %1173 = vmatpush.bf16.xpose.msra.mxu0 0
        %1174 = vmatpush.bf16.xpose.msra.mxu0 0
        %1175 = vmatpush.bf16.xpose.msra.mxu0 0
        %1176 = vmatpush.bf16.xpose.msra.mxu0 0
        %1177 = vmatpush.bf16.xpose.msra.mxu0 0
        %1178 = vmatpush.bf16.xpose.msra.mxu0 %v1169
        %1179 = vmatmul.bf16.gmra.mxu0 %v1166
        %v1180 = vpop.f32.mrf.mxu0
        %v1181 = vadd.f32 0.0, %v1180
        %v1182 = vpop.f32.mrf.mxu0
        %1183 = vdwg.mxu0
        %v1184 = vsel %vm1107, %v1124, -inf
        %1185 = vmax.xlane.f32.xlu0 %v1184
        %v1186 = vpop.xlane.xlu0 %1185
        %v1187 = vsel %vm1107, %v1143, -inf
        %1188 = vmax.xlane.f32.xlu0 %v1187
        %v1189 = vpop.xlane.xlu0 %1188
        %v1190 = vsel %vm1107, %v1162, -inf
        %1191 = vmax.xlane.f32.xlu0 %v1190
        %v1192 = vpop.xlane.xlu0 %1191
        %v1193 = vsel %vm1107, %v1181, -inf
        %1194 = vmax.xlane.f32.xlu0 %v1193
        %v1195 = vpop.xlane.xlu0 %1194
        %v1196 = vsub.f32 %v1124, %v1186
        %v1197 = vsub.f32 %v1143, %v1189
        %v1198 = vsub.f32 %v1162, %v1192
        %v1199 = vsub.f32 %v1181, %v1195
        %v1200 = vmul.f32 %v1196, 1.442695
        %v1201 = vpow.pop %v1200
        %v1202 = vmul.f32 %v1197, 1.442695
        %v1203 = vpow.pop %v1202
        %v1204 = vmul.f32 %v1198, 1.442695
        %v1205 = vpow.pop %v1204
        %v1206 = vmul.f32 %v1199, 1.442695
        %v1207 = vpow.pop %v1206
        %v1208 = vsel %vm1107, %v1201, 0.0
        %1209 = vadd.xlane.f32.xlu0 %v1208
        %v1210 = vpop.xlane.xlu0 %1209
        %v1211 = vsel %vm1107, %v1203, 0.0
        %1212 = vadd.xlane.f32.xlu0 %v1211
        %v1213 = vpop.xlane.xlu0 %1212
        %v1214 = vsel %vm1107, %v1205, 0.0
        %1215 = vadd.xlane.f32.xlu0 %v1214
        %v1216 = vpop.xlane.xlu0 %1215
        %v1217 = vsel %vm1107, %v1207, 0.0
        %1218 = vadd.xlane.f32.xlu0 %v1217
        %v1219 = vpop.xlane.xlu0 %1218
        %v1220 = vrcp.pop %v1210
        %v1221 = vrcp.pop %v1213
        %v1222 = vrcp.pop %v1216
        %v1223 = vrcp.pop %v1219
        %v1224 = vmul.f32 %v1201, %v1220
        %v1225 = vmul.f32 %v1203, %v1221
        %v1226 = vmul.f32 %v1205, %v1222
        %v1227 = vmul.f32 %v1207, %v1223
        %1228 = vst.msk [vmem:[%s600] sm:$0xff] %vm1107, %v1224
        %1229 = vst.msk [vmem:[%s600 + $0x8] sm:$0xff] %vm1107, %v1225
        %1230 = vst.msk [vmem:[%s600 + $0x10] sm:$0xff] %vm1107, %v1226
        %1231 = vst.msk [vmem:[%s600 + $0x18] sm:$0xff] %vm1107, %v1227
        %v1232 = vpack.c.bf16 %v1224, %v1224
        %v1233 = vpack.c.bf16 %v1225, %v1225
        %v1234 = vpack.c.bf16 %v1226, %v1226
        %v1235 = vpack.c.bf16 %v1227, %v1227
        %v1236 = vld [vmem:[#allocation3] sm:$0xf]
        %v1237 = vld [vmem:[#allocation3 + $0x4] sm:$0xf]
        %v1238 = vld [vmem:[#allocation3 + $0x8] sm:$0xf]
        %v1239 = vld [vmem:[#allocation3 + $0xc] sm:$0xf]
        %v1241 = vsel %vm1107, %v1232, 0
        %vm1243 = vcmask 1043456
        %v1245 = vsel %vm1243, %v1236, 0
        %1247 = vmatpush.bf16.msra.mxu0 0
        %1248 = vmatpush.bf16.msra.mxu0 0
        %1249 = vmatpush.bf16.msra.mxu0 0
        %1250 = vmatpush.bf16.msra.mxu0 0
        %1251 = vmatpush.bf16.msra.mxu0 0
        %1252 = vmatpush.bf16.msra.mxu0 0
        %1253 = vmatpush.bf16.msra.mxu0 0
        %1254 = vmatpush.bf16.msra.mxu0 %v1245
        %1255 = vmatmul.bf16.gmra.mxu0 %v1241
        %v1256 = vpop.f32.mrf.mxu0
        %v1257 = vadd.f32 0.0, %v1256
        %v1258 = vpop.f32.mrf.mxu0
        %1259 = vdwg.mxu0
        %v1261 = vsel %vm1107, %v1233, 0
        %v1264 = vsel %vm1243, %v1237, 0
        %1266 = vmatpush.bf16.msra.mxu0 0
        %1267 = vmatpush.bf16.msra.mxu0 0
        %1268 = vmatpush.bf16.msra.mxu0 0
        %1269 = vmatpush.bf16.msra.mxu0 0
        %1270 = vmatpush.bf16.msra.mxu0 0
        %1271 = vmatpush.bf16.msra.mxu0 0
        %1272 = vmatpush.bf16.msra.mxu0 0
        %1273 = vmatpush.bf16.msra.mxu0 %v1264
        %1274 = vmatmul.bf16.gmra.mxu0 %v1261
        %v1275 = vpop.f32.mrf.mxu0
        %v1276 = vadd.f32 0.0, %v1275
        %v1277 = vpop.f32.mrf.mxu0
        %1278 = vdwg.mxu0
        %v1280 = vsel %vm1107, %v1234, 0
        %v1283 = vsel %vm1243, %v1238, 0
        %1285 = vmatpush.bf16.msra.mxu0 0
        %1286 = vmatpush.bf16.msra.mxu0 0
        %1287 = vmatpush.bf16.msra.mxu0 0
        %1288 = vmatpush.bf16.msra.mxu0 0
        %1289 = vmatpush.bf16.msra.mxu0 0
        %1290 = vmatpush.bf16.msra.mxu0 0
        %1291 = vmatpush.bf16.msra.mxu0 0
        %1292 = vmatpush.bf16.msra.mxu0 %v1283
        %1293 = vmatmul.bf16.gmra.mxu0 %v1280
        %v1294 = vpop.f32.mrf.mxu0
        %v1295 = vadd.f32 0.0, %v1294
        %v1296 = vpop.f32.mrf.mxu0
        %1297 = vdwg.mxu0
        %v1299 = vsel %vm1107, %v1235, 0
        %v1302 = vsel %vm1243, %v1239, 0
        %1304 = vmatpush.bf16.msra.mxu0 0
        %1305 = vmatpush.bf16.msra.mxu0 0
        %1306 = vmatpush.bf16.msra.mxu0 0
        %1307 = vmatpush.bf16.msra.mxu0 0
        %1308 = vmatpush.bf16.msra.mxu0 0
        %1309 = vmatpush.bf16.msra.mxu0 0
        %1310 = vmatpush.bf16.msra.mxu0 0
        %1311 = vmatpush.bf16.msra.mxu0 %v1302
        %1312 = vmatmul.bf16.gmra.mxu0 %v1299
        %v1313 = vpop.f32.mrf.mxu0
        %v1314 = vadd.f32 0.0, %v1313
        %v1315 = vpop.f32.mrf.mxu0
        %1316 = vdwg.mxu0
        %v1317 = vrot.slane %v1295, 4
        %v1318 = vsel %vm989, %v1317, %v1257
        %v1319 = vrot.slane %v1257, 4
        %v1320 = vsel %vm989, %v1295, %v1319
        %v1322 = vunpack.c.l.s4 1983009808
        %v1323 = vunpack.c.0.s8 %v1322
        %v1324 = vperm.slane %v1318, %v1323
        %v1326 = vunpack.c.l.s4 1983009808
        %v1327 = vunpack.c.0.s8 %v1326
        %v1328 = vperm.slane %v1320, %v1327
        %v1329 = vrot.slane %v1314, 4
        %v1330 = vsel %vm989, %v1329, %v1276
        %v1331 = vrot.slane %v1276, 4
        %v1332 = vsel %vm989, %v1314, %v1331
        %v1334 = vunpack.c.l.s4 1983009808
        %v1335 = vunpack.c.0.s8 %v1334
        %v1336 = vperm.slane %v1330, %v1335
        %v1338 = vunpack.c.l.s4 1983009808
        %v1339 = vunpack.c.0.s8 %v1338
        %v1340 = vperm.slane %v1332, %v1339
        %v1341 = vrot.slane %v1336, 4
        %v1342 = vsel %vm989, %v1341, %v1324
        %v1343 = vrot.slane %v1324, 4
        %v1344 = vsel %vm989, %v1336, %v1343
        %v1346 = vunpack.c.l.s4 1934713408
        %v1347 = vunpack.c.0.s8 %v1346
        %v1348 = vperm.slane %v1342, %v1347
        %v1350 = vunpack.c.l.s4 1934713408
        %v1351 = vunpack.c.0.s8 %v1350
        %v1352 = vperm.slane %v1344, %v1351
        %v1353 = vrot.slane %v1340, 4
        %v1354 = vsel %vm989, %v1353, %v1328
        %v1355 = vrot.slane %v1328, 4
        %v1356 = vsel %vm989, %v1340, %v1355
        %v1358 = vunpack.c.l.s4 1934713408
        %v1359 = vunpack.c.0.s8 %v1358
        %v1360 = vperm.slane %v1354, %v1359
        %v1362 = vunpack.c.l.s4 1934713408
        %v1363 = vunpack.c.0.s8 %v1362
        %v1364 = vperm.slane %v1356, %v1363
        %v1365 = vrot.slane %v1348, 4
        %v1366 = vsel %vm989, 0.0, %v1365
        %v1367 = vrot.slane %v1352, 4
        %v1368 = vsel %vm989, 0.0, %v1367
        %v1369 = vrot.slane %v1360, 4
        %v1370 = vsel %vm989, 0.0, %v1369
        %v1371 = vrot.slane %v1364, 4
        %v1372 = vsel %vm989, 0.0, %v1371
        %v1373 = vsel %vm989, %v1367, %v1348
        %v1375 = vunpack.c.l.s4 1983009808
        %v1376 = vunpack.c.0.s8 %v1375
        %v1377 = vperm.slane %v1373, %v1376
        %v1378 = vrot.slane %v1368, 4
        %v1379 = vsel %vm989, %v1378, %v1366
        %v1381 = vunpack.c.l.s4 1983009808
        %v1382 = vunpack.c.0.s8 %v1381
        %v1383 = vperm.slane %v1379, %v1382
        %v1384 = vsel %vm989, %v1371, %v1360
        %v1386 = vunpack.c.l.s4 1983009808
        %v1387 = vunpack.c.0.s8 %v1386
        %v1388 = vperm.slane %v1384, %v1387
        %v1389 = vrot.slane %v1372, 4
        %v1390 = vsel %vm989, %v1389, %v1370
        %v1392 = vunpack.c.l.s4 1983009808
        %v1393 = vunpack.c.0.s8 %v1392
        %v1394 = vperm.slane %v1390, %v1393
        %v1395 = vrot.slane %v1383, 4
        %v1396 = vsel %vm989, %v1395, %v1377
        %v1397 = vrot.slane %v1377, 4
        %v1398 = vsel %vm989, %v1383, %v1397
        %v1400 = vunpack.c.l.s4 1934713408
        %v1401 = vunpack.c.0.s8 %v1400
        %v1402 = vperm.slane %v1396, %v1401
        %v1404 = vunpack.c.l.s4 1934713408
        %v1405 = vunpack.c.0.s8 %v1404
        %v1406 = vperm.slane %v1398, %v1405
        %v1407 = vrot.slane %v1394, 4
        %v1408 = vsel %vm989, %v1407, %v1388
        %v1409 = vrot.slane %v1388, 4
        %v1410 = vsel %vm989, %v1394, %v1409
        %v1412 = vunpack.c.l.s4 1934713408
        %v1413 = vunpack.c.0.s8 %v1412
        %v1414 = vperm.slane %v1408, %v1413
        %v1416 = vunpack.c.l.s4 1934713408
        %v1417 = vunpack.c.0.s8 %v1416
        %v1418 = vperm.slane %v1410, %v1417
        %v1419 = vrot.slane %v1414, 4
        %v1420 = vsel %vm989, %v1419, %v1402
        %v1421 = vrot.slane %v1402, 4
        %v1422 = vsel %vm989, %v1414, %v1421
        %v1423 = vrot.slane %v1418, 4
        %v1424 = vsel %vm989, %v1423, %v1406
        %v1425 = vrot.slane %v1406, 4
        %v1426 = vsel %vm989, %v1418, %v1425
        %1428 = vrot.lane.b32.xlu0 %v1422, 8
        %v1429 = vpop.permute.xlu0 %1428
        %1432 = vrot.lane.b32.xlu0 %v1424, 16
        %v1433 = vpop.permute.xlu0 %1432
        %1436 = vrot.lane.b32.xlu0 %v1426, 24
        %v1437 = vpop.permute.xlu0 %1436
        %v1439 = vsel %vm1107, %v1420, %v1429
        %vm1440 = vcmask 130048
        %v1441 = vsel %vm1440, %v1439, %v1433
        %vm1442 = vcmask 195584
        %v1443 = vsel %vm1442, %v1441, %v1437
        %v1444 = vpack.c.bf16 %v1443, %v1443
        %v1445 = vld [vmem:[#allocation9] sm:$0xf]
        %v1446 = vld [vmem:[#allocation9 + $0x4] sm:$0xf]
        %v1447 = vld [vmem:[#allocation9 + $0x8] sm:$0xf]
        %v1448 = vld [vmem:[#allocation9 + $0xc] sm:$0xf]
        %v1453 = vunpack.c.l.b16 %v1445
        %v1454 = vunpack.c.l.b16 %v1446
        %v1455 = vunpack.c.l.b16 %v1447
        %v1456 = vunpack.c.l.b16 %v1448
        %v1457 = vpack.c.b16 %v1454, %v1453
        %v1458 = vpack.c.b16 %v1456, %v1455
        %v1462 = vsel %vm961, %v1444, 0
        %1464 = vmatpush.bf16.msra.mxu0 0
        %1465 = vmatpush.bf16.msra.mxu0 0
        %1466 = vmatpush.bf16.msra.mxu0 0
        %1467 = vmatpush.bf16.msra.mxu0 0
        %1468 = vmatpush.bf16.msra.mxu0 0
        %1469 = vmatpush.bf16.msra.mxu0 0
        %1470 = vmatpush.bf16.msra.mxu0 %v1458
        %1471 = vmatpush.bf16.msra.mxu0 %v1457
        %1472 = vmatmul.bf16.gmra.mxu0 %v1462
        %v1473 = vpop.f32.mrf.mxu0
        %v1474 = vadd.f32 %v943, %v1473
        %v1475 = vpop.f32.mrf.mxu0
        %1476 = vdwg.mxu0
        %v1477 = vld [vmem:[%s6] sm:$0x1]
        %v1478 = vld [vmem:[%s7] sm:$0x1]
        %v1479 = vsel %vm961, %v1474, 0.0
        %1480 = vadd.xlane.f32.xlu0 %v1479
        %v1481 = vpop.xlane.xlu0 %1480
        %v1482 = vrcp.pop 32.0
        %v1483 = vmul.f32 32.0, %v1482
        %v1484 = vsub.f32 1.0, %v1483
        %v1485 = vmul.f32 %v1482, %v1484
        %v1486 = vadd.f32 %v1482, %v1485
        %vm1487 = vweird.f32 %v1482
        %v1488 = vsel %vm1487, %v1482, %v1486
        %v1489 = vmul.f32 %v1481, %v1488
        %v1490 = vsub.f32 %v1474, %v1489
        %v1491 = vmul.f32 %v1490, %v1490
        %v1492 = vsel %vm961, %v1491, 0.0
        %1493 = vadd.xlane.f32.xlu0 %v1492
        %v1494 = vpop.xlane.xlu0 %1493
        %v1495 = vmul.f32 %v1494, %v1488
        %v1496 = vadd.f32 %v1495, 1e-06
        %v1497 = vrsqrt.pop %v1496
        %v1498 = vmul.f32 %v1497, %v1496
        %v1499 = vmul.f32 %v1498, %v1497
        %v1500 = vmul.f32 0.5, %v1499
        %v1501 = vsub.f32 1.5, %v1500
        %v1502 = vmul.f32 %v1497, %v1501
        %vm1503 = vweird.f32 %v1496
        %vm1504 = vweird.f32 %v1497
        %vm1505 = vmor %vm1503, %vm1504
        %v1506 = vsel %vm1505, %v1497, %v1502
        %v1507 = vmul.f32 %v1490, %v1506
        %v1509 = vperm.slane %v1477, 0
        %v1511 = vmul.f32 %v1507, %v1509
        %v1513 = vperm.slane %v1478, 0
        %v1515 = vadd.f32 %v1511, %v1513
        %v1516 = vpack.c.bf16 %v1515, %v1515
        %v1517 = vld [vmem:[#allocation10] sm:$0xf]
        %v1518 = vld [vmem:[#allocation10 + $0x4] sm:$0xf]
        %v1519 = vld [vmem:[#allocation10 + $0x8] sm:$0xf]
        %v1520 = vld [vmem:[#allocation10 + $0xc] sm:$0xf]
        %v1521 = vld [vmem:[%s9] sm:$0x1]
        %v1523 = vperm.slane %v1521, 0
        %v1529 = vunpack.c.l.b16 %v1517
        %v1530 = vunpack.c.l.b16 %v1518
        %v1531 = vunpack.c.l.b16 %v1519
        %v1532 = vunpack.c.l.b16 %v1520
        %v1533 = vpack.c.b16 %v1530, %v1529
        %v1534 = vpack.c.b16 %v1532, %v1531
        %v1538 = vsel %vm961, %v1516, 0
        %1540 = vmatpush.bf16.msra.mxu0 0
        %1541 = vmatpush.bf16.msra.mxu0 0
        %1542 = vmatpush.bf16.msra.mxu0 0
        %1543 = vmatpush.bf16.msra.mxu0 0
        %1544 = vmatpush.bf16.msra.mxu0 0
        %1545 = vmatpush.bf16.msra.mxu0 0
        %1546 = vmatpush.bf16.msra.mxu0 %v1534
        %1547 = vmatpush.bf16.msra.mxu0 %v1533
        %1548 = vmatmul.bf16.gmra.mxu0 %v1538
        %v1549 = vpop.f32.mrf.mxu0
        %v1550 = vadd.f32 %v1523, %v1549
        %v1551 = vpop.f32.mrf.mxu0
        %1552 = vdwg.mxu0
        %v1553 = vmax.f32 %v1550, 0.0
        %v1554 = vpack.c.bf16 %v1553, %v1553
        %v1555 = vld [vmem:[%s10] sm:$0xf]
        %v1556 = vld [vmem:[%s10 + $0x4] sm:$0xf]
        %v1557 = vld [vmem:[%s10 + $0x8] sm:$0xf]
        %v1558 = vld [vmem:[%s10 + $0xc] sm:$0xf]
        %v1559 = vld [vmem:[%s10 + $0x10] sm:$0xf]
        %v1560 = vld [vmem:[%s10 + $0x14] sm:$0xf]
        %v1561 = vld [vmem:[%s10 + $0x18] sm:$0xf]
        %v1562 = vld [vmem:[%s10 + $0x1c] sm:$0xf]
        %v1563 = vld [vmem:[%s11] sm:$0x1]
        %v1565 = vperm.slane %v1563, 0
        %v1575 = vunpack.c.l.b16 %v1555
        %v1576 = vunpack.c.l.b16 %v1556
        %v1577 = vunpack.c.l.b16 %v1557
        %v1578 = vunpack.c.l.b16 %v1558
        %v1579 = vunpack.c.l.b16 %v1559
        %v1580 = vunpack.c.l.b16 %v1560
        %v1581 = vunpack.c.l.b16 %v1561
        %v1582 = vunpack.c.l.b16 %v1562
        %v1583 = vpack.c.b16 %v1576, %v1575
        %v1584 = vpack.c.b16 %v1578, %v1577
        %v1585 = vpack.c.b16 %v1580, %v1579
        %v1586 = vpack.c.b16 %v1582, %v1581
        %vm1591 = vcmask 523264
        %v1593 = vsel %vm1591, %v1554, 0
        %1595 = vmatpush.bf16.msra.mxu0 0
        %1596 = vmatpush.bf16.msra.mxu0 0
        %1597 = vmatpush.bf16.msra.mxu0 0
        %1598 = vmatpush.bf16.msra.mxu0 0
        %1599 = vmatpush.bf16.msra.mxu0 %v1586
        %1600 = vmatpush.bf16.msra.mxu0 %v1585
        %1601 = vmatpush.bf16.msra.mxu0 %v1584
        %1602 = vmatpush.bf16.msra.mxu0 %v1583
        %1603 = vmatmul.bf16.gmra.mxu0 %v1593
        %v1604 = vpop.f32.mrf.mxu0
        %v1605 = vadd.f32 %v1565, %v1604
        %v1606 = vpop.f32.mrf.mxu0
        %1607 = vdwg.mxu0
        %v1608 = vadd.f32 %v1605, %v1515
        %v1609 = vld [vmem:[%s12] sm:$0x1]
        %v1610 = vld [vmem:[%s13] sm:$0x1]
        %v1611 = vsel %vm961, %v1608, 0.0
        %1612 = vadd.xlane.f32.xlu0 %v1611
        %v1613 = vpop.xlane.xlu0 %1612
        %v1614 = vmul.f32 %v1613, %v1488
        %v1615 = vsub.f32 %v1608, %v1614
        %v1616 = vmul.f32 %v1615, %v1615
        %v1617 = vsel %vm961, %v1616, 0.0
        %1618 = vadd.xlane.f32.xlu0 %v1617
        %v1619 = vpop.xlane.xlu0 %1618
        %v1620 = vmul.f32 %v1619, %v1488
        %v1621 = vadd.f32 %v1620, 1e-06
        %v1622 = vrsqrt.pop %v1621
        %v1623 = vmul.f32 %v1622, %v1621
        %v1624 = vmul.f32 %v1623, %v1622
        %v1625 = vmul.f32 0.5, %v1624
        %v1626 = vsub.f32 1.5, %v1625
        %v1627 = vmul.f32 %v1622, %v1626
        %vm1628 = vweird.f32 %v1621
        %vm1629 = vweird.f32 %v1622
        %vm1630 = vmor %vm1628, %vm1629
        %v1631 = vsel %vm1630, %v1622, %v1627
        %v1632 = vmul.f32 %v1615, %v1631
        %v1634 = vperm.slane %v1609, 0
        %v1636 = vmul.f32 %v1632, %v1634
        %v1638 = vperm.slane %v1610, 0
        %v1640 = vadd.f32 %v1636, %v1638
        %1641 = vst.msk [vmem:[%s593] sm:$0xff] %vm961, %v1640
        %s1642 = sand.u32 %s364, 1
        %s1643 = scalar_lea.sflag [#allocation6], %s1642
        %s1644 = sand.u32 %s364, 1
        %s1645 = smul.addr %s1644, 8
        %s1646 = scalar_lea.vmem [#allocation12], %s1645
        %s1647 = sand.u32 %s392, 1
        %s1648 = scalar_lea.sflag [#allocation14], %s1647
        %s1649 = sand.u32 %s392, 1
        %s1650 = smul.addr %s1649, 32
        %s1651 = scalar_lea.vmem [#allocation13], %s1650
        // Predicated region
        $region97: #{tpu_custom_call.1} parent=75 // pred_check
          %p1652 = pneg %p374
        $region98: #{tpu_custom_call.1} parent=75 // pred_check_branch
          %1654 = sbr.rel (%p1652) target = $region100
        $region99: #{tpu_custom_call.1} parent=75 // pred_region
          %1656 = vsyncadd %s1643, 0
          %s1657 = sadd.s32 %s41, %s40
          %s1658 = smul.addr %s1657, 8
          %s1659 = scalar_lea.hbm %s14, %s1658
          %s1661 = sshll.u32 %s1646, 4
          %s1662 = int_to_ptr.vmem [resolvable:$true] %s1661
          %s1663 = sshll.u32 %s1659, 4
          %s1664 = int_to_ptr.hbm [resolvable:$true] %s1663
          %1666 = dma.vmem_to_hbm [thread:$0]  %s1662, 128, %s1664, %s1643
        $region100: #{tpu_custom_call.1} parent=75 // pred_fallthru
          _
        // Predicated region
        $region101: #{tpu_custom_call.1} parent=75 // pred_check
          %p1667 = pneg %p402
        $region102: #{tpu_custom_call.1} parent=75 // pred_check_branch
          %1669 = sbr.rel (%p1667) target = $region104
        $region103: #{tpu_custom_call.1} parent=75 // pred_region
          %1671 = vsyncadd %s1648, 0
          %s1672 = smul.addr %s40, 4
          %s1673 = sadd.s32 %s41, %s1672
          %s1674 = smul.addr %s1673, 8
          %s1675 = scalar_lea.hbm %s15, %s1674
          %s1676 = sshll.u32 %s1651, 4
          %s1677 = int_to_ptr.vmem [resolvable:$true] %s1676
          %s1678 = sshll.u32 %s1675, 4
          %s1679 = int_to_ptr.hbm [resolvable:$true] %s1678
          %1684 = dma.vmem_to_hbm [thread:$0]  %s1677, 512, %s1679, %s1648, 128, 128, 8
        $region104: #{tpu_custom_call.1} parent=75 // pred_fallthru
          _
      $region76: #{tpu_custom_call.1} parent=5 // pred_fallthru
        _
      %p1685 = scmp.le.s32.totalorder 2, %s31
      // Predicated region
      $region105: #{tpu_custom_call.1} parent=5 // pred_check
        %p1686 = pneg %p1685
      $region106: #{tpu_custom_call.1} parent=5 // pred_check_branch
        %1688 = sbr.rel (%p1686) target = $region108
      $region107: #{tpu_custom_call.1} parent=5 // pred_region
        %s1689 = ssub.s32 %s31, 2
        // Predicated region
        $region109: #{tpu_custom_call.1} parent=107 // pred_check
          %p1690 = pneg %p380
        $region110: #{tpu_custom_call.1} parent=107 // pred_check_branch
          %1692 = sbr.rel (%p1690) target = $region112
        $region111: #{tpu_custom_call.1} parent=107 // pred_region
          %s1693 = sand.u32 %s365, 1
          %s1694 = scalar_lea.sflag [#allocation6], %s1693
          %s1695 = sand.u32 %s365, 1
          %s1696 = smul.addr %s1695, 8
          %s1697 = scalar_lea.vmem [#allocation12], %s1696
          %1699 = dma.done %s1694, 128
        $region112: #{tpu_custom_call.1} parent=107 // pred_fallthru
          _
        // Predicated region
        $region113: #{tpu_custom_call.1} parent=107 // pred_check
          %p1700 = pneg %p408
        $region114: #{tpu_custom_call.1} parent=107 // pred_check_branch
          %1702 = sbr.rel (%p1700) target = $region116
        $region115: #{tpu_custom_call.1} parent=107 // pred_region
          %s1703 = sand.u32 %s393, 1
          %s1704 = scalar_lea.sflag [#allocation14], %s1703
          %s1705 = sand.u32 %s393, 1
          %s1706 = smul.addr %s1705, 32
          %s1707 = scalar_lea.vmem [#allocation13], %s1706
          %1709 = dma.done %s1704, 512
        $region116: #{tpu_custom_call.1} parent=107 // pred_fallthru
          _
      $region108: #{tpu_custom_call.1} parent=5 // pred_fallthru
        _
    $region6: #{tpu_custom_call.1} parent=1 // loop_footer
      %s35 = sadd.s32 1, %s31
    $region7: #{tpu_custom_call.1} parent=1 // loop_footer_branch
      %30 = sbr.rel target = $region3
    $region8: #{tpu_custom_call.1} parent=1 // loop_exit
      _
    %1710 = vsyncpa [#allocation5], 1
    %s1711 = scalar_lea.sflag [#allocation5], 1
    %1712 = vsyncpa %s1711, 1
    %1713 = vsyncpa [#allocation8], 1
    %1714 = vsyncpa [#allocation11], 1
    %1715 = vsyncpa [#allocation6], 1
    %s1716 = scalar_lea.sflag [#allocation6], 1
    %1717 = vsyncpa %s1716, 1
    %1718 = vsyncpa [#allocation14], 1
    %s1719 = scalar_lea.sflag [#allocation14], 1
    %1720 = vsyncpa %s1719, 1

</llo_original>
